<compile_context>
chip_gen: v7x
topology: tpu7x:2x2x1
jax: 0.10.0
libtpu: 0.0.40
codegen_flags: <defaults>
</compile_context>

<pallas_src>
import functools

import jax
import jax.numpy as jnp
from jax.experimental import pallas as pl
from jax.experimental.pallas import tpu as pltpu


# ---------------------------------------------------------------------------
# Kernel
# ---------------------------------------------------------------------------
def ops_mlp_kernel(x_ref,
                   w1_ref, b1_ref,
                   w2_ref, b2_ref,
                   w3_ref, b3_ref,
                   w4_ref, b4_ref,
                   score_ref, mask_ref, *, out_dim):
    cdt = w1_ref.dtype  # matmul compute dtype (bf16 or f32)

    # Conv1d(in_dim,128,1) -> ReLU      (BN1 folded into w2/b2)
    h = jnp.dot(x_ref[...], w1_ref[...],
                preferred_element_type=jnp.float32) + b1_ref[...]
    h = jnp.maximum(h, 0.0).astype(cdt)

    # Conv1d(128,64,1) -> ReLU          (BN2 folded into w3/b3)
    h = jnp.dot(h, w2_ref[...],
                preferred_element_type=jnp.float32) + b2_ref[...]
    h = jnp.maximum(h, 0.0).astype(cdt)

    # Conv1d(64,16,1) -> ReLU           (BN3 folded into w4/b4)
    h = jnp.dot(h, w3_ref[...],
                preferred_element_type=jnp.float32) + b3_ref[...]
    h = jnp.maximum(h, 0.0).astype(cdt)

    # Conv1d(16,out_dim,1)  -> raw logits == end_points['ops_score']
    logits = jnp.dot(h, w4_ref[...],
                     preferred_element_type=jnp.float32) + b4_ref[...]
    score_ref[...] = logits

    # object_mask = argmax(softmax(logits), -1) == argmax(logits, -1)
    if out_dim == 2:
        # single VPU compare; strict '>' keeps torch's first-occurrence tie-break
        mask_ref[...] = (logits[:, 1:2] > logits[:, 0:1]).astype(jnp.int32)
    else:
        col = jax.lax.broadcasted_iota(jnp.int32, logits.shape, 1)
        mx = jnp.max(logits, axis=-1, keepdims=True)
        big = jnp.int32(2**31 - 1)
        mask_ref[...] = jnp.min(jnp.where(logits == mx, col, big),
                                axis=-1, keepdims=True)


PARAM_ORDER = ["w1", "b1", "w2", "b2", "w3", "b3", "w4", "b4"]


# ---------------------------------------------------------------------------
# Wrapper
# ---------------------------------------------------------------------------
@functools.partial(jax.jit, static_argnames=("tm",))
def ops_scores(x_flat, params, *, tm=512):
    """x_flat: (P, in_dim) f32.

    Returns (ops_score (P, out_dim) f32, object_mask (P, 1) i32).
    """
    P, cin = x_flat.shape
    cout = params["w4"].shape[1]
    cdt = params["w1"].dtype

    # Pad rows to a multiple of the tile (zeros; sliced off afterwards).
    n_blocks = pl.cdiv(P, tm)
    P_pad = n_blocks * tm
    if P_pad != P:
        x_flat = jnp.pad(x_flat, ((0, P_pad - P), (0, 0)))
    x_cast = x_flat.astype(cdt)

    def full_spec(shape):
        return pl.BlockSpec(shape, lambda i: (0,) * len(shape))

    in_specs = [pl.BlockSpec((tm, cin), lambda i: (i, 0))]
    in_specs += [full_spec(params[name].shape) for name in PARAM_ORDER]

    out_specs = [pl.BlockSpec((tm, cout), lambda i: (i, 0)),
                 pl.BlockSpec((tm, 1), lambda i: (i, 0))]
    out_shape = (jax.ShapeDtypeStruct((P_pad, cout), jnp.float32),
                 jax.ShapeDtypeStruct((P_pad, 1), jnp.int32))

    score, mask = pl.pallas_call(
        functools.partial(ops_mlp_kernel, out_dim=cout),
        grid=(n_blocks,),
        in_specs=in_specs,
        out_specs=out_specs,
        out_shape=out_shape,
        compiler_params=pltpu.CompilerParams(
            dimension_semantics=("parallel",)),
    )(x_cast, *[params[name] for name in PARAM_ORDER])

    return score[:P], mask[:P]


# ---------------------------------------------------------------------------
# Parameter construction / BN folding
# ---------------------------------------------------------------------------
def make_raw_params(key, in_dim, out_dim):
    """Deterministic synthetic Conv1d + BatchNorm1d (eval) parameters."""
    dims = [(in_dim, 128), (128, 64), (64, 16), (16, out_dim)]
    raw = {}
    keys = jax.random.split(key, 24)
    k_it = iter(keys)
    for li, (ci, co) in enumerate(dims, start=1):
        # Conv1d weight (co, ci, 1) in torch -> (ci, co) here.
        w = jax.random.normal(next(k_it), (ci, co), jnp.float32) / jnp.sqrt(ci)
        b = 0.1 * jax.random.normal(next(k_it), (1, co), jnp.float32)
        raw[f"w{li}"] = w
        raw[f"b{li}"] = b
        if li < 4:  # BatchNorm1d after the first three Conv+ReLU blocks
            raw[f"g{li}"] = 1.0 + 0.1 * jax.random.normal(next(k_it), (1, co), jnp.float32)
            raw[f"beta{li}"] = 0.1 * jax.random.normal(next(k_it), (1, co), jnp.float32)
            raw[f"m{li}"] = 0.5 * jax.random.normal(next(k_it), (1, co), jnp.float32)
            raw[f"v{li}"] = 0.5 + jax.random.uniform(next(k_it), (1, co), jnp.float32)
    return raw


def prepare_params(raw, compute_dtype=jnp.bfloat16, eps=1e-5):
    """Fold each BN (eval) into the *next* layer's weights; cast for the MXU."""
    p = {"w1": raw["w1"], "b1": raw["b1"]}
    for li in (1, 2, 3):
        s = raw[f"g{li}"] / jnp.sqrt(raw[f"v{li}"] + eps)      # (1, co)
        t = raw[f"beta{li}"] - raw[f"m{li}"] * s                # (1, co)
        w_next = raw[f"w{li + 1}"]
        p[f"w{li + 1}"] = s.T * w_next                          # scale rows
        p[f"b{li + 1}"] = t @ w_next + raw[f"b{li + 1}"]
    for li in range(1, 5):
        p[f"w{li}"] = p[f"w{li}"].astype(compute_dtype)
        p[f"b{li}"] = p[f"b{li}"].astype(jnp.float32)
    return p


# ---------------------------------------------------------------------------
# Reference (unfolded, matches the PyTorch Conv -> ReLU -> BN ordering)
# ---------------------------------------------------------------------------
def reference(x_flat, raw, eps=1e-5):
    def bn(h, li):
        return ((h - raw[f"m{li}"]) / jnp.sqrt(raw[f"v{li}"] + eps)
                * raw[f"g{li}"] + raw[f"beta{li}"])

    h = bn(jnp.maximum(x_flat @ raw["w1"] + raw["b1"], 0.0), 1)
    h = bn(jnp.maximum(h @ raw["w2"] + raw["b2"], 0.0), 2)
    h = bn(jnp.maximum(h @ raw["w3"] + raw["b3"], 0.0), 3)
    logits = h @ raw["w4"] + raw["b4"]
    probs = jax.nn.softmax(logits, axis=-1)
    return logits, jnp.argmax(probs, axis=-1)


def masks_agree_where_decisive(mask_kernel, ref_mask, ref_score, margin):
    """Compare argmax only where the reference decision margin is decisive."""
    diff = jnp.abs(ref_score[:, 1] - ref_score[:, 0])
    decisive = diff > margin
    return bool(jnp.all(jnp.where(decisive, mask_kernel == ref_mask, True)))


# ---------------------------------------------------------------------------
# Self-test
# ---------------------------------------------------------------------------
if __name__ == "__main__":
    # Small shapes consistent with the module: batch=2 clouds, N=300 points
    # (deliberately not a multiple of the tile to exercise padding),
    # in_dim=32 point features, out_dim=2 objectness classes.
    batch, n_points, in_dim, out_dim = 2, 300, 32, 2

    key = jax.random.PRNGKey(0)
    k_x, k_p = jax.random.split(key)
    x = jax.random.normal(k_x, (batch, n_points, in_dim), jnp.float32)
    raw = make_raw_params(k_p, in_dim, out_dim)

    x_flat = x.reshape(batch * n_points, in_dim)
    ref_score, ref_mask = reference(x_flat, raw)

    # --- f32 path: tight correctness check (validates the BN fold + kernel) --
    p32 = prepare_params(raw, compute_dtype=jnp.float32)
    score32, mask32 = ops_scores(x_flat, p32, tm=512)
    score32 = jax.block_until_ready(score32)
    mask32 = jax.block_until_ready(mask32)
    assert score32.shape == (batch * n_points, out_dim)
    assert mask32.shape == (batch * n_points, 1)
    assert jnp.allclose(score32, ref_score, atol=1e-3, rtol=1e-3)
    assert masks_agree_where_decisive(mask32[:, 0], ref_mask, ref_score, 1e-3)

    # --- bf16 matmul path (v6e/v7x perf dtype): loose check -----------------
    pbf = prepare_params(raw, compute_dtype=jnp.bfloat16)
    score_bf, mask_bf = ops_scores(x_flat, pbf, tm=512)
    score_bf = jax.block_until_ready(score_bf)
    mask_bf = jax.block_until_ready(mask_bf)
    assert jnp.allclose(score_bf, ref_score, atol=0.3, rtol=0.05)
    assert masks_agree_where_decisive(mask_bf[:, 0], ref_mask, ref_score, 0.3)
    agreement = float(jnp.mean((mask_bf[:, 0] == ref_mask).astype(jnp.float32)))
    assert agreement >= 0.9

    # end_points['ops_score'] in torch is (B, out_dim, N); map back via
    # reshape + transpose (channels-last -> NCW).
    ops_score_ncw = score32.reshape(batch, n_points, out_dim).transpose(0, 2, 1)
    object_mask = mask32.reshape(batch, n_points)
    assert ops_score_ncw.shape == (batch, out_dim, n_points)
    assert object_mask.shape == (batch, n_points)

    # TODO(synk): per-batch nonzero gather + farthest_point_sampler + knn_graph
    # + dgl.batch (ragged, graph-structured) remain host-side.

    print("KERNEL_OK")
</pallas_src>

<mosaic_0001>
module attributes {stable_mosaic.version = 11 : i64} {
  func.func @ops_mlp_kernel(%arg0: i32, %arg1: memref<512x32xf32, #tpu.memory_space<vmem>>, %arg2: memref<32x128xf32, #tpu.memory_space<vmem>>, %arg3: memref<1x128xf32, #tpu.memory_space<vmem>>, %arg4: memref<128x64xf32, #tpu.memory_space<vmem>>, %arg5: memref<1x64xf32, #tpu.memory_space<vmem>>, %arg6: memref<64x16xf32, #tpu.memory_space<vmem>>, %arg7: memref<1x16xf32, #tpu.memory_space<vmem>>, %arg8: memref<16x2xf32, #tpu.memory_space<vmem>>, %arg9: memref<1x2xf32, #tpu.memory_space<vmem>>, %arg10: memref<512x2xf32, #tpu.memory_space<vmem>>, %arg11: memref<512x1xi32, #tpu.memory_space<vmem>>) attributes {dimension_semantics = [#tpu.dimension_semantics<parallel>], iteration_bounds = array<i64: 2>, scalar_prefetch = 0 : i64, scratch_operands = 0 : i64, tpu.core_type = #tpu.core_type<tc>, window_params = [{transform_indices = @transform_0, window_bounds = array<i64: 512, 32>}, {pipeline_mode = #tpu.pipeline_mode<synchronous>, transform_indices = @transform_1, window_bounds = array<i64: 32, 128>}, {pipeline_mode = #tpu.pipeline_mode<synchronous>, transform_indices = @transform_2, window_bounds = array<i64: 1, 128>}, {pipeline_mode = #tpu.pipeline_mode<synchronous>, transform_indices = @transform_3, window_bounds = array<i64: 128, 64>}, {pipeline_mode = #tpu.pipeline_mode<synchronous>, transform_indices = @transform_4, window_bounds = array<i64: 1, 64>}, {pipeline_mode = #tpu.pipeline_mode<synchronous>, transform_indices = @transform_5, window_bounds = array<i64: 64, 16>}, {pipeline_mode = #tpu.pipeline_mode<synchronous>, transform_indices = @transform_6, window_bounds = array<i64: 1, 16>}, {pipeline_mode = #tpu.pipeline_mode<synchronous>, transform_indices = @transform_7, window_bounds = array<i64: 16, 2>}, {pipeline_mode = #tpu.pipeline_mode<synchronous>, transform_indices = @transform_8, window_bounds = array<i64: 1, 2>}, {transform_indices = @transform_9, window_bounds = array<i64: 512, 2>}, {transform_indices = @transform_10, window_bounds = array<i64: 512, 1>}]} {
    %c0 = arith.constant 0 : index
    %c0_0 = arith.constant 0 : index
    %0 = vector.load %arg1[%c0, %c0_0] : memref<512x32xf32, #tpu.memory_space<vmem>>, vector<512x32xf32>
    %c0_1 = arith.constant 0 : index
    %c0_2 = arith.constant 0 : index
    %1 = vector.load %arg2[%c0_1, %c0_2] : memref<32x128xf32, #tpu.memory_space<vmem>>, vector<32x128xf32>
    %cst = arith.constant dense<0.000000e+00> : vector<512x128xf32>
    %2 = tpu.matmul %0, %1, %cst {dimension_numbers = #tpu.dot_dimension_numbers<[1], [0], [0], [1], [0, 0, 1, 1], [], []>} : vector<512x32xf32>, vector<32x128xf32>, vector<512x128xf32> -> vector<512x128xf32>
    %c0_3 = arith.constant 0 : index
    %c0_4 = arith.constant 0 : index
    %3 = vector.load %arg3[%c0_3, %c0_4] : memref<1x128xf32, #tpu.memory_space<vmem>>, vector<1x128xf32>
    %4 = vector.broadcast %3 : vector<1x128xf32> to vector<512x128xf32>
    %5 = arith.addf %2, %4 : vector<512x128xf32>
    %cst_5 = arith.constant 0.000000e+00 : f32
    %6 = vector.broadcast %cst_5 : f32 to vector<512x128xf32>
    %7 = arith.maximumf %5, %6 : vector<512x128xf32>
    %c0_6 = arith.constant 0 : index
    %c0_7 = arith.constant 0 : index
    %8 = vector.load %arg4[%c0_6, %c0_7] : memref<128x64xf32, #tpu.memory_space<vmem>>, vector<128x64xf32>
    %cst_8 = arith.constant dense<0.000000e+00> : vector<512x64xf32>
    %9 = tpu.matmul %7, %8, %cst_8 {dimension_numbers = #tpu.dot_dimension_numbers<[1], [0], [0], [1], [0, 0, 1, 1], [], []>} : vector<512x128xf32>, vector<128x64xf32>, vector<512x64xf32> -> vector<512x64xf32>
    %c0_9 = arith.constant 0 : index
    %c0_10 = arith.constant 0 : index
    %10 = vector.load %arg5[%c0_9, %c0_10] : memref<1x64xf32, #tpu.memory_space<vmem>>, vector<1x64xf32>
    %11 = vector.broadcast %10 : vector<1x64xf32> to vector<512x64xf32>
    %12 = arith.addf %9, %11 : vector<512x64xf32>
    %cst_11 = arith.constant 0.000000e+00 : f32
    %13 = vector.broadcast %cst_11 : f32 to vector<512x64xf32>
    %14 = arith.maximumf %12, %13 : vector<512x64xf32>
    %c0_12 = arith.constant 0 : index
    %c0_13 = arith.constant 0 : index
    %15 = vector.load %arg6[%c0_12, %c0_13] : memref<64x16xf32, #tpu.memory_space<vmem>>, vector<64x16xf32>
    %cst_14 = arith.constant dense<0.000000e+00> : vector<512x16xf32>
    %16 = tpu.matmul %14, %15, %cst_14 {dimension_numbers = #tpu.dot_dimension_numbers<[1], [0], [0], [1], [0, 0, 1, 1], [], []>} : vector<512x64xf32>, vector<64x16xf32>, vector<512x16xf32> -> vector<512x16xf32>
    %c0_15 = arith.constant 0 : index
    %c0_16 = arith.constant 0 : index
    %17 = vector.load %arg7[%c0_15, %c0_16] : memref<1x16xf32, #tpu.memory_space<vmem>>, vector<1x16xf32>
    %18 = vector.broadcast %17 : vector<1x16xf32> to vector<512x16xf32>
    %19 = arith.addf %16, %18 : vector<512x16xf32>
    %cst_17 = arith.constant 0.000000e+00 : f32
    %20 = vector.broadcast %cst_17 : f32 to vector<512x16xf32>
    %21 = arith.maximumf %19, %20 : vector<512x16xf32>
    %c0_18 = arith.constant 0 : index
    %c0_19 = arith.constant 0 : index
    %22 = vector.load %arg8[%c0_18, %c0_19] : memref<16x2xf32, #tpu.memory_space<vmem>>, vector<16x2xf32>
    %cst_20 = arith.constant dense<0.000000e+00> : vector<512x2xf32>
    %23 = tpu.matmul %21, %22, %cst_20 {dimension_numbers = #tpu.dot_dimension_numbers<[1], [0], [0], [1], [0, 0, 1, 1], [], []>} : vector<512x16xf32>, vector<16x2xf32>, vector<512x2xf32> -> vector<512x2xf32>
    %c0_21 = arith.constant 0 : index
    %c0_22 = arith.constant 0 : index
    %24 = vector.load %arg9[%c0_21, %c0_22] : memref<1x2xf32, #tpu.memory_space<vmem>>, vector<1x2xf32>
    %25 = vector.broadcast %24 : vector<1x2xf32> to vector<512x2xf32>
    %26 = arith.addf %23, %25 : vector<512x2xf32>
    %c0_23 = arith.constant 0 : index
    %c0_24 = arith.constant 0 : index
    %27 = vector.load %arg10[%c0_23, %c0_24] : memref<512x2xf32, #tpu.memory_space<vmem>>, vector<512x2xf32>
    tpu.vector_store %arg10[%c0_23, %c0_24], %26 {strides = array<i32>} : memref<512x2xf32, #tpu.memory_space<vmem>>, vector<512x2xf32>,
    %28 = vector.extract_strided_slice %26 {offsets = [0, 1], sizes = [512, 1], strides = [1, 1]} : vector<512x2xf32> to vector<512x1xf32>
    %29 = vector.extract_strided_slice %26 {offsets = [0, 0], sizes = [512, 1], strides = [1, 1]} : vector<512x2xf32> to vector<512x1xf32>
    %30 = arith.cmpf ogt, %28, %29 : vector<512x1xf32>
    %31 = arith.extui %30 : vector<512x1xi1> to vector<512x1xi32>
    %c0_25 = arith.constant 0 : index
    %c0_26 = arith.constant 0 : index
    %32 = vector.load %arg11[%c0_25, %c0_26] : memref<512x1xi32, #tpu.memory_space<vmem>>, vector<512x1xi32>
    tpu.vector_store %arg11[%c0_25, %c0_26], %31 {strides = array<i32>} : memref<512x1xi32, #tpu.memory_space<vmem>>, vector<512x1xi32>,
    return
  }
  func.func @transform_0(%arg0: i32) -> (i32, i32) {
    %c0_i32 = arith.constant 0 : i32
    %c0_i32_0 = arith.constant 0 : i32
    return %arg0, %c0_i32 : i32, i32
  }
  func.func @transform_1(%arg0: i32) -> (i32, i32) {
    %c0_i32 = arith.constant 0 : i32
    %c0_i32_0 = arith.constant 0 : i32
    %c0_i32_1 = arith.constant 0 : i32
    return %c0_i32, %c0_i32_0 : i32, i32
  }
  func.func @transform_2(%arg0: i32) -> (i32, i32) {
    %c0_i32 = arith.constant 0 : i32
    %c0_i32_0 = arith.constant 0 : i32
    %c0_i32_1 = arith.constant 0 : i32
    return %c0_i32, %c0_i32_0 : i32, i32
  }
  func.func @transform_3(%arg0: i32) -> (i32, i32) {
    %c0_i32 = arith.constant 0 : i32
    %c0_i32_0 = arith.constant 0 : i32
    %c0_i32_1 = arith.constant 0 : i32
    return %c0_i32, %c0_i32_0 : i32, i32
  }
  func.func @transform_4(%arg0: i32) -> (i32, i32) {
    %c0_i32 = arith.constant 0 : i32
    %c0_i32_0 = arith.constant 0 : i32
    %c0_i32_1 = arith.constant 0 : i32
    return %c0_i32, %c0_i32_0 : i32, i32
  }
  func.func @transform_5(%arg0: i32) -> (i32, i32) {
    %c0_i32 = arith.constant 0 : i32
    %c0_i32_0 = arith.constant 0 : i32
    %c0_i32_1 = arith.constant 0 : i32
    return %c0_i32, %c0_i32_0 : i32, i32
  }
  func.func @transform_6(%arg0: i32) -> (i32, i32) {
    %c0_i32 = arith.constant 0 : i32
    %c0_i32_0 = arith.constant 0 : i32
    %c0_i32_1 = arith.constant 0 : i32
    return %c0_i32, %c0_i32_0 : i32, i32
  }
  func.func @transform_7(%arg0: i32) -> (i32, i32) {
    %c0_i32 = arith.constant 0 : i32
    %c0_i32_0 = arith.constant 0 : i32
    %c0_i32_1 = arith.constant 0 : i32
    return %c0_i32, %c0_i32_0 : i32, i32
  }
  func.func @transform_8(%arg0: i32) -> (i32, i32) {
    %c0_i32 = arith.constant 0 : i32
    %c0_i32_0 = arith.constant 0 : i32
    %c0_i32_1 = arith.constant 0 : i32
    return %c0_i32, %c0_i32_0 : i32, i32
  }
  func.func @transform_9(%arg0: i32) -> (i32, i32) {
    %c0_i32 = arith.constant 0 : i32
    %c0_i32_0 = arith.constant 0 : i32
    return %arg0, %c0_i32 : i32, i32
  }
  func.func @transform_10(%arg0: i32) -> (i32, i32) {
    %c0_i32 = arith.constant 0 : i32
    %c0_i32_0 = arith.constant 0 : i32
    return %arg0, %c0_i32 : i32, i32
  }
}

</mosaic_0001>

<llo_original>
// kernel: ops_scores.1
$region0: #{ops_scores.1}
  #allocation0 [shape = 'u32[]', space=smem, size = 0x4, offset = 0x4, fixed_abs, tag = 'smem constant byte address 0x4 - core index']
  #allocation1 [shape = 'u32[144,128]{1,0:T(1,128)}', space=vmem, size = 0x12000, scoped, tag = 'internal scratch']
  %s0 = inlined_call_operand.vmem [shape: f32[1024,32], index: 0, kind: input, shape index: {}]
  %s1 = inlined_call_operand.vmem [shape: f32[32,128], index: 1, kind: input, shape index: {}]
  %s2 = inlined_call_operand.vmem [shape: f32[1,128], index: 2, kind: input, shape index: {}]
  %s3 = inlined_call_operand.vmem [shape: f32[128,64], index: 3, kind: input, shape index: {}]
  %s4 = inlined_call_operand.vmem [shape: f32[1,64], index: 4, kind: input, shape index: {}]
  %s5 = inlined_call_operand.vmem [shape: f32[64,16], index: 5, kind: input, shape index: {}]
  %s6 = inlined_call_operand.vmem [shape: f32[1,16], index: 6, kind: input, shape index: {}]
  %s7 = inlined_call_operand.vmem [shape: f32[16,2], index: 7, kind: input, shape index: {}]
  %s8 = inlined_call_operand.vmem [shape: f32[1,2], index: 8, kind: input, shape index: {}]
  %s9 = inlined_call_operand.vmem [shape: f32[1024,2], index: 9, kind: output, shape index: {0}]
  %s10 = inlined_call_operand.vmem [shape: s32[1024,1], index: 10, kind: output, shape index: {1}]
  %11 = xla_tuple %s9, %s10
  %s12 = sld [smem:[#allocation0]]
  $region77: #{ops_scores.1} parent=0
    _
  %s14 = ssub.s32 1, %s12
  %s15 = scalar_select 0, %s14, %s12
  loop: start=0, step=1, limit=4
  $region2: #{ops_scores.1} parent=0 // loop_pre_header
    _
  $region3: #{ops_scores.1} parent=0 // loop_header
    %s17 = sphi 0, %s21
    %p18 = scmp.ge.s32.totalorder %s17, 4
    %s27 = sphi 0, %s29
    %s30 = sphi 0, %s27
    %s31 = sphi 0, %s30
    %s47 = sphi 0, %s31
    %s51 = sphi 0, %s51
    %s53 = sphi 0, %s51
    %s54 = sphi 0, %s53
    %s68 = sphi 0, %s54
    %s72 = sphi 0, %s72
    %s74 = sphi 0, %s72
    %s75 = sphi 0, %s74
    %s89 = sphi 0, %s75
    %s93 = sphi 0, %s93
    %s95 = sphi 0, %s93
    %s96 = sphi 0, %s95
    %s110 = sphi 0, %s96
    %s114 = sphi 0, %s114
    %s116 = sphi 0, %s114
    %s117 = sphi 0, %s116
    %s131 = sphi 0, %s117
    %s135 = sphi 0, %s135
    %s137 = sphi 0, %s135
    %s138 = sphi 0, %s137
    %s152 = sphi 0, %s138
    %s156 = sphi 0, %s156
    %s158 = sphi 0, %s156
    %s159 = sphi 0, %s158
    %s173 = sphi 0, %s159
    %s177 = sphi 0, %s177
    %s179 = sphi 0, %s177
    %s180 = sphi 0, %s179
    %s194 = sphi 0, %s180
    %s198 = sphi 0, %s198
    %s200 = sphi 0, %s198
    %s201 = sphi 0, %s200
    %s215 = sphi 0, %s201
    %s221 = sphi 0, %s223
    %s224 = sphi 0, %s221
    %s225 = sphi 0, %s224
    %s241 = sphi 0, %s225
    %s247 = sphi 0, %s249
    %s250 = sphi 0, %s247
    %s251 = sphi 0, %s250
    %s267 = sphi 0, %s251
  $region4: #{ops_scores.1} parent=0 // loop_header_branch
    %20 = sbr.rel (%p18) target = $region8
  $region5: #{ops_scores.1} parent=0 // loop_body
    %s22 = ssub.s32 %s17, 1
    %s23 = ssub.s32 %s17, 2
    %s24 = sadd.s32 %s17, 1
    %s25 = ssub.s32 %s17, %s24
    %p26 = scmp.eq.s32.totalorder %s25, 0
    %s28 = sadd.s32 %s27, 1
    %s29 = scalar_select %p26, %s27, %s28
    %p32 = pneg %p26
    %p33 = scmp.eq.s32.totalorder %s17, 1
    %p34 = por %p32, %p33
    %p35 = scmp.ne.s32.totalorder %s27, %s30
    %p36 = scmp.eq.s32.totalorder %s17, 0
    %p37 = por %p35, %p36
    %p38 = scmp.ne.s32.totalorder %s27, %s30
    %p39 = scmp.eq.s32.totalorder %s22, 1
    %p40 = por %p38, %p39
    %p41 = scmp.ne.s32.totalorder %s30, %s31
    %p42 = scmp.eq.s32.totalorder %s22, 0
    %p43 = por %p41, %p42
    %p44 = scmp.ne.s32.totalorder %s30, %s31
    %p45 = scmp.eq.s32.totalorder %s23, 1
    %p46 = por %p44, %p45
    %p48 = scmp.ne.s32.totalorder %s31, %s47
    %p49 = scmp.eq.s32.totalorder %s23, 0
    %p50 = por %p48, %p49
    %s52 = sadd.s32 %s51, 1
    %p55 = scmp.eq.s32.totalorder %s17, 1
    %p56 = scmp.ne.s32.totalorder %s51, %s53
    %p57 = scmp.eq.s32.totalorder %s17, 0
    %p58 = por %p56, %p57
    %p59 = scmp.ne.s32.totalorder %s51, %s53
    %p60 = scmp.eq.s32.totalorder %s22, 1
    %p61 = por %p59, %p60
    %p62 = scmp.ne.s32.totalorder %s53, %s54
    %p63 = scmp.eq.s32.totalorder %s22, 0
    %p64 = por %p62, %p63
    %p65 = scmp.ne.s32.totalorder %s53, %s54
    %p66 = scmp.eq.s32.totalorder %s23, 1
    %p67 = por %p65, %p66
    %p69 = scmp.ne.s32.totalorder %s54, %s68
    %p70 = scmp.eq.s32.totalorder %s23, 0
    %p71 = por %p69, %p70
    %s73 = sadd.s32 %s72, 1
    %p76 = scmp.eq.s32.totalorder %s17, 1
    %p77 = scmp.ne.s32.totalorder %s72, %s74
    %p78 = scmp.eq.s32.totalorder %s17, 0
    %p79 = por %p77, %p78
    %p80 = scmp.ne.s32.totalorder %s72, %s74
    %p81 = scmp.eq.s32.totalorder %s22, 1
    %p82 = por %p80, %p81
    %p83 = scmp.ne.s32.totalorder %s74, %s75
    %p84 = scmp.eq.s32.totalorder %s22, 0
    %p85 = por %p83, %p84
    %p86 = scmp.ne.s32.totalorder %s74, %s75
    %p87 = scmp.eq.s32.totalorder %s23, 1
    %p88 = por %p86, %p87
    %p90 = scmp.ne.s32.totalorder %s75, %s89
    %p91 = scmp.eq.s32.totalorder %s23, 0
    %p92 = por %p90, %p91
    %s94 = sadd.s32 %s93, 1
    %p97 = scmp.eq.s32.totalorder %s17, 1
    %p98 = scmp.ne.s32.totalorder %s93, %s95
    %p99 = scmp.eq.s32.totalorder %s17, 0
    %p100 = por %p98, %p99
    %p101 = scmp.ne.s32.totalorder %s93, %s95
    %p102 = scmp.eq.s32.totalorder %s22, 1
    %p103 = por %p101, %p102
    %p104 = scmp.ne.s32.totalorder %s95, %s96
    %p105 = scmp.eq.s32.totalorder %s22, 0
    %p106 = por %p104, %p105
    %p107 = scmp.ne.s32.totalorder %s95, %s96
    %p108 = scmp.eq.s32.totalorder %s23, 1
    %p109 = por %p107, %p108
    %p111 = scmp.ne.s32.totalorder %s96, %s110
    %p112 = scmp.eq.s32.totalorder %s23, 0
    %p113 = por %p111, %p112
    %s115 = sadd.s32 %s114, 1
    %p118 = scmp.eq.s32.totalorder %s17, 1
    %p119 = scmp.ne.s32.totalorder %s114, %s116
    %p120 = scmp.eq.s32.totalorder %s17, 0
    %p121 = por %p119, %p120
    %p122 = scmp.ne.s32.totalorder %s114, %s116
    %p123 = scmp.eq.s32.totalorder %s22, 1
    %p124 = por %p122, %p123
    %p125 = scmp.ne.s32.totalorder %s116, %s117
    %p126 = scmp.eq.s32.totalorder %s22, 0
    %p127 = por %p125, %p126
    %p128 = scmp.ne.s32.totalorder %s116, %s117
    %p129 = scmp.eq.s32.totalorder %s23, 1
    %p130 = por %p128, %p129
    %p132 = scmp.ne.s32.totalorder %s117, %s131
    %p133 = scmp.eq.s32.totalorder %s23, 0
    %p134 = por %p132, %p133
    %s136 = sadd.s32 %s135, 1
    %p139 = scmp.eq.s32.totalorder %s17, 1
    %p140 = scmp.ne.s32.totalorder %s135, %s137
    %p141 = scmp.eq.s32.totalorder %s17, 0
    %p142 = por %p140, %p141
    %p143 = scmp.ne.s32.totalorder %s135, %s137
    %p144 = scmp.eq.s32.totalorder %s22, 1
    %p145 = por %p143, %p144
    %p146 = scmp.ne.s32.totalorder %s137, %s138
    %p147 = scmp.eq.s32.totalorder %s22, 0
    %p148 = por %p146, %p147
    %p149 = scmp.ne.s32.totalorder %s137, %s138
    %p150 = scmp.eq.s32.totalorder %s23, 1
    %p151 = por %p149, %p150
    %p153 = scmp.ne.s32.totalorder %s138, %s152
    %p154 = scmp.eq.s32.totalorder %s23, 0
    %p155 = por %p153, %p154
    %s157 = sadd.s32 %s156, 1
    %p160 = scmp.eq.s32.totalorder %s17, 1
    %p161 = scmp.ne.s32.totalorder %s156, %s158
    %p162 = scmp.eq.s32.totalorder %s17, 0
    %p163 = por %p161, %p162
    %p164 = scmp.ne.s32.totalorder %s156, %s158
    %p165 = scmp.eq.s32.totalorder %s22, 1
    %p166 = por %p164, %p165
    %p167 = scmp.ne.s32.totalorder %s158, %s159
    %p168 = scmp.eq.s32.totalorder %s22, 0
    %p169 = por %p167, %p168
    %p170 = scmp.ne.s32.totalorder %s158, %s159
    %p171 = scmp.eq.s32.totalorder %s23, 1
    %p172 = por %p170, %p171
    %p174 = scmp.ne.s32.totalorder %s159, %s173
    %p175 = scmp.eq.s32.totalorder %s23, 0
    %p176 = por %p174, %p175
    %s178 = sadd.s32 %s177, 1
    %p181 = scmp.eq.s32.totalorder %s17, 1
    %p182 = scmp.ne.s32.totalorder %s177, %s179
    %p183 = scmp.eq.s32.totalorder %s17, 0
    %p184 = por %p182, %p183
    %p185 = scmp.ne.s32.totalorder %s177, %s179
    %p186 = scmp.eq.s32.totalorder %s22, 1
    %p187 = por %p185, %p186
    %p188 = scmp.ne.s32.totalorder %s179, %s180
    %p189 = scmp.eq.s32.totalorder %s22, 0
    %p190 = por %p188, %p189
    %p191 = scmp.ne.s32.totalorder %s179, %s180
    %p192 = scmp.eq.s32.totalorder %s23, 1
    %p193 = por %p191, %p192
    %p195 = scmp.ne.s32.totalorder %s180, %s194
    %p196 = scmp.eq.s32.totalorder %s23, 0
    %p197 = por %p195, %p196
    %s199 = sadd.s32 %s198, 1
    %p202 = scmp.eq.s32.totalorder %s17, 1
    %p203 = scmp.ne.s32.totalorder %s198, %s200
    %p204 = scmp.eq.s32.totalorder %s17, 0
    %p205 = por %p203, %p204
    %p206 = scmp.ne.s32.totalorder %s198, %s200
    %p207 = scmp.eq.s32.totalorder %s22, 1
    %p208 = por %p206, %p207
    %p209 = scmp.ne.s32.totalorder %s200, %s201
    %p210 = scmp.eq.s32.totalorder %s22, 0
    %p211 = por %p209, %p210
    %p212 = scmp.ne.s32.totalorder %s200, %s201
    %p213 = scmp.eq.s32.totalorder %s23, 1
    %p214 = por %p212, %p213
    %p216 = scmp.ne.s32.totalorder %s201, %s215
    %p217 = scmp.eq.s32.totalorder %s23, 0
    %p218 = por %p216, %p217
    %s219 = ssub.s32 %s17, %s24
    %p220 = scmp.eq.s32.totalorder %s219, 0
    %s222 = sadd.s32 %s221, 1
    %s223 = scalar_select %p220, %s221, %s222
    %p226 = pneg %p220
    %p227 = scmp.eq.s32.totalorder %s17, 1
    %p228 = por %p226, %p227
    %p229 = scmp.ne.s32.totalorder %s221, %s224
    %p230 = scmp.eq.s32.totalorder %s17, 0
    %p231 = por %p229, %p230
    %p232 = scmp.ne.s32.totalorder %s221, %s224
    %p233 = scmp.eq.s32.totalorder %s22, 1
    %p234 = por %p232, %p233
    %p235 = scmp.ne.s32.totalorder %s224, %s225
    %p236 = scmp.eq.s32.totalorder %s22, 0
    %p237 = por %p235, %p236
    %p238 = scmp.ne.s32.totalorder %s224, %s225
    %p239 = scmp.eq.s32.totalorder %s23, 1
    %p240 = por %p238, %p239
    %p242 = scmp.ne.s32.totalorder %s225, %s241
    %p243 = scmp.eq.s32.totalorder %s23, 0
    %p244 = por %p242, %p243
    %s245 = ssub.s32 %s17, %s24
    %p246 = scmp.eq.s32.totalorder %s245, 0
    %s248 = sadd.s32 %s247, 1
    %s249 = scalar_select %p246, %s247, %s248
    %p252 = pneg %p246
    %p253 = scmp.eq.s32.totalorder %s17, 1
    %p254 = por %p252, %p253
    %p255 = scmp.ne.s32.totalorder %s247, %s250
    %p256 = scmp.eq.s32.totalorder %s17, 0
    %p257 = por %p255, %p256
    %p258 = scmp.ne.s32.totalorder %s247, %s250
    %p259 = scmp.eq.s32.totalorder %s22, 1
    %p260 = por %p258, %p259
    %p261 = scmp.ne.s32.totalorder %s250, %s251
    %p262 = scmp.eq.s32.totalorder %s22, 0
    %p263 = por %p261, %p262
    %p264 = scmp.ne.s32.totalorder %s250, %s251
    %p265 = scmp.eq.s32.totalorder %s23, 1
    %p266 = por %p264, %p265
    %p268 = scmp.ne.s32.totalorder %s251, %s267
    %p269 = scmp.eq.s32.totalorder %s23, 0
    %p270 = por %p268, %p269
    %p271 = scmp.le.s32.totalorder 1, %s17
    %p272 = scmp.lt.s32.totalorder %s17, 3
    %p273 = pnand %p271, %p272
    %p274 = pneg %p273
    // Predicated region
    $region9: #{ops_scores.1} parent=5 // pred_check
      _
    $region10: #{ops_scores.1} parent=5 // pred_check_branch
      %276 = sbr.rel (%p273) target = $region12
    $region11: #{ops_scores.1} parent=5 // pred_region
      %s277 = ssub.s32 %s17, 1
      // Predicated region
      $region13: #{ops_scores.1} parent=11 // pred_check
        %p278 = pneg %p64
      $region14: #{ops_scores.1} parent=11 // pred_check_branch
        %280 = sbr.rel (%p278) target = $region16
      $region15: #{ops_scores.1} parent=11 // pred_region
        _
      $region16: #{ops_scores.1} parent=11 // pred_fallthru
        _
      // Predicated region
      $region17: #{ops_scores.1} parent=11 // pred_check
        %p281 = pneg %p85
      $region18: #{ops_scores.1} parent=11 // pred_check_branch
        %283 = sbr.rel (%p281) target = $region20
      $region19: #{ops_scores.1} parent=11 // pred_region
        _
      $region20: #{ops_scores.1} parent=11 // pred_fallthru
        _
      // Predicated region
      $region21: #{ops_scores.1} parent=11 // pred_check
        %p284 = pneg %p106
      $region22: #{ops_scores.1} parent=11 // pred_check_branch
        %286 = sbr.rel (%p284) target = $region24
      $region23: #{ops_scores.1} parent=11 // pred_region
        _
      $region24: #{ops_scores.1} parent=11 // pred_fallthru
        _
      // Predicated region
      $region25: #{ops_scores.1} parent=11 // pred_check
        %p287 = pneg %p127
      $region26: #{ops_scores.1} parent=11 // pred_check_branch
        %289 = sbr.rel (%p287) target = $region28
      $region27: #{ops_scores.1} parent=11 // pred_region
        _
      $region28: #{ops_scores.1} parent=11 // pred_fallthru
        _
      // Predicated region
      $region29: #{ops_scores.1} parent=11 // pred_check
        %p290 = pneg %p148
      $region30: #{ops_scores.1} parent=11 // pred_check_branch
        %292 = sbr.rel (%p290) target = $region32
      $region31: #{ops_scores.1} parent=11 // pred_region
        _
      $region32: #{ops_scores.1} parent=11 // pred_fallthru
        _
      // Predicated region
      $region33: #{ops_scores.1} parent=11 // pred_check
        %p293 = pneg %p169
      $region34: #{ops_scores.1} parent=11 // pred_check_branch
        %295 = sbr.rel (%p293) target = $region36
      $region35: #{ops_scores.1} parent=11 // pred_region
        _
      $region36: #{ops_scores.1} parent=11 // pred_fallthru
        _
      // Predicated region
      $region37: #{ops_scores.1} parent=11 // pred_check
        %p296 = pneg %p190
      $region38: #{ops_scores.1} parent=11 // pred_check_branch
        %298 = sbr.rel (%p296) target = $region40
      $region39: #{ops_scores.1} parent=11 // pred_region
        _
      $region40: #{ops_scores.1} parent=11 // pred_fallthru
        _
      // Predicated region
      $region41: #{ops_scores.1} parent=11 // pred_check
        %p299 = pneg %p211
      $region42: #{ops_scores.1} parent=11 // pred_check_branch
        %301 = sbr.rel (%p299) target = $region44
      $region43: #{ops_scores.1} parent=11 // pred_region
        _
      $region44: #{ops_scores.1} parent=11 // pred_fallthru
        _
    $region12: #{ops_scores.1} parent=5 // pred_fallthru
      _
    %p302 = scmp.lt.s32.totalorder %s17, 2
    // Predicated region
    $region45: #{ops_scores.1} parent=5 // pred_check
      %p303 = pneg %p302
    $region46: #{ops_scores.1} parent=5 // pred_check_branch
      %305 = sbr.rel (%p303) target = $region48
    $region47: #{ops_scores.1} parent=5 // pred_region
      // Predicated region
      $region49: #{ops_scores.1} parent=47 // pred_check
        %p306 = pneg %p37
      $region50: #{ops_scores.1} parent=47 // pred_check_branch
        %308 = sbr.rel (%p306) target = $region52
      $region51: #{ops_scores.1} parent=47 // pred_region
        %s309 = smul.u32 64, %s17
        %p310 = scmp.lt.s32.totalorder %s309, 127
        %s311 = scalar_select %p310, %s309, 127
        %s312 = smul.addr %s311, 8
        %s313 = scalar_lea.vmem %s0, %s312
        %s314 = smul.u32 64, %s17
      $region52: #{ops_scores.1} parent=47 // pred_fallthru
        _
    $region48: #{ops_scores.1} parent=5 // pred_fallthru
      _
    %p315 = scmp.le.s32.totalorder 1, %s17
    %p316 = scmp.lt.s32.totalorder %s17, 3
    %p317 = pnand %p315, %p316
    %p318 = pneg %p317
    // Predicated region
    $region53: #{ops_scores.1} parent=5 // pred_check
      _
    $region54: #{ops_scores.1} parent=5 // pred_check_branch
      %320 = sbr.rel (%p317) target = $region56
    $region55: #{ops_scores.1} parent=5 // pred_region
      %s321 = ssub.s32 %s17, 1
      %s322 = smul.u32 64, %s22
      %p323 = scmp.lt.s32.totalorder %s322, 127
      %s324 = scalar_select %p323, %s322, 127
      %s325 = smul.addr %s324, 8
      %s326 = scalar_lea.vmem %s0, %s325
      %p327 = pneg %p43
      %p328 = pneg %p40
      %p329 = pneg %p64
      %p330 = pneg %p61
      %p331 = pneg %p85
      %p332 = pneg %p82
      %p333 = pneg %p106
      %p334 = pneg %p103
      %p335 = pneg %p127
      %p336 = pneg %p124
      %p337 = pneg %p148
      %p338 = pneg %p145
      %p339 = pneg %p169
      %p340 = pneg %p166
      %p341 = pneg %p190
      %p342 = pneg %p187
      %p343 = pneg %p211
      %p344 = pneg %p208
      %p345 = pneg %p237
      %p346 = pneg %p234
      %s347 = smul.u32 64, %s22
      %p348 = scmp.lt.s32.totalorder %s347, 127
      %s349 = scalar_select %p348, %s347, 127
      %s350 = smul.addr %s349, 8
      %s351 = scalar_lea.vmem %s9, %s350
      %p352 = pneg %p263
      %p353 = pneg %p260
      %s354 = smul.u32 64, %s22
      %p355 = scmp.lt.s32.totalorder %s354, 127
      %s356 = scalar_select %p355, %s354, 127
      %s357 = smul.addr %s356, 8
      %s358 = scalar_lea.vmem %s10, %s357
      %s359 = smul.u32 64, %s22
      %p360 = scmp.lt.s32.totalorder %s359, 127
      %s361 = scalar_select %p360, %s359, 127
      %s362 = smul.addr %s361, 8
      %s363 = scalar_lea.vmem %s0, %s362
      %s364 = smul.u32 64, %s22
      %s365 = smul.u32 64, %s22
      %p366 = scmp.lt.s32.totalorder %s365, 127
      %s367 = scalar_select %p366, %s365, 127
      %s368 = smul.addr %s367, 8
      %s369 = scalar_lea.vmem %s9, %s368
      %s370 = smul.u32 64, %s22
      %s371 = smul.u32 64, %s22
      %p372 = scmp.lt.s32.totalorder %s371, 127
      %s373 = scalar_select %p372, %s371, 127
      %s374 = smul.addr %s373, 8
      %s375 = scalar_lea.vmem %s10, %s374
      %s376 = smul.u32 64, %s22
      %v377 = vld [vmem:[%s363] sm:$0xff]
      %v378 = vld [vmem:[%s363 + $0x8] sm:$0xff]
      %v379 = vld [vmem:[%s363 + $0x10] sm:$0xff]
      %v380 = vld [vmem:[%s363 + $0x18] sm:$0xff]
      %v381 = vld [vmem:[%s363 + $0x20] sm:$0xff]
      %v382 = vld [vmem:[%s363 + $0x28] sm:$0xff]
      %v383 = vld [vmem:[%s363 + $0x30] sm:$0xff]
      %v384 = vld [vmem:[%s363 + $0x38] sm:$0xff]
      %v385 = vld [vmem:[%s363 + $0x40] sm:$0xff]
      %v386 = vld [vmem:[%s363 + $0x48] sm:$0xff]
      %v387 = vld [vmem:[%s363 + $0x50] sm:$0xff]
      %v388 = vld [vmem:[%s363 + $0x58] sm:$0xff]
      %v389 = vld [vmem:[%s363 + $0x60] sm:$0xff]
      %v390 = vld [vmem:[%s363 + $0x68] sm:$0xff]
      %v391 = vld [vmem:[%s363 + $0x70] sm:$0xff]
      %v392 = vld [vmem:[%s363 + $0x78] sm:$0xff]
      %v393 = vld [vmem:[%s363 + $0x80] sm:$0xff]
      %v394 = vld [vmem:[%s363 + $0x88] sm:$0xff]
      %v395 = vld [vmem:[%s363 + $0x90] sm:$0xff]
      %v396 = vld [vmem:[%s363 + $0x98] sm:$0xff]
      %v397 = vld [vmem:[%s363 + $0xa0] sm:$0xff]
      %v398 = vld [vmem:[%s363 + $0xa8] sm:$0xff]
      %v399 = vld [vmem:[%s363 + $0xb0] sm:$0xff]
      %v400 = vld [vmem:[%s363 + $0xb8] sm:$0xff]
      %v401 = vld [vmem:[%s363 + $0xc0] sm:$0xff]
      %v402 = vld [vmem:[%s363 + $0xc8] sm:$0xff]
      %v403 = vld [vmem:[%s363 + $0xd0] sm:$0xff]
      %v404 = vld [vmem:[%s363 + $0xd8] sm:$0xff]
      %v405 = vld [vmem:[%s363 + $0xe0] sm:$0xff]
      %v406 = vld [vmem:[%s363 + $0xe8] sm:$0xff]
      %v407 = vld [vmem:[%s363 + $0xf0] sm:$0xff]
      %v408 = vld [vmem:[%s363 + $0xf8] sm:$0xff]
      %v409 = vld [vmem:[%s363 + $0x100] sm:$0xff]
      %v410 = vld [vmem:[%s363 + $0x108] sm:$0xff]
      %v411 = vld [vmem:[%s363 + $0x110] sm:$0xff]
      %v412 = vld [vmem:[%s363 + $0x118] sm:$0xff]
      %v413 = vld [vmem:[%s363 + $0x120] sm:$0xff]
      %v414 = vld [vmem:[%s363 + $0x128] sm:$0xff]
      %v415 = vld [vmem:[%s363 + $0x130] sm:$0xff]
      %v416 = vld [vmem:[%s363 + $0x138] sm:$0xff]
      %v417 = vld [vmem:[%s363 + $0x140] sm:$0xff]
      %v418 = vld [vmem:[%s363 + $0x148] sm:$0xff]
      %v419 = vld [vmem:[%s363 + $0x150] sm:$0xff]
      %v420 = vld [vmem:[%s363 + $0x158] sm:$0xff]
      %v421 = vld [vmem:[%s363 + $0x160] sm:$0xff]
      %v422 = vld [vmem:[%s363 + $0x168] sm:$0xff]
      %v423 = vld [vmem:[%s363 + $0x170] sm:$0xff]
      %v424 = vld [vmem:[%s363 + $0x178] sm:$0xff]
      %v425 = vld [vmem:[%s363 + $0x180] sm:$0xff]
      %v426 = vld [vmem:[%s363 + $0x188] sm:$0xff]
      %v427 = vld [vmem:[%s363 + $0x190] sm:$0xff]
      %v428 = vld [vmem:[%s363 + $0x198] sm:$0xff]
      %v429 = vld [vmem:[%s363 + $0x1a0] sm:$0xff]
      %v430 = vld [vmem:[%s363 + $0x1a8] sm:$0xff]
      %v431 = vld [vmem:[%s363 + $0x1b0] sm:$0xff]
      %v432 = vld [vmem:[%s363 + $0x1b8] sm:$0xff]
      %v433 = vld [vmem:[%s363 + $0x1c0] sm:$0xff]
      %v434 = vld [vmem:[%s363 + $0x1c8] sm:$0xff]
      %v435 = vld [vmem:[%s363 + $0x1d0] sm:$0xff]
      %v436 = vld [vmem:[%s363 + $0x1d8] sm:$0xff]
      %v437 = vld [vmem:[%s363 + $0x1e0] sm:$0xff]
      %v438 = vld [vmem:[%s363 + $0x1e8] sm:$0xff]
      %v439 = vld [vmem:[%s363 + $0x1f0] sm:$0xff]
      %v440 = vld [vmem:[%s363 + $0x1f8] sm:$0xff]
      %v441 = vld [vmem:[%s1] sm:$0xff]
      %v442 = vld [vmem:[%s1 + $0x8] sm:$0xff]
      %v443 = vld [vmem:[%s1 + $0x10] sm:$0xff]
      %v444 = vld [vmem:[%s1 + $0x18] sm:$0xff]
      %v445 = vld [vmem:[%s2] sm:$0x1]
      %v447 = vlaneseq
      %v448 = vshrl.u32 %v447, 7
      %v449 = vsub.s32 0, %v448
      %v450 = vrot.slane %v445, %v449
      %vm452 = vcmask 261120
      %v454 = vsel %vm452, %v377, 0
      %v457 = vsel %vm452, %v378, 0
      %v460 = vsel %vm452, %v379, 0
      %v463 = vsel %vm452, %v380, 0
      %v466 = vsel %vm452, %v381, 0
      %v469 = vsel %vm452, %v382, 0
      %v472 = vsel %vm452, %v383, 0
      %v475 = vsel %vm452, %v384, 0
      %v478 = vsel %vm452, %v385, 0
      %v481 = vsel %vm452, %v386, 0
      %v484 = vsel %vm452, %v387, 0
      %v487 = vsel %vm452, %v388, 0
      %v490 = vsel %vm452, %v389, 0
      %v493 = vsel %vm452, %v390, 0
      %v496 = vsel %vm452, %v391, 0
      %v499 = vsel %vm452, %v392, 0
      %v502 = vsel %vm452, %v393, 0
      %v505 = vsel %vm452, %v394, 0
      %v508 = vsel %vm452, %v395, 0
      %v511 = vsel %vm452, %v396, 0
      %v514 = vsel %vm452, %v397, 0
      %v517 = vsel %vm452, %v398, 0
      %v520 = vsel %vm452, %v399, 0
      %v523 = vsel %vm452, %v400, 0
      %v526 = vsel %vm452, %v401, 0
      %v529 = vsel %vm452, %v402, 0
      %v532 = vsel %vm452, %v403, 0
      %v535 = vsel %vm452, %v404, 0
      %v538 = vsel %vm452, %v405, 0
      %v541 = vsel %vm452, %v406, 0
      %v544 = vsel %vm452, %v407, 0
      %v547 = vsel %vm452, %v408, 0
      %v550 = vsel %vm452, %v409, 0
      %v553 = vsel %vm452, %v410, 0
      %v556 = vsel %vm452, %v411, 0
      %v559 = vsel %vm452, %v412, 0
      %v562 = vsel %vm452, %v413, 0
      %v565 = vsel %vm452, %v414, 0
      %v568 = vsel %vm452, %v415, 0
      %v571 = vsel %vm452, %v416, 0
      %v574 = vsel %vm452, %v417, 0
      %v577 = vsel %vm452, %v418, 0
      %v580 = vsel %vm452, %v419, 0
      %v583 = vsel %vm452, %v420, 0
      %v586 = vsel %vm452, %v421, 0
      %v589 = vsel %vm452, %v422, 0
      %v592 = vsel %vm452, %v423, 0
      %v595 = vsel %vm452, %v424, 0
      %v598 = vsel %vm452, %v425, 0
      %v601 = vsel %vm452, %v426, 0
      %v604 = vsel %vm452, %v427, 0
      %v607 = vsel %vm452, %v428, 0
      %v610 = vsel %vm452, %v429, 0
      %v613 = vsel %vm452, %v430, 0
      %v616 = vsel %vm452, %v431, 0
      %v619 = vsel %vm452, %v432, 0
      %v622 = vsel %vm452, %v433, 0
      %v625 = vsel %vm452, %v434, 0
      %v628 = vsel %vm452, %v435, 0
      %v631 = vsel %vm452, %v436, 0
      %v634 = vsel %vm452, %v437, 0
      %v637 = vsel %vm452, %v438, 0
      %v640 = vsel %vm452, %v439, 0
      %v643 = vsel %vm452, %v440, 0
      %645 = vmatprep.subr.mxu0 0.0
      %646 = vmatpush1.msra.mxu0 %v441
      %647 = vmatprep.subr.mxu0 0.0
      %648 = vmatpush1.msra.mxu0 %v442
      %649 = vmatprep.subr.mxu0 0.0
      %650 = vmatpush1.msra.mxu0 %v443
      %651 = vmatprep.subr.mxu0 0.0
      %652 = vmatpush1.msra.mxu0 %v444
      %653 = vmatprep.subr.mxu0 0.0
      %654 = vmatpush1.msra.mxu0 0.0
      %655 = vmatprep.subr.mxu0 0.0
      %656 = vmatpush1.msra.mxu0 0.0
      %657 = vmatprep.subr.mxu0 0.0
      %658 = vmatpush1.msra.mxu0 0.0
      %659 = vmatprep.subr.mxu0 0.0
      %660 = vmatpush1.msra.mxu0 0.0
      %661 = vmatprep.subr.mxu0 0.0
      %662 = vmatpush1.msra.mxu0 0.0
      %663 = vmatprep.subr.mxu0 0.0
      %664 = vmatpush1.msra.mxu0 0.0
      %665 = vmatprep.subr.mxu0 0.0
      %666 = vmatpush1.msra.mxu0 0.0
      %667 = vmatprep.subr.mxu0 0.0
      %668 = vmatpush1.msra.mxu0 0.0
      %669 = vmatprep.subr.mxu0 0.0
      %670 = vmatpush1.msra.mxu0 0.0
      %671 = vmatprep.subr.mxu0 0.0
      %672 = vmatpush1.msra.mxu0 0.0
      %673 = vmatprep.subr.mxu0 0.0
      %674 = vmatpush1.msra.mxu0 0.0
      %675 = vmatprep.subr.mxu0 0.0
      %676 = vmatpush1.msra.mxu0 0.0
      %677 = vmatprep.subr.mxu0 0.0
      %678 = vmatpush1.msra.mxu0 0.0
      %679 = vmatprep.subr.mxu0 0.0
      %680 = vmatpush1.msra.mxu0 0.0
      %681 = vmatprep.subr.mxu0 0.0
      %682 = vmatpush1.msra.mxu0 0.0
      %683 = vmatprep.subr.mxu0 0.0
      %684 = vmatpush1.msra.mxu0 0.0
      %685 = vmatprep.subr.mxu0 0.0
      %686 = vmatpush1.msra.mxu0 0.0
      %687 = vmatprep.subr.mxu0 0.0
      %688 = vmatpush1.msra.mxu0 0.0
      %689 = vmatprep.subr.mxu0 0.0
      %690 = vmatpush1.msra.mxu0 0.0
      %691 = vmatprep.subr.mxu0 0.0
      %692 = vmatpush1.msra.mxu0 0.0
      %693 = vmatprep.subr.mxu0 0.0
      %694 = vmatpush1.msra.mxu0 0.0
      %695 = vmatprep.subr.mxu0 0.0
      %696 = vmatpush1.msra.mxu0 0.0
      %697 = vmatprep.subr.mxu0 0.0
      %698 = vmatpush1.msra.mxu0 0.0
      %699 = vmatprep.subr.mxu0 0.0
      %700 = vmatpush1.msra.mxu0 0.0
      %701 = vmatprep.subr.mxu0 0.0
      %702 = vmatpush1.msra.mxu0 0.0
      %703 = vmatprep.subr.mxu0 0.0
      %704 = vmatpush1.msra.mxu0 0.0
      %705 = vmatprep.subr.mxu0 0.0
      %706 = vmatpush1.msra.mxu0 0.0
      %707 = vmatprep.subr.mxu0 0.0
      %708 = vmatpush1.msra.mxu0 0.0
      %709 = vmatprep.mubr.f32.mxu0 0.0
      %710 = vmatmul.mubr.f32.gmra.mrb[0].mxu0 %v454
      %v711 = vpop.f32.mrb[0].mxu0
      %v712 = vadd.f32 %v450, %v711
      %v713 = vpop.f32.mrb[0].mxu0
      %714 = vmatprep.mubr.f32.mxu0 0.0
      %715 = vmatmul.mubr.f32.gmra.mrb[0].mxu0 %v457
      %v716 = vpop.f32.mrb[0].mxu0
      %v717 = vadd.f32 %v450, %v716
      %v718 = vpop.f32.mrb[0].mxu0
      %719 = vmatprep.mubr.f32.mxu0 0.0
      %720 = vmatmul.mubr.f32.gmra.mrb[0].mxu0 %v460
      %v721 = vpop.f32.mrb[0].mxu0
      %v722 = vadd.f32 %v450, %v721
      %v723 = vpop.f32.mrb[0].mxu0
      %724 = vmatprep.mubr.f32.mxu0 0.0
      %725 = vmatmul.mubr.f32.gmra.mrb[0].mxu0 %v463
      %v726 = vpop.f32.mrb[0].mxu0
      %v727 = vadd.f32 %v450, %v726
      %v728 = vpop.f32.mrb[0].mxu0
      %729 = vmatprep.mubr.f32.mxu0 0.0
      %730 = vmatmul.mubr.f32.gmra.mrb[0].mxu0 %v466
      %v731 = vpop.f32.mrb[0].mxu0
      %v732 = vadd.f32 %v450, %v731
      %v733 = vpop.f32.mrb[0].mxu0
      %734 = vmatprep.mubr.f32.mxu0 0.0
      %735 = vmatmul.mubr.f32.gmra.mrb[0].mxu0 %v469
      %v736 = vpop.f32.mrb[0].mxu0
      %v737 = vadd.f32 %v450, %v736
      %v738 = vpop.f32.mrb[0].mxu0
      %739 = vmatprep.mubr.f32.mxu0 0.0
      %740 = vmatmul.mubr.f32.gmra.mrb[0].mxu0 %v472
      %v741 = vpop.f32.mrb[0].mxu0
      %v742 = vadd.f32 %v450, %v741
      %v743 = vpop.f32.mrb[0].mxu0
      %744 = vmatprep.mubr.f32.mxu0 0.0
      %745 = vmatmul.mubr.f32.gmra.mrb[0].mxu0 %v475
      %v746 = vpop.f32.mrb[0].mxu0
      %v747 = vadd.f32 %v450, %v746
      %v748 = vpop.f32.mrb[0].mxu0
      %749 = vmatprep.mubr.f32.mxu0 0.0
      %750 = vmatmul.mubr.f32.gmra.mrb[0].mxu0 %v478
      %v751 = vpop.f32.mrb[0].mxu0
      %v752 = vadd.f32 %v450, %v751
      %v753 = vpop.f32.mrb[0].mxu0
      %754 = vmatprep.mubr.f32.mxu0 0.0
      %755 = vmatmul.mubr.f32.gmra.mrb[0].mxu0 %v481
      %v756 = vpop.f32.mrb[0].mxu0
      %v757 = vadd.f32 %v450, %v756
      %v758 = vpop.f32.mrb[0].mxu0
      %759 = vmatprep.mubr.f32.mxu0 0.0
      %760 = vmatmul.mubr.f32.gmra.mrb[0].mxu0 %v484
      %v761 = vpop.f32.mrb[0].mxu0
      %v762 = vadd.f32 %v450, %v761
      %v763 = vpop.f32.mrb[0].mxu0
      %764 = vmatprep.mubr.f32.mxu0 0.0
      %765 = vmatmul.mubr.f32.gmra.mrb[0].mxu0 %v487
      %v766 = vpop.f32.mrb[0].mxu0
      %v767 = vadd.f32 %v450, %v766
      %v768 = vpop.f32.mrb[0].mxu0
      %769 = vmatprep.mubr.f32.mxu0 0.0
      %770 = vmatmul.mubr.f32.gmra.mrb[0].mxu0 %v490
      %v771 = vpop.f32.mrb[0].mxu0
      %v772 = vadd.f32 %v450, %v771
      %v773 = vpop.f32.mrb[0].mxu0
      %774 = vmatprep.mubr.f32.mxu0 0.0
      %775 = vmatmul.mubr.f32.gmra.mrb[0].mxu0 %v493
      %v776 = vpop.f32.mrb[0].mxu0
      %v777 = vadd.f32 %v450, %v776
      %v778 = vpop.f32.mrb[0].mxu0
      %779 = vmatprep.mubr.f32.mxu0 0.0
      %780 = vmatmul.mubr.f32.gmra.mrb[0].mxu0 %v496
      %v781 = vpop.f32.mrb[0].mxu0
      %v782 = vadd.f32 %v450, %v781
      %v783 = vpop.f32.mrb[0].mxu0
      %784 = vmatprep.mubr.f32.mxu0 0.0
      %785 = vmatmul.mubr.f32.gmra.mrb[0].mxu0 %v499
      %v786 = vpop.f32.mrb[0].mxu0
      %v787 = vadd.f32 %v450, %v786
      %v788 = vpop.f32.mrb[0].mxu0
      %789 = vmatprep.mubr.f32.mxu0 0.0
      %790 = vmatmul.mubr.f32.gmra.mrb[0].mxu0 %v502
      %v791 = vpop.f32.mrb[0].mxu0
      %v792 = vadd.f32 %v450, %v791
      %v793 = vpop.f32.mrb[0].mxu0
      %794 = vmatprep.mubr.f32.mxu0 0.0
      %795 = vmatmul.mubr.f32.gmra.mrb[0].mxu0 %v505
      %v796 = vpop.f32.mrb[0].mxu0
      %v797 = vadd.f32 %v450, %v796
      %v798 = vpop.f32.mrb[0].mxu0
      %799 = vmatprep.mubr.f32.mxu0 0.0
      %800 = vmatmul.mubr.f32.gmra.mrb[0].mxu0 %v508
      %v801 = vpop.f32.mrb[0].mxu0
      %v802 = vadd.f32 %v450, %v801
      %v803 = vpop.f32.mrb[0].mxu0
      %804 = vmatprep.mubr.f32.mxu0 0.0
      %805 = vmatmul.mubr.f32.gmra.mrb[0].mxu0 %v511
      %v806 = vpop.f32.mrb[0].mxu0
      %v807 = vadd.f32 %v450, %v806
      %v808 = vpop.f32.mrb[0].mxu0
      %809 = vmatprep.mubr.f32.mxu0 0.0
      %810 = vmatmul.mubr.f32.gmra.mrb[0].mxu0 %v514
      %v811 = vpop.f32.mrb[0].mxu0
      %v812 = vadd.f32 %v450, %v811
      %v813 = vpop.f32.mrb[0].mxu0
      %814 = vmatprep.mubr.f32.mxu0 0.0
      %815 = vmatmul.mubr.f32.gmra.mrb[0].mxu0 %v517
      %v816 = vpop.f32.mrb[0].mxu0
      %v817 = vadd.f32 %v450, %v816
      %v818 = vpop.f32.mrb[0].mxu0
      %819 = vmatprep.mubr.f32.mxu0 0.0
      %820 = vmatmul.mubr.f32.gmra.mrb[0].mxu0 %v520
      %v821 = vpop.f32.mrb[0].mxu0
      %v822 = vadd.f32 %v450, %v821
      %v823 = vpop.f32.mrb[0].mxu0
      %824 = vmatprep.mubr.f32.mxu0 0.0
      %825 = vmatmul.mubr.f32.gmra.mrb[0].mxu0 %v523
      %v826 = vpop.f32.mrb[0].mxu0
      %v827 = vadd.f32 %v450, %v826
      %v828 = vpop.f32.mrb[0].mxu0
      %829 = vmatprep.mubr.f32.mxu0 0.0
      %830 = vmatmul.mubr.f32.gmra.mrb[0].mxu0 %v526
      %v831 = vpop.f32.mrb[0].mxu0
      %v832 = vadd.f32 %v450, %v831
      %v833 = vpop.f32.mrb[0].mxu0
      %834 = vmatprep.mubr.f32.mxu0 0.0
      %835 = vmatmul.mubr.f32.gmra.mrb[0].mxu0 %v529
      %v836 = vpop.f32.mrb[0].mxu0
      %v837 = vadd.f32 %v450, %v836
      %v838 = vpop.f32.mrb[0].mxu0
      %839 = vmatprep.mubr.f32.mxu0 0.0
      %840 = vmatmul.mubr.f32.gmra.mrb[0].mxu0 %v532
      %v841 = vpop.f32.mrb[0].mxu0
      %v842 = vadd.f32 %v450, %v841
      %v843 = vpop.f32.mrb[0].mxu0
      %844 = vmatprep.mubr.f32.mxu0 0.0
      %845 = vmatmul.mubr.f32.gmra.mrb[0].mxu0 %v535
      %v846 = vpop.f32.mrb[0].mxu0
      %v847 = vadd.f32 %v450, %v846
      %v848 = vpop.f32.mrb[0].mxu0
      %849 = vmatprep.mubr.f32.mxu0 0.0
      %850 = vmatmul.mubr.f32.gmra.mrb[0].mxu0 %v538
      %v851 = vpop.f32.mrb[0].mxu0
      %v852 = vadd.f32 %v450, %v851
      %v853 = vpop.f32.mrb[0].mxu0
      %854 = vmatprep.mubr.f32.mxu0 0.0
      %855 = vmatmul.mubr.f32.gmra.mrb[0].mxu0 %v541
      %v856 = vpop.f32.mrb[0].mxu0
      %v857 = vadd.f32 %v450, %v856
      %v858 = vpop.f32.mrb[0].mxu0
      %859 = vmatprep.mubr.f32.mxu0 0.0
      %860 = vmatmul.mubr.f32.gmra.mrb[0].mxu0 %v544
      %v861 = vpop.f32.mrb[0].mxu0
      %v862 = vadd.f32 %v450, %v861
      %v863 = vpop.f32.mrb[0].mxu0
      %864 = vmatprep.mubr.f32.mxu0 0.0
      %865 = vmatmul.mubr.f32.gmra.mrb[0].mxu0 %v547
      %v866 = vpop.f32.mrb[0].mxu0
      %v867 = vadd.f32 %v450, %v866
      %v868 = vpop.f32.mrb[0].mxu0
      %869 = vmatprep.mubr.f32.mxu0 0.0
      %870 = vmatmul.mubr.f32.gmra.mrb[0].mxu0 %v550
      %v871 = vpop.f32.mrb[0].mxu0
      %v872 = vadd.f32 %v450, %v871
      %v873 = vpop.f32.mrb[0].mxu0
      %874 = vmatprep.mubr.f32.mxu0 0.0
      %875 = vmatmul.mubr.f32.gmra.mrb[0].mxu0 %v553
      %v876 = vpop.f32.mrb[0].mxu0
      %v877 = vadd.f32 %v450, %v876
      %v878 = vpop.f32.mrb[0].mxu0
      %879 = vmatprep.mubr.f32.mxu0 0.0
      %880 = vmatmul.mubr.f32.gmra.mrb[0].mxu0 %v556
      %v881 = vpop.f32.mrb[0].mxu0
      %v882 = vadd.f32 %v450, %v881
      %v883 = vpop.f32.mrb[0].mxu0
      %884 = vmatprep.mubr.f32.mxu0 0.0
      %885 = vmatmul.mubr.f32.gmra.mrb[0].mxu0 %v559
      %v886 = vpop.f32.mrb[0].mxu0
      %v887 = vadd.f32 %v450, %v886
      %v888 = vpop.f32.mrb[0].mxu0
      %889 = vmatprep.mubr.f32.mxu0 0.0
      %890 = vmatmul.mubr.f32.gmra.mrb[0].mxu0 %v562
      %v891 = vpop.f32.mrb[0].mxu0
      %v892 = vadd.f32 %v450, %v891
      %v893 = vpop.f32.mrb[0].mxu0
      %894 = vmatprep.mubr.f32.mxu0 0.0
      %895 = vmatmul.mubr.f32.gmra.mrb[0].mxu0 %v565
      %v896 = vpop.f32.mrb[0].mxu0
      %v897 = vadd.f32 %v450, %v896
      %v898 = vpop.f32.mrb[0].mxu0
      %899 = vmatprep.mubr.f32.mxu0 0.0
      %900 = vmatmul.mubr.f32.gmra.mrb[0].mxu0 %v568
      %v901 = vpop.f32.mrb[0].mxu0
      %v902 = vadd.f32 %v450, %v901
      %v903 = vpop.f32.mrb[0].mxu0
      %904 = vmatprep.mubr.f32.mxu0 0.0
      %905 = vmatmul.mubr.f32.gmra.mrb[0].mxu0 %v571
      %v906 = vpop.f32.mrb[0].mxu0
      %v907 = vadd.f32 %v450, %v906
      %v908 = vpop.f32.mrb[0].mxu0
      %909 = vmatprep.mubr.f32.mxu0 0.0
      %910 = vmatmul.mubr.f32.gmra.mrb[0].mxu0 %v574
      %v911 = vpop.f32.mrb[0].mxu0
      %v912 = vadd.f32 %v450, %v911
      %v913 = vpop.f32.mrb[0].mxu0
      %914 = vmatprep.mubr.f32.mxu0 0.0
      %915 = vmatmul.mubr.f32.gmra.mrb[0].mxu0 %v577
      %v916 = vpop.f32.mrb[0].mxu0
      %v917 = vadd.f32 %v450, %v916
      %v918 = vpop.f32.mrb[0].mxu0
      %919 = vmatprep.mubr.f32.mxu0 0.0
      %920 = vmatmul.mubr.f32.gmra.mrb[0].mxu0 %v580
      %v921 = vpop.f32.mrb[0].mxu0
      %v922 = vadd.f32 %v450, %v921
      %v923 = vpop.f32.mrb[0].mxu0
      %924 = vmatprep.mubr.f32.mxu0 0.0
      %925 = vmatmul.mubr.f32.gmra.mrb[0].mxu0 %v583
      %v926 = vpop.f32.mrb[0].mxu0
      %v927 = vadd.f32 %v450, %v926
      %v928 = vpop.f32.mrb[0].mxu0
      %929 = vmatprep.mubr.f32.mxu0 0.0
      %930 = vmatmul.mubr.f32.gmra.mrb[0].mxu0 %v586
      %v931 = vpop.f32.mrb[0].mxu0
      %v932 = vadd.f32 %v450, %v931
      %v933 = vpop.f32.mrb[0].mxu0
      %934 = vmatprep.mubr.f32.mxu0 0.0
      %935 = vmatmul.mubr.f32.gmra.mrb[0].mxu0 %v589
      %v936 = vpop.f32.mrb[0].mxu0
      %v937 = vadd.f32 %v450, %v936
      %v938 = vpop.f32.mrb[0].mxu0
      %939 = vmatprep.mubr.f32.mxu0 0.0
      %940 = vmatmul.mubr.f32.gmra.mrb[0].mxu0 %v592
      %v941 = vpop.f32.mrb[0].mxu0
      %v942 = vadd.f32 %v450, %v941
      %v943 = vpop.f32.mrb[0].mxu0
      %944 = vmatprep.mubr.f32.mxu0 0.0
      %945 = vmatmul.mubr.f32.gmra.mrb[0].mxu0 %v595
      %v946 = vpop.f32.mrb[0].mxu0
      %v947 = vadd.f32 %v450, %v946
      %v948 = vpop.f32.mrb[0].mxu0
      %949 = vmatprep.mubr.f32.mxu0 0.0
      %950 = vmatmul.mubr.f32.gmra.mrb[0].mxu0 %v598
      %v951 = vpop.f32.mrb[0].mxu0
      %v952 = vadd.f32 %v450, %v951
      %v953 = vpop.f32.mrb[0].mxu0
      %954 = vmatprep.mubr.f32.mxu0 0.0
      %955 = vmatmul.mubr.f32.gmra.mrb[0].mxu0 %v601
      %v956 = vpop.f32.mrb[0].mxu0
      %v957 = vadd.f32 %v450, %v956
      %v958 = vpop.f32.mrb[0].mxu0
      %959 = vmatprep.mubr.f32.mxu0 0.0
      %960 = vmatmul.mubr.f32.gmra.mrb[0].mxu0 %v604
      %v961 = vpop.f32.mrb[0].mxu0
      %v962 = vadd.f32 %v450, %v961
      %v963 = vpop.f32.mrb[0].mxu0
      %964 = vmatprep.mubr.f32.mxu0 0.0
      %965 = vmatmul.mubr.f32.gmra.mrb[0].mxu0 %v607
      %v966 = vpop.f32.mrb[0].mxu0
      %v967 = vadd.f32 %v450, %v966
      %v968 = vpop.f32.mrb[0].mxu0
      %969 = vmatprep.mubr.f32.mxu0 0.0
      %970 = vmatmul.mubr.f32.gmra.mrb[0].mxu0 %v610
      %v971 = vpop.f32.mrb[0].mxu0
      %v972 = vadd.f32 %v450, %v971
      %v973 = vpop.f32.mrb[0].mxu0
      %974 = vmatprep.mubr.f32.mxu0 0.0
      %975 = vmatmul.mubr.f32.gmra.mrb[0].mxu0 %v613
      %v976 = vpop.f32.mrb[0].mxu0
      %v977 = vadd.f32 %v450, %v976
      %v978 = vpop.f32.mrb[0].mxu0
      %979 = vmatprep.mubr.f32.mxu0 0.0
      %980 = vmatmul.mubr.f32.gmra.mrb[0].mxu0 %v616
      %v981 = vpop.f32.mrb[0].mxu0
      %v982 = vadd.f32 %v450, %v981
      %v983 = vpop.f32.mrb[0].mxu0
      %984 = vmatprep.mubr.f32.mxu0 0.0
      %985 = vmatmul.mubr.f32.gmra.mrb[0].mxu0 %v619
      %v986 = vpop.f32.mrb[0].mxu0
      %v987 = vadd.f32 %v450, %v986
      %v988 = vpop.f32.mrb[0].mxu0
      %989 = vmatprep.mubr.f32.mxu0 0.0
      %990 = vmatmul.mubr.f32.gmra.mrb[0].mxu0 %v622
      %v991 = vpop.f32.mrb[0].mxu0
      %v992 = vadd.f32 %v450, %v991
      %v993 = vpop.f32.mrb[0].mxu0
      %994 = vmatprep.mubr.f32.mxu0 0.0
      %995 = vmatmul.mubr.f32.gmra.mrb[0].mxu0 %v625
      %v996 = vpop.f32.mrb[0].mxu0
      %v997 = vadd.f32 %v450, %v996
      %v998 = vpop.f32.mrb[0].mxu0
      %999 = vmatprep.mubr.f32.mxu0 0.0
      %1000 = vmatmul.mubr.f32.gmra.mrb[0].mxu0 %v628
      %v1001 = vpop.f32.mrb[0].mxu0
      %v1002 = vadd.f32 %v450, %v1001
      %v1003 = vpop.f32.mrb[0].mxu0
      %1004 = vmatprep.mubr.f32.mxu0 0.0
      %1005 = vmatmul.mubr.f32.gmra.mrb[0].mxu0 %v631
      %v1006 = vpop.f32.mrb[0].mxu0
      %v1007 = vadd.f32 %v450, %v1006
      %v1008 = vpop.f32.mrb[0].mxu0
      %1009 = vmatprep.mubr.f32.mxu0 0.0
      %1010 = vmatmul.mubr.f32.gmra.mrb[0].mxu0 %v634
      %v1011 = vpop.f32.mrb[0].mxu0
      %v1012 = vadd.f32 %v450, %v1011
      %v1013 = vpop.f32.mrb[0].mxu0
      %1014 = vmatprep.mubr.f32.mxu0 0.0
      %1015 = vmatmul.mubr.f32.gmra.mrb[0].mxu0 %v637
      %v1016 = vpop.f32.mrb[0].mxu0
      %v1017 = vadd.f32 %v450, %v1016
      %v1018 = vpop.f32.mrb[0].mxu0
      %1019 = vmatprep.mubr.f32.mxu0 0.0
      %1020 = vmatmul.mubr.f32.gmra.mrb[0].mxu0 %v640
      %v1021 = vpop.f32.mrb[0].mxu0
      %v1022 = vadd.f32 %v450, %v1021
      %v1023 = vpop.f32.mrb[0].mxu0
      %1024 = vmatprep.mubr.f32.mxu0 0.0
      %1025 = vmatmul.mubr.f32.gmra.mrb[0].mxu0 %v643
      %v1026 = vpop.f32.mrb[0].mxu0
      %v1027 = vadd.f32 %v450, %v1026
      %v1028 = vpop.f32.mrb[0].mxu0
      %1029 = vdwg.mxu0
      %v1030 = vmax.f32 %v712, 0.0
      %v1031 = vmax.f32 %v717, 0.0
      %v1032 = vmax.f32 %v722, 0.0
      %v1033 = vmax.f32 %v727, 0.0
      %v1034 = vmax.f32 %v732, 0.0
      %v1035 = vmax.f32 %v737, 0.0
      %v1036 = vmax.f32 %v742, 0.0
      %v1037 = vmax.f32 %v747, 0.0
      %v1038 = vmax.f32 %v752, 0.0
      %v1039 = vmax.f32 %v757, 0.0
      %v1040 = vmax.f32 %v762, 0.0
      %v1041 = vmax.f32 %v767, 0.0
      %v1042 = vmax.f32 %v772, 0.0
      %v1043 = vmax.f32 %v777, 0.0
      %v1044 = vmax.f32 %v782, 0.0
      %v1045 = vmax.f32 %v787, 0.0
      %v1046 = vmax.f32 %v792, 0.0
      %v1047 = vmax.f32 %v797, 0.0
      %v1048 = vmax.f32 %v802, 0.0
      %v1049 = vmax.f32 %v807, 0.0
      %v1050 = vmax.f32 %v812, 0.0
      %v1051 = vmax.f32 %v817, 0.0
      %v1052 = vmax.f32 %v822, 0.0
      %v1053 = vmax.f32 %v827, 0.0
      %v1054 = vmax.f32 %v832, 0.0
      %v1055 = vmax.f32 %v837, 0.0
      %v1056 = vmax.f32 %v842, 0.0
      %v1057 = vmax.f32 %v847, 0.0
      %v1058 = vmax.f32 %v852, 0.0
      %v1059 = vmax.f32 %v857, 0.0
      %v1060 = vmax.f32 %v862, 0.0
      %v1061 = vmax.f32 %v867, 0.0
      %v1062 = vmax.f32 %v872, 0.0
      %v1063 = vmax.f32 %v877, 0.0
      %v1064 = vmax.f32 %v882, 0.0
      %v1065 = vmax.f32 %v887, 0.0
      %v1066 = vmax.f32 %v892, 0.0
      %v1067 = vmax.f32 %v897, 0.0
      %v1068 = vmax.f32 %v902, 0.0
      %v1069 = vmax.f32 %v907, 0.0
      %v1070 = vmax.f32 %v912, 0.0
      %v1071 = vmax.f32 %v917, 0.0
      %v1072 = vmax.f32 %v922, 0.0
      %v1073 = vmax.f32 %v927, 0.0
      %v1074 = vmax.f32 %v932, 0.0
      %v1075 = vmax.f32 %v937, 0.0
      %v1076 = vmax.f32 %v942, 0.0
      %v1077 = vmax.f32 %v947, 0.0
      %v1078 = vmax.f32 %v952, 0.0
      %v1079 = vmax.f32 %v957, 0.0
      %v1080 = vmax.f32 %v962, 0.0
      %v1081 = vmax.f32 %v967, 0.0
      %v1082 = vmax.f32 %v972, 0.0
      %v1083 = vmax.f32 %v977, 0.0
      %v1084 = vmax.f32 %v982, 0.0
      %v1085 = vmax.f32 %v987, 0.0
      %v1086 = vmax.f32 %v992, 0.0
      %v1087 = vmax.f32 %v997, 0.0
      %v1088 = vmax.f32 %v1002, 0.0
      %v1089 = vmax.f32 %v1007, 0.0
      %v1090 = vmax.f32 %v1012, 0.0
      %v1091 = vmax.f32 %v1017, 0.0
      %v1092 = vmax.f32 %v1022, 0.0
      %v1093 = vmax.f32 %v1027, 0.0
      %v1094 = vld [vmem:[%s3] sm:$0xff]
      %v1095 = vld [vmem:[%s3 + $0x8] sm:$0xff]
      %v1096 = vld [vmem:[%s3 + $0x10] sm:$0xff]
      %v1097 = vld [vmem:[%s3 + $0x18] sm:$0xff]
      %v1098 = vld [vmem:[%s3 + $0x20] sm:$0xff]
      %v1099 = vld [vmem:[%s3 + $0x28] sm:$0xff]
      %v1100 = vld [vmem:[%s3 + $0x30] sm:$0xff]
      %v1101 = vld [vmem:[%s3 + $0x38] sm:$0xff]
      %v1102 = vld [vmem:[%s3 + $0x40] sm:$0xff]
      %v1103 = vld [vmem:[%s3 + $0x48] sm:$0xff]
      %v1104 = vld [vmem:[%s3 + $0x50] sm:$0xff]
      %v1105 = vld [vmem:[%s3 + $0x58] sm:$0xff]
      %v1106 = vld [vmem:[%s3 + $0x60] sm:$0xff]
      %v1107 = vld [vmem:[%s3 + $0x68] sm:$0xff]
      %v1108 = vld [vmem:[%s3 + $0x70] sm:$0xff]
      %v1109 = vld [vmem:[%s3 + $0x78] sm:$0xff]
      %v1110 = vld [vmem:[%s4] sm:$0x1]
      %v1112 = vlaneseq
      %v1113 = vshrl.u32 %v1112, 7
      %v1114 = vsub.s32 0, %v1113
      %v1115 = vrot.slane %v1110, %v1114
      %1117 = vmatprep.subr.mxu0 0.0
      %1118 = vmatpush1.msra.mxu0 %v1094
      %1119 = vmatprep.subr.mxu0 0.0
      %1120 = vmatpush1.msra.mxu0 %v1095
      %1121 = vmatprep.subr.mxu0 0.0
      %1122 = vmatpush1.msra.mxu0 %v1096
      %1123 = vmatprep.subr.mxu0 0.0
      %1124 = vmatpush1.msra.mxu0 %v1097
      %1125 = vmatprep.subr.mxu0 0.0
      %1126 = vmatpush1.msra.mxu0 %v1098
      %1127 = vmatprep.subr.mxu0 0.0
      %1128 = vmatpush1.msra.mxu0 %v1099
      %1129 = vmatprep.subr.mxu0 0.0
      %1130 = vmatpush1.msra.mxu0 %v1100
      %1131 = vmatprep.subr.mxu0 0.0
      %1132 = vmatpush1.msra.mxu0 %v1101
      %1133 = vmatprep.subr.mxu0 0.0
      %1134 = vmatpush1.msra.mxu0 %v1102
      %1135 = vmatprep.subr.mxu0 0.0
      %1136 = vmatpush1.msra.mxu0 %v1103
      %1137 = vmatprep.subr.mxu0 0.0
      %1138 = vmatpush1.msra.mxu0 %v1104
      %1139 = vmatprep.subr.mxu0 0.0
      %1140 = vmatpush1.msra.mxu0 %v1105
      %1141 = vmatprep.subr.mxu0 0.0
      %1142 = vmatpush1.msra.mxu0 %v1106
      %1143 = vmatprep.subr.mxu0 0.0
      %1144 = vmatpush1.msra.mxu0 %v1107
      %1145 = vmatprep.subr.mxu0 0.0
      %1146 = vmatpush1.msra.mxu0 %v1108
      %1147 = vmatprep.subr.mxu0 0.0
      %1148 = vmatpush1.msra.mxu0 %v1109
      %1149 = vmatprep.subr.mxu0 0.0
      %1150 = vmatpush1.msra.mxu0 0.0
      %1151 = vmatprep.subr.mxu0 0.0
      %1152 = vmatpush1.msra.mxu0 0.0
      %1153 = vmatprep.subr.mxu0 0.0
      %1154 = vmatpush1.msra.mxu0 0.0
      %1155 = vmatprep.subr.mxu0 0.0
      %1156 = vmatpush1.msra.mxu0 0.0
      %1157 = vmatprep.subr.mxu0 0.0
      %1158 = vmatpush1.msra.mxu0 0.0
      %1159 = vmatprep.subr.mxu0 0.0
      %1160 = vmatpush1.msra.mxu0 0.0
      %1161 = vmatprep.subr.mxu0 0.0
      %1162 = vmatpush1.msra.mxu0 0.0
      %1163 = vmatprep.subr.mxu0 0.0
      %1164 = vmatpush1.msra.mxu0 0.0
      %1165 = vmatprep.subr.mxu0 0.0
      %1166 = vmatpush1.msra.mxu0 0.0
      %1167 = vmatprep.subr.mxu0 0.0
      %1168 = vmatpush1.msra.mxu0 0.0
      %1169 = vmatprep.subr.mxu0 0.0
      %1170 = vmatpush1.msra.mxu0 0.0
      %1171 = vmatprep.subr.mxu0 0.0
      %1172 = vmatpush1.msra.mxu0 0.0
      %1173 = vmatprep.subr.mxu0 0.0
      %1174 = vmatpush1.msra.mxu0 0.0
      %1175 = vmatprep.subr.mxu0 0.0
      %1176 = vmatpush1.msra.mxu0 0.0
      %1177 = vmatprep.subr.mxu0 0.0
      %1178 = vmatpush1.msra.mxu0 0.0
      %1179 = vmatprep.subr.mxu0 0.0
      %1180 = vmatpush1.msra.mxu0 0.0
      %1181 = vmatprep.mubr.f32.mxu0 0.0
      %1182 = vmatmul.mubr.f32.gmra.mrb[0].mxu0 %v1030
      %v1183 = vpop.f32.mrb[0].mxu0
      %v1184 = vadd.f32 %v1115, %v1183
      %v1185 = vpop.f32.mrb[0].mxu0
      %1186 = vmatprep.mubr.f32.mxu0 0.0
      %1187 = vmatmul.mubr.f32.gmra.mrb[0].mxu0 %v1031
      %v1188 = vpop.f32.mrb[0].mxu0
      %v1189 = vadd.f32 %v1115, %v1188
      %v1190 = vpop.f32.mrb[0].mxu0
      %1191 = vmatprep.mubr.f32.mxu0 0.0
      %1192 = vmatmul.mubr.f32.gmra.mrb[0].mxu0 %v1032
      %v1193 = vpop.f32.mrb[0].mxu0
      %v1194 = vadd.f32 %v1115, %v1193
      %v1195 = vpop.f32.mrb[0].mxu0
      %1196 = vmatprep.mubr.f32.mxu0 0.0
      %1197 = vmatmul.mubr.f32.gmra.mrb[0].mxu0 %v1033
      %v1198 = vpop.f32.mrb[0].mxu0
      %v1199 = vadd.f32 %v1115, %v1198
      %v1200 = vpop.f32.mrb[0].mxu0
      %1201 = vmatprep.mubr.f32.mxu0 0.0
      %1202 = vmatmul.mubr.f32.gmra.mrb[0].mxu0 %v1034
      %v1203 = vpop.f32.mrb[0].mxu0
      %v1204 = vadd.f32 %v1115, %v1203
      %v1205 = vpop.f32.mrb[0].mxu0
      %1206 = vmatprep.mubr.f32.mxu0 0.0
      %1207 = vmatmul.mubr.f32.gmra.mrb[0].mxu0 %v1035
      %v1208 = vpop.f32.mrb[0].mxu0
      %v1209 = vadd.f32 %v1115, %v1208
      %v1210 = vpop.f32.mrb[0].mxu0
      %1211 = vmatprep.mubr.f32.mxu0 0.0
      %1212 = vmatmul.mubr.f32.gmra.mrb[0].mxu0 %v1036
      %v1213 = vpop.f32.mrb[0].mxu0
      %v1214 = vadd.f32 %v1115, %v1213
      %v1215 = vpop.f32.mrb[0].mxu0
      %1216 = vmatprep.mubr.f32.mxu0 0.0
      %1217 = vmatmul.mubr.f32.gmra.mrb[0].mxu0 %v1037
      %v1218 = vpop.f32.mrb[0].mxu0
      %v1219 = vadd.f32 %v1115, %v1218
      %v1220 = vpop.f32.mrb[0].mxu0
      %1221 = vmatprep.mubr.f32.mxu0 0.0
      %1222 = vmatmul.mubr.f32.gmra.mrb[0].mxu0 %v1038
      %v1223 = vpop.f32.mrb[0].mxu0
      %v1224 = vadd.f32 %v1115, %v1223
      %v1225 = vpop.f32.mrb[0].mxu0
      %1226 = vmatprep.mubr.f32.mxu0 0.0
      %1227 = vmatmul.mubr.f32.gmra.mrb[0].mxu0 %v1039
      %v1228 = vpop.f32.mrb[0].mxu0
      %v1229 = vadd.f32 %v1115, %v1228
      %v1230 = vpop.f32.mrb[0].mxu0
      %1231 = vmatprep.mubr.f32.mxu0 0.0
      %1232 = vmatmul.mubr.f32.gmra.mrb[0].mxu0 %v1040
      %v1233 = vpop.f32.mrb[0].mxu0
      %v1234 = vadd.f32 %v1115, %v1233
      %v1235 = vpop.f32.mrb[0].mxu0
      %1236 = vmatprep.mubr.f32.mxu0 0.0
      %1237 = vmatmul.mubr.f32.gmra.mrb[0].mxu0 %v1041
      %v1238 = vpop.f32.mrb[0].mxu0
      %v1239 = vadd.f32 %v1115, %v1238
      %v1240 = vpop.f32.mrb[0].mxu0
      %1241 = vmatprep.mubr.f32.mxu0 0.0
      %1242 = vmatmul.mubr.f32.gmra.mrb[0].mxu0 %v1042
      %v1243 = vpop.f32.mrb[0].mxu0
      %v1244 = vadd.f32 %v1115, %v1243
      %v1245 = vpop.f32.mrb[0].mxu0
      %1246 = vmatprep.mubr.f32.mxu0 0.0
      %1247 = vmatmul.mubr.f32.gmra.mrb[0].mxu0 %v1043
      %v1248 = vpop.f32.mrb[0].mxu0
      %v1249 = vadd.f32 %v1115, %v1248
      %v1250 = vpop.f32.mrb[0].mxu0
      %1251 = vmatprep.mubr.f32.mxu0 0.0
      %1252 = vmatmul.mubr.f32.gmra.mrb[0].mxu0 %v1044
      %v1253 = vpop.f32.mrb[0].mxu0
      %v1254 = vadd.f32 %v1115, %v1253
      %v1255 = vpop.f32.mrb[0].mxu0
      %1256 = vmatprep.mubr.f32.mxu0 0.0
      %1257 = vmatmul.mubr.f32.gmra.mrb[0].mxu0 %v1045
      %v1258 = vpop.f32.mrb[0].mxu0
      %v1259 = vadd.f32 %v1115, %v1258
      %v1260 = vpop.f32.mrb[0].mxu0
      %1261 = vmatprep.mubr.f32.mxu0 0.0
      %1262 = vmatmul.mubr.f32.gmra.mrb[0].mxu0 %v1046
      %v1263 = vpop.f32.mrb[0].mxu0
      %v1264 = vadd.f32 %v1115, %v1263
      %v1265 = vpop.f32.mrb[0].mxu0
      %1266 = vmatprep.mubr.f32.mxu0 0.0
      %1267 = vmatmul.mubr.f32.gmra.mrb[0].mxu0 %v1047
      %v1268 = vpop.f32.mrb[0].mxu0
      %v1269 = vadd.f32 %v1115, %v1268
      %v1270 = vpop.f32.mrb[0].mxu0
      %1271 = vmatprep.mubr.f32.mxu0 0.0
      %1272 = vmatmul.mubr.f32.gmra.mrb[0].mxu0 %v1048
      %v1273 = vpop.f32.mrb[0].mxu0
      %v1274 = vadd.f32 %v1115, %v1273
      %v1275 = vpop.f32.mrb[0].mxu0
      %1276 = vmatprep.mubr.f32.mxu0 0.0
      %1277 = vmatmul.mubr.f32.gmra.mrb[0].mxu0 %v1049
      %v1278 = vpop.f32.mrb[0].mxu0
      %v1279 = vadd.f32 %v1115, %v1278
      %v1280 = vpop.f32.mrb[0].mxu0
      %1281 = vmatprep.mubr.f32.mxu0 0.0
      %1282 = vmatmul.mubr.f32.gmra.mrb[0].mxu0 %v1050
      %v1283 = vpop.f32.mrb[0].mxu0
      %v1284 = vadd.f32 %v1115, %v1283
      %v1285 = vpop.f32.mrb[0].mxu0
      %1286 = vmatprep.mubr.f32.mxu0 0.0
      %1287 = vmatmul.mubr.f32.gmra.mrb[0].mxu0 %v1051
      %v1288 = vpop.f32.mrb[0].mxu0
      %v1289 = vadd.f32 %v1115, %v1288
      %v1290 = vpop.f32.mrb[0].mxu0
      %1291 = vmatprep.mubr.f32.mxu0 0.0
      %1292 = vmatmul.mubr.f32.gmra.mrb[0].mxu0 %v1052
      %v1293 = vpop.f32.mrb[0].mxu0
      %v1294 = vadd.f32 %v1115, %v1293
      %v1295 = vpop.f32.mrb[0].mxu0
      %1296 = vmatprep.mubr.f32.mxu0 0.0
      %1297 = vmatmul.mubr.f32.gmra.mrb[0].mxu0 %v1053
      %v1298 = vpop.f32.mrb[0].mxu0
      %v1299 = vadd.f32 %v1115, %v1298
      %v1300 = vpop.f32.mrb[0].mxu0
      %1301 = vmatprep.mubr.f32.mxu0 0.0
      %1302 = vmatmul.mubr.f32.gmra.mrb[0].mxu0 %v1054
      %v1303 = vpop.f32.mrb[0].mxu0
      %v1304 = vadd.f32 %v1115, %v1303
      %v1305 = vpop.f32.mrb[0].mxu0
      %1306 = vmatprep.mubr.f32.mxu0 0.0
      %1307 = vmatmul.mubr.f32.gmra.mrb[0].mxu0 %v1055
      %v1308 = vpop.f32.mrb[0].mxu0
      %v1309 = vadd.f32 %v1115, %v1308
      %v1310 = vpop.f32.mrb[0].mxu0
      %1311 = vmatprep.mubr.f32.mxu0 0.0
      %1312 = vmatmul.mubr.f32.gmra.mrb[0].mxu0 %v1056
      %v1313 = vpop.f32.mrb[0].mxu0
      %v1314 = vadd.f32 %v1115, %v1313
      %v1315 = vpop.f32.mrb[0].mxu0
      %1316 = vmatprep.mubr.f32.mxu0 0.0
      %1317 = vmatmul.mubr.f32.gmra.mrb[0].mxu0 %v1057
      %v1318 = vpop.f32.mrb[0].mxu0
      %v1319 = vadd.f32 %v1115, %v1318
      %v1320 = vpop.f32.mrb[0].mxu0
      %1321 = vmatprep.mubr.f32.mxu0 0.0
      %1322 = vmatmul.mubr.f32.gmra.mrb[0].mxu0 %v1058
      %v1323 = vpop.f32.mrb[0].mxu0
      %v1324 = vadd.f32 %v1115, %v1323
      %v1325 = vpop.f32.mrb[0].mxu0
      %1326 = vmatprep.mubr.f32.mxu0 0.0
      %1327 = vmatmul.mubr.f32.gmra.mrb[0].mxu0 %v1059
      %v1328 = vpop.f32.mrb[0].mxu0
      %v1329 = vadd.f32 %v1115, %v1328
      %v1330 = vpop.f32.mrb[0].mxu0
      %1331 = vmatprep.mubr.f32.mxu0 0.0
      %1332 = vmatmul.mubr.f32.gmra.mrb[0].mxu0 %v1060
      %v1333 = vpop.f32.mrb[0].mxu0
      %v1334 = vadd.f32 %v1115, %v1333
      %v1335 = vpop.f32.mrb[0].mxu0
      %1336 = vmatprep.mubr.f32.mxu0 0.0
      %1337 = vmatmul.mubr.f32.gmra.mrb[0].mxu0 %v1061
      %v1338 = vpop.f32.mrb[0].mxu0
      %v1339 = vadd.f32 %v1115, %v1338
      %v1340 = vpop.f32.mrb[0].mxu0
      %1341 = vmatprep.mubr.f32.mxu0 0.0
      %1342 = vmatmul.mubr.f32.gmra.mrb[0].mxu0 %v1062
      %v1343 = vpop.f32.mrb[0].mxu0
      %v1344 = vadd.f32 %v1115, %v1343
      %v1345 = vpop.f32.mrb[0].mxu0
      %1346 = vmatprep.mubr.f32.mxu0 0.0
      %1347 = vmatmul.mubr.f32.gmra.mrb[0].mxu0 %v1063
      %v1348 = vpop.f32.mrb[0].mxu0
      %v1349 = vadd.f32 %v1115, %v1348
      %v1350 = vpop.f32.mrb[0].mxu0
      %1351 = vmatprep.mubr.f32.mxu0 0.0
      %1352 = vmatmul.mubr.f32.gmra.mrb[0].mxu0 %v1064
      %v1353 = vpop.f32.mrb[0].mxu0
      %v1354 = vadd.f32 %v1115, %v1353
      %v1355 = vpop.f32.mrb[0].mxu0
      %1356 = vmatprep.mubr.f32.mxu0 0.0
      %1357 = vmatmul.mubr.f32.gmra.mrb[0].mxu0 %v1065
      %v1358 = vpop.f32.mrb[0].mxu0
      %v1359 = vadd.f32 %v1115, %v1358
      %v1360 = vpop.f32.mrb[0].mxu0
      %1361 = vmatprep.mubr.f32.mxu0 0.0
      %1362 = vmatmul.mubr.f32.gmra.mrb[0].mxu0 %v1066
      %v1363 = vpop.f32.mrb[0].mxu0
      %v1364 = vadd.f32 %v1115, %v1363
      %v1365 = vpop.f32.mrb[0].mxu0
      %1366 = vmatprep.mubr.f32.mxu0 0.0
      %1367 = vmatmul.mubr.f32.gmra.mrb[0].mxu0 %v1067
      %v1368 = vpop.f32.mrb[0].mxu0
      %v1369 = vadd.f32 %v1115, %v1368
      %v1370 = vpop.f32.mrb[0].mxu0
      %1371 = vmatprep.mubr.f32.mxu0 0.0
      %1372 = vmatmul.mubr.f32.gmra.mrb[0].mxu0 %v1068
      %v1373 = vpop.f32.mrb[0].mxu0
      %v1374 = vadd.f32 %v1115, %v1373
      %v1375 = vpop.f32.mrb[0].mxu0
      %1376 = vmatprep.mubr.f32.mxu0 0.0
      %1377 = vmatmul.mubr.f32.gmra.mrb[0].mxu0 %v1069
      %v1378 = vpop.f32.mrb[0].mxu0
      %v1379 = vadd.f32 %v1115, %v1378
      %v1380 = vpop.f32.mrb[0].mxu0
      %1381 = vmatprep.mubr.f32.mxu0 0.0
      %1382 = vmatmul.mubr.f32.gmra.mrb[0].mxu0 %v1070
      %v1383 = vpop.f32.mrb[0].mxu0
      %v1384 = vadd.f32 %v1115, %v1383
      %v1385 = vpop.f32.mrb[0].mxu0
      %1386 = vmatprep.mubr.f32.mxu0 0.0
      %1387 = vmatmul.mubr.f32.gmra.mrb[0].mxu0 %v1071
      %v1388 = vpop.f32.mrb[0].mxu0
      %v1389 = vadd.f32 %v1115, %v1388
      %v1390 = vpop.f32.mrb[0].mxu0
      %1391 = vmatprep.mubr.f32.mxu0 0.0
      %1392 = vmatmul.mubr.f32.gmra.mrb[0].mxu0 %v1072
      %v1393 = vpop.f32.mrb[0].mxu0
      %v1394 = vadd.f32 %v1115, %v1393
      %v1395 = vpop.f32.mrb[0].mxu0
      %1396 = vmatprep.mubr.f32.mxu0 0.0
      %1397 = vmatmul.mubr.f32.gmra.mrb[0].mxu0 %v1073
      %v1398 = vpop.f32.mrb[0].mxu0
      %v1399 = vadd.f32 %v1115, %v1398
      %v1400 = vpop.f32.mrb[0].mxu0
      %1401 = vmatprep.mubr.f32.mxu0 0.0
      %1402 = vmatmul.mubr.f32.gmra.mrb[0].mxu0 %v1074
      %v1403 = vpop.f32.mrb[0].mxu0
      %v1404 = vadd.f32 %v1115, %v1403
      %v1405 = vpop.f32.mrb[0].mxu0
      %1406 = vmatprep.mubr.f32.mxu0 0.0
      %1407 = vmatmul.mubr.f32.gmra.mrb[0].mxu0 %v1075
      %v1408 = vpop.f32.mrb[0].mxu0
      %v1409 = vadd.f32 %v1115, %v1408
      %v1410 = vpop.f32.mrb[0].mxu0
      %1411 = vmatprep.mubr.f32.mxu0 0.0
      %1412 = vmatmul.mubr.f32.gmra.mrb[0].mxu0 %v1076
      %v1413 = vpop.f32.mrb[0].mxu0
      %v1414 = vadd.f32 %v1115, %v1413
      %v1415 = vpop.f32.mrb[0].mxu0
      %1416 = vmatprep.mubr.f32.mxu0 0.0
      %1417 = vmatmul.mubr.f32.gmra.mrb[0].mxu0 %v1077
      %v1418 = vpop.f32.mrb[0].mxu0
      %v1419 = vadd.f32 %v1115, %v1418
      %v1420 = vpop.f32.mrb[0].mxu0
      %1421 = vmatprep.mubr.f32.mxu0 0.0
      %1422 = vmatmul.mubr.f32.gmra.mrb[0].mxu0 %v1078
      %v1423 = vpop.f32.mrb[0].mxu0
      %v1424 = vadd.f32 %v1115, %v1423
      %v1425 = vpop.f32.mrb[0].mxu0
      %1426 = vmatprep.mubr.f32.mxu0 0.0
      %1427 = vmatmul.mubr.f32.gmra.mrb[0].mxu0 %v1079
      %v1428 = vpop.f32.mrb[0].mxu0
      %v1429 = vadd.f32 %v1115, %v1428
      %v1430 = vpop.f32.mrb[0].mxu0
      %1431 = vmatprep.mubr.f32.mxu0 0.0
      %1432 = vmatmul.mubr.f32.gmra.mrb[0].mxu0 %v1080
      %v1433 = vpop.f32.mrb[0].mxu0
      %v1434 = vadd.f32 %v1115, %v1433
      %v1435 = vpop.f32.mrb[0].mxu0
      %1436 = vmatprep.mubr.f32.mxu0 0.0
      %1437 = vmatmul.mubr.f32.gmra.mrb[0].mxu0 %v1081
      %v1438 = vpop.f32.mrb[0].mxu0
      %v1439 = vadd.f32 %v1115, %v1438
      %v1440 = vpop.f32.mrb[0].mxu0
      %1441 = vmatprep.mubr.f32.mxu0 0.0
      %1442 = vmatmul.mubr.f32.gmra.mrb[0].mxu0 %v1082
      %v1443 = vpop.f32.mrb[0].mxu0
      %v1444 = vadd.f32 %v1115, %v1443
      %v1445 = vpop.f32.mrb[0].mxu0
      %1446 = vmatprep.mubr.f32.mxu0 0.0
      %1447 = vmatmul.mubr.f32.gmra.mrb[0].mxu0 %v1083
      %v1448 = vpop.f32.mrb[0].mxu0
      %v1449 = vadd.f32 %v1115, %v1448
      %v1450 = vpop.f32.mrb[0].mxu0
      %1451 = vmatprep.mubr.f32.mxu0 0.0
      %1452 = vmatmul.mubr.f32.gmra.mrb[0].mxu0 %v1084
      %v1453 = vpop.f32.mrb[0].mxu0
      %v1454 = vadd.f32 %v1115, %v1453
      %v1455 = vpop.f32.mrb[0].mxu0
      %1456 = vmatprep.mubr.f32.mxu0 0.0
      %1457 = vmatmul.mubr.f32.gmra.mrb[0].mxu0 %v1085
      %v1458 = vpop.f32.mrb[0].mxu0
      %v1459 = vadd.f32 %v1115, %v1458
      %v1460 = vpop.f32.mrb[0].mxu0
      %1461 = vmatprep.mubr.f32.mxu0 0.0
      %1462 = vmatmul.mubr.f32.gmra.mrb[0].mxu0 %v1086
      %v1463 = vpop.f32.mrb[0].mxu0
      %v1464 = vadd.f32 %v1115, %v1463
      %v1465 = vpop.f32.mrb[0].mxu0
      %1466 = vmatprep.mubr.f32.mxu0 0.0
      %1467 = vmatmul.mubr.f32.gmra.mrb[0].mxu0 %v1087
      %v1468 = vpop.f32.mrb[0].mxu0
      %v1469 = vadd.f32 %v1115, %v1468
      %v1470 = vpop.f32.mrb[0].mxu0
      %1471 = vmatprep.mubr.f32.mxu0 0.0
      %1472 = vmatmul.mubr.f32.gmra.mrb[0].mxu0 %v1088
      %v1473 = vpop.f32.mrb[0].mxu0
      %v1474 = vadd.f32 %v1115, %v1473
      %v1475 = vpop.f32.mrb[0].mxu0
      %1476 = vmatprep.mubr.f32.mxu0 0.0
      %1477 = vmatmul.mubr.f32.gmra.mrb[0].mxu0 %v1089
      %v1478 = vpop.f32.mrb[0].mxu0
      %v1479 = vadd.f32 %v1115, %v1478
      %v1480 = vpop.f32.mrb[0].mxu0
      %1481 = vmatprep.mubr.f32.mxu0 0.0
      %1482 = vmatmul.mubr.f32.gmra.mrb[0].mxu0 %v1090
      %v1483 = vpop.f32.mrb[0].mxu0
      %v1484 = vadd.f32 %v1115, %v1483
      %v1485 = vpop.f32.mrb[0].mxu0
      %1486 = vmatprep.mubr.f32.mxu0 0.0
      %1487 = vmatmul.mubr.f32.gmra.mrb[0].mxu0 %v1091
      %v1488 = vpop.f32.mrb[0].mxu0
      %v1489 = vadd.f32 %v1115, %v1488
      %v1490 = vpop.f32.mrb[0].mxu0
      %1491 = vmatprep.mubr.f32.mxu0 0.0
      %1492 = vmatmul.mubr.f32.gmra.mrb[0].mxu0 %v1092
      %v1493 = vpop.f32.mrb[0].mxu0
      %v1494 = vadd.f32 %v1115, %v1493
      %v1495 = vpop.f32.mrb[0].mxu0
      %1496 = vmatprep.mubr.f32.mxu0 0.0
      %1497 = vmatmul.mubr.f32.gmra.mrb[0].mxu0 %v1093
      %v1498 = vpop.f32.mrb[0].mxu0
      %v1499 = vadd.f32 %v1115, %v1498
      %v1500 = vpop.f32.mrb[0].mxu0
      %1501 = vdwg.mxu0
      %v1502 = vmax.f32 %v1184, 0.0
      %v1503 = vmax.f32 %v1189, 0.0
      %v1504 = vmax.f32 %v1194, 0.0
      %v1505 = vmax.f32 %v1199, 0.0
      %v1506 = vmax.f32 %v1204, 0.0
      %v1507 = vmax.f32 %v1209, 0.0
      %v1508 = vmax.f32 %v1214, 0.0
      %v1509 = vmax.f32 %v1219, 0.0
      %v1510 = vmax.f32 %v1224, 0.0
      %v1511 = vmax.f32 %v1229, 0.0
      %v1512 = vmax.f32 %v1234, 0.0
      %v1513 = vmax.f32 %v1239, 0.0
      %v1514 = vmax.f32 %v1244, 0.0
      %v1515 = vmax.f32 %v1249, 0.0
      %v1516 = vmax.f32 %v1254, 0.0
      %v1517 = vmax.f32 %v1259, 0.0
      %v1518 = vmax.f32 %v1264, 0.0
      %v1519 = vmax.f32 %v1269, 0.0
      %v1520 = vmax.f32 %v1274, 0.0
      %v1521 = vmax.f32 %v1279, 0.0
      %v1522 = vmax.f32 %v1284, 0.0
      %v1523 = vmax.f32 %v1289, 0.0
      %v1524 = vmax.f32 %v1294, 0.0
      %v1525 = vmax.f32 %v1299, 0.0
      %v1526 = vmax.f32 %v1304, 0.0
      %v1527 = vmax.f32 %v1309, 0.0
      %v1528 = vmax.f32 %v1314, 0.0
      %v1529 = vmax.f32 %v1319, 0.0
      %v1530 = vmax.f32 %v1324, 0.0
      %v1531 = vmax.f32 %v1329, 0.0
      %v1532 = vmax.f32 %v1334, 0.0
      %v1533 = vmax.f32 %v1339, 0.0
      %v1534 = vmax.f32 %v1344, 0.0
      %v1535 = vmax.f32 %v1349, 0.0
      %v1536 = vmax.f32 %v1354, 0.0
      %v1537 = vmax.f32 %v1359, 0.0
      %v1538 = vmax.f32 %v1364, 0.0
      %v1539 = vmax.f32 %v1369, 0.0
      %v1540 = vmax.f32 %v1374, 0.0
      %v1541 = vmax.f32 %v1379, 0.0
      %v1542 = vmax.f32 %v1384, 0.0
      %v1543 = vmax.f32 %v1389, 0.0
      %v1544 = vmax.f32 %v1394, 0.0
      %v1545 = vmax.f32 %v1399, 0.0
      %v1546 = vmax.f32 %v1404, 0.0
      %v1547 = vmax.f32 %v1409, 0.0
      %v1548 = vmax.f32 %v1414, 0.0
      %v1549 = vmax.f32 %v1419, 0.0
      %v1550 = vmax.f32 %v1424, 0.0
      %v1551 = vmax.f32 %v1429, 0.0
      %v1552 = vmax.f32 %v1434, 0.0
      %v1553 = vmax.f32 %v1439, 0.0
      %v1554 = vmax.f32 %v1444, 0.0
      %v1555 = vmax.f32 %v1449, 0.0
      %v1556 = vmax.f32 %v1454, 0.0
      %v1557 = vmax.f32 %v1459, 0.0
      %v1558 = vmax.f32 %v1464, 0.0
      %v1559 = vmax.f32 %v1469, 0.0
      %v1560 = vmax.f32 %v1474, 0.0
      %v1561 = vmax.f32 %v1479, 0.0
      %v1562 = vmax.f32 %v1484, 0.0
      %v1563 = vmax.f32 %v1489, 0.0
      %v1564 = vmax.f32 %v1494, 0.0
      %v1565 = vmax.f32 %v1499, 0.0
      %v1566 = vld [vmem:[%s5] sm:$0xff]
      %v1567 = vld [vmem:[%s5 + $0x8] sm:$0xff]
      %v1568 = vld [vmem:[%s5 + $0x10] sm:$0xff]
      %v1569 = vld [vmem:[%s5 + $0x18] sm:$0xff]
      %v1570 = vld [vmem:[%s5 + $0x20] sm:$0xff]
      %v1571 = vld [vmem:[%s5 + $0x28] sm:$0xff]
      %v1572 = vld [vmem:[%s5 + $0x30] sm:$0xff]
      %v1573 = vld [vmem:[%s5 + $0x38] sm:$0xff]
      %v1574 = vld [vmem:[%s6] sm:$0x1]
      %v1576 = vlaneseq
      %v1577 = vshrl.u32 %v1576, 7
      %v1578 = vsub.s32 0, %v1577
      %v1579 = vrot.slane %v1574, %v1578
      %vm1581 = vcmask 523264
      %v1583 = vsel %vm1581, %v1502, 0
      %v1586 = vsel %vm1581, %v1503, 0
      %v1589 = vsel %vm1581, %v1504, 0
      %v1592 = vsel %vm1581, %v1505, 0
      %v1595 = vsel %vm1581, %v1506, 0
      %v1598 = vsel %vm1581, %v1507, 0
      %v1601 = vsel %vm1581, %v1508, 0
      %v1604 = vsel %vm1581, %v1509, 0
      %v1607 = vsel %vm1581, %v1510, 0
      %v1610 = vsel %vm1581, %v1511, 0
      %v1613 = vsel %vm1581, %v1512, 0
      %v1616 = vsel %vm1581, %v1513, 0
      %v1619 = vsel %vm1581, %v1514, 0
      %v1622 = vsel %vm1581, %v1515, 0
      %v1625 = vsel %vm1581, %v1516, 0
      %v1628 = vsel %vm1581, %v1517, 0
      %v1631 = vsel %vm1581, %v1518, 0
      %v1634 = vsel %vm1581, %v1519, 0
      %v1637 = vsel %vm1581, %v1520, 0
      %v1640 = vsel %vm1581, %v1521, 0
      %v1643 = vsel %vm1581, %v1522, 0
      %v1646 = vsel %vm1581, %v1523, 0
      %v1649 = vsel %vm1581, %v1524, 0
      %v1652 = vsel %vm1581, %v1525, 0
      %v1655 = vsel %vm1581, %v1526, 0
      %v1658 = vsel %vm1581, %v1527, 0
      %v1661 = vsel %vm1581, %v1528, 0
      %v1664 = vsel %vm1581, %v1529, 0
      %v1667 = vsel %vm1581, %v1530, 0
      %v1670 = vsel %vm1581, %v1531, 0
      %v1673 = vsel %vm1581, %v1532, 0
      %v1676 = vsel %vm1581, %v1533, 0
      %v1679 = vsel %vm1581, %v1534, 0
      %v1682 = vsel %vm1581, %v1535, 0
      %v1685 = vsel %vm1581, %v1536, 0
      %v1688 = vsel %vm1581, %v1537, 0
      %v1691 = vsel %vm1581, %v1538, 0
      %v1694 = vsel %vm1581, %v1539, 0
      %v1697 = vsel %vm1581, %v1540, 0
      %v1700 = vsel %vm1581, %v1541, 0
      %v1703 = vsel %vm1581, %v1542, 0
      %v1706 = vsel %vm1581, %v1543, 0
      %v1709 = vsel %vm1581, %v1544, 0
      %v1712 = vsel %vm1581, %v1545, 0
      %v1715 = vsel %vm1581, %v1546, 0
      %v1718 = vsel %vm1581, %v1547, 0
      %v1721 = vsel %vm1581, %v1548, 0
      %v1724 = vsel %vm1581, %v1549, 0
      %v1727 = vsel %vm1581, %v1550, 0
      %v1730 = vsel %vm1581, %v1551, 0
      %v1733 = vsel %vm1581, %v1552, 0
      %v1736 = vsel %vm1581, %v1553, 0
      %v1739 = vsel %vm1581, %v1554, 0
      %v1742 = vsel %vm1581, %v1555, 0
      %v1745 = vsel %vm1581, %v1556, 0
      %v1748 = vsel %vm1581, %v1557, 0
      %v1751 = vsel %vm1581, %v1558, 0
      %v1754 = vsel %vm1581, %v1559, 0
      %v1757 = vsel %vm1581, %v1560, 0
      %v1760 = vsel %vm1581, %v1561, 0
      %v1763 = vsel %vm1581, %v1562, 0
      %v1766 = vsel %vm1581, %v1563, 0
      %v1769 = vsel %vm1581, %v1564, 0
      %v1772 = vsel %vm1581, %v1565, 0
      %1774 = vmatprep.subr.mxu0 0.0
      %1775 = vmatpush1.msra.mxu0 %v1566
      %1776 = vmatprep.subr.mxu0 0.0
      %1777 = vmatpush1.msra.mxu0 %v1567
      %1778 = vmatprep.subr.mxu0 0.0
      %1779 = vmatpush1.msra.mxu0 %v1568
      %1780 = vmatprep.subr.mxu0 0.0
      %1781 = vmatpush1.msra.mxu0 %v1569
      %1782 = vmatprep.subr.mxu0 0.0
      %1783 = vmatpush1.msra.mxu0 %v1570
      %1784 = vmatprep.subr.mxu0 0.0
      %1785 = vmatpush1.msra.mxu0 %v1571
      %1786 = vmatprep.subr.mxu0 0.0
      %1787 = vmatpush1.msra.mxu0 %v1572
      %1788 = vmatprep.subr.mxu0 0.0
      %1789 = vmatpush1.msra.mxu0 %v1573
      %1790 = vmatprep.subr.mxu0 0.0
      %1791 = vmatpush1.msra.mxu0 0.0
      %1792 = vmatprep.subr.mxu0 0.0
      %1793 = vmatpush1.msra.mxu0 0.0
      %1794 = vmatprep.subr.mxu0 0.0
      %1795 = vmatpush1.msra.mxu0 0.0
      %1796 = vmatprep.subr.mxu0 0.0
      %1797 = vmatpush1.msra.mxu0 0.0
      %1798 = vmatprep.subr.mxu0 0.0
      %1799 = vmatpush1.msra.mxu0 0.0
      %1800 = vmatprep.subr.mxu0 0.0
      %1801 = vmatpush1.msra.mxu0 0.0
      %1802 = vmatprep.subr.mxu0 0.0
      %1803 = vmatpush1.msra.mxu0 0.0
      %1804 = vmatprep.subr.mxu0 0.0
      %1805 = vmatpush1.msra.mxu0 0.0
      %1806 = vmatprep.subr.mxu0 0.0
      %1807 = vmatpush1.msra.mxu0 0.0
      %1808 = vmatprep.subr.mxu0 0.0
      %1809 = vmatpush1.msra.mxu0 0.0
      %1810 = vmatprep.subr.mxu0 0.0
      %1811 = vmatpush1.msra.mxu0 0.0
      %1812 = vmatprep.subr.mxu0 0.0
      %1813 = vmatpush1.msra.mxu0 0.0
      %1814 = vmatprep.subr.mxu0 0.0
      %1815 = vmatpush1.msra.mxu0 0.0
      %1816 = vmatprep.subr.mxu0 0.0
      %1817 = vmatpush1.msra.mxu0 0.0
      %1818 = vmatprep.subr.mxu0 0.0
      %1819 = vmatpush1.msra.mxu0 0.0
      %1820 = vmatprep.subr.mxu0 0.0
      %1821 = vmatpush1.msra.mxu0 0.0
      %1822 = vmatprep.subr.mxu0 0.0
      %1823 = vmatpush1.msra.mxu0 0.0
      %1824 = vmatprep.subr.mxu0 0.0
      %1825 = vmatpush1.msra.mxu0 0.0
      %1826 = vmatprep.subr.mxu0 0.0
      %1827 = vmatpush1.msra.mxu0 0.0
      %1828 = vmatprep.subr.mxu0 0.0
      %1829 = vmatpush1.msra.mxu0 0.0
      %1830 = vmatprep.subr.mxu0 0.0
      %1831 = vmatpush1.msra.mxu0 0.0
      %1832 = vmatprep.subr.mxu0 0.0
      %1833 = vmatpush1.msra.mxu0 0.0
      %1834 = vmatprep.subr.mxu0 0.0
      %1835 = vmatpush1.msra.mxu0 0.0
      %1836 = vmatprep.subr.mxu0 0.0
      %1837 = vmatpush1.msra.mxu0 0.0
      %1838 = vmatprep.mubr.f32.mxu0 0.0
      %1839 = vmatmul.mubr.f32.gmra.mrb[0].mxu0 %v1583
      %v1840 = vpop.f32.mrb[0].mxu0
      %v1841 = vadd.f32 %v1579, %v1840
      %v1842 = vpop.f32.mrb[0].mxu0
      %1843 = vmatprep.mubr.f32.mxu0 0.0
      %1844 = vmatmul.mubr.f32.gmra.mrb[0].mxu0 %v1586
      %v1845 = vpop.f32.mrb[0].mxu0
      %v1846 = vadd.f32 %v1579, %v1845
      %v1847 = vpop.f32.mrb[0].mxu0
      %1848 = vmatprep.mubr.f32.mxu0 0.0
      %1849 = vmatmul.mubr.f32.gmra.mrb[0].mxu0 %v1589
      %v1850 = vpop.f32.mrb[0].mxu0
      %v1851 = vadd.f32 %v1579, %v1850
      %v1852 = vpop.f32.mrb[0].mxu0
      %1853 = vmatprep.mubr.f32.mxu0 0.0
      %1854 = vmatmul.mubr.f32.gmra.mrb[0].mxu0 %v1592
      %v1855 = vpop.f32.mrb[0].mxu0
      %v1856 = vadd.f32 %v1579, %v1855
      %v1857 = vpop.f32.mrb[0].mxu0
      %1858 = vmatprep.mubr.f32.mxu0 0.0
      %1859 = vmatmul.mubr.f32.gmra.mrb[0].mxu0 %v1595
      %v1860 = vpop.f32.mrb[0].mxu0
      %v1861 = vadd.f32 %v1579, %v1860
      %v1862 = vpop.f32.mrb[0].mxu0
      %1863 = vmatprep.mubr.f32.mxu0 0.0
      %1864 = vmatmul.mubr.f32.gmra.mrb[0].mxu0 %v1598
      %v1865 = vpop.f32.mrb[0].mxu0
      %v1866 = vadd.f32 %v1579, %v1865
      %v1867 = vpop.f32.mrb[0].mxu0
      %1868 = vmatprep.mubr.f32.mxu0 0.0
      %1869 = vmatmul.mubr.f32.gmra.mrb[0].mxu0 %v1601
      %v1870 = vpop.f32.mrb[0].mxu0
      %v1871 = vadd.f32 %v1579, %v1870
      %v1872 = vpop.f32.mrb[0].mxu0
      %1873 = vmatprep.mubr.f32.mxu0 0.0
      %1874 = vmatmul.mubr.f32.gmra.mrb[0].mxu0 %v1604
      %v1875 = vpop.f32.mrb[0].mxu0
      %v1876 = vadd.f32 %v1579, %v1875
      %v1877 = vpop.f32.mrb[0].mxu0
      %1878 = vmatprep.mubr.f32.mxu0 0.0
      %1879 = vmatmul.mubr.f32.gmra.mrb[0].mxu0 %v1607
      %v1880 = vpop.f32.mrb[0].mxu0
      %v1881 = vadd.f32 %v1579, %v1880
      %v1882 = vpop.f32.mrb[0].mxu0
      %1883 = vmatprep.mubr.f32.mxu0 0.0
      %1884 = vmatmul.mubr.f32.gmra.mrb[0].mxu0 %v1610
      %v1885 = vpop.f32.mrb[0].mxu0
      %v1886 = vadd.f32 %v1579, %v1885
      %v1887 = vpop.f32.mrb[0].mxu0
      %1888 = vmatprep.mubr.f32.mxu0 0.0
      %1889 = vmatmul.mubr.f32.gmra.mrb[0].mxu0 %v1613
      %v1890 = vpop.f32.mrb[0].mxu0
      %v1891 = vadd.f32 %v1579, %v1890
      %v1892 = vpop.f32.mrb[0].mxu0
      %1893 = vmatprep.mubr.f32.mxu0 0.0
      %1894 = vmatmul.mubr.f32.gmra.mrb[0].mxu0 %v1616
      %v1895 = vpop.f32.mrb[0].mxu0
      %v1896 = vadd.f32 %v1579, %v1895
      %v1897 = vpop.f32.mrb[0].mxu0
      %1898 = vmatprep.mubr.f32.mxu0 0.0
      %1899 = vmatmul.mubr.f32.gmra.mrb[0].mxu0 %v1619
      %v1900 = vpop.f32.mrb[0].mxu0
      %v1901 = vadd.f32 %v1579, %v1900
      %v1902 = vpop.f32.mrb[0].mxu0
      %1903 = vmatprep.mubr.f32.mxu0 0.0
      %1904 = vmatmul.mubr.f32.gmra.mrb[0].mxu0 %v1622
      %v1905 = vpop.f32.mrb[0].mxu0
      %v1906 = vadd.f32 %v1579, %v1905
      %v1907 = vpop.f32.mrb[0].mxu0
      %1908 = vmatprep.mubr.f32.mxu0 0.0
      %1909 = vmatmul.mubr.f32.gmra.mrb[0].mxu0 %v1625
      %v1910 = vpop.f32.mrb[0].mxu0
      %v1911 = vadd.f32 %v1579, %v1910
      %v1912 = vpop.f32.mrb[0].mxu0
      %1913 = vmatprep.mubr.f32.mxu0 0.0
      %1914 = vmatmul.mubr.f32.gmra.mrb[0].mxu0 %v1628
      %v1915 = vpop.f32.mrb[0].mxu0
      %v1916 = vadd.f32 %v1579, %v1915
      %v1917 = vpop.f32.mrb[0].mxu0
      %1918 = vmatprep.mubr.f32.mxu0 0.0
      %1919 = vmatmul.mubr.f32.gmra.mrb[0].mxu0 %v1631
      %v1920 = vpop.f32.mrb[0].mxu0
      %v1921 = vadd.f32 %v1579, %v1920
      %v1922 = vpop.f32.mrb[0].mxu0
      %1923 = vmatprep.mubr.f32.mxu0 0.0
      %1924 = vmatmul.mubr.f32.gmra.mrb[0].mxu0 %v1634
      %v1925 = vpop.f32.mrb[0].mxu0
      %v1926 = vadd.f32 %v1579, %v1925
      %v1927 = vpop.f32.mrb[0].mxu0
      %1928 = vmatprep.mubr.f32.mxu0 0.0
      %1929 = vmatmul.mubr.f32.gmra.mrb[0].mxu0 %v1637
      %v1930 = vpop.f32.mrb[0].mxu0
      %v1931 = vadd.f32 %v1579, %v1930
      %v1932 = vpop.f32.mrb[0].mxu0
      %1933 = vmatprep.mubr.f32.mxu0 0.0
      %1934 = vmatmul.mubr.f32.gmra.mrb[0].mxu0 %v1640
      %v1935 = vpop.f32.mrb[0].mxu0
      %v1936 = vadd.f32 %v1579, %v1935
      %v1937 = vpop.f32.mrb[0].mxu0
      %1938 = vmatprep.mubr.f32.mxu0 0.0
      %1939 = vmatmul.mubr.f32.gmra.mrb[0].mxu0 %v1643
      %v1940 = vpop.f32.mrb[0].mxu0
      %v1941 = vadd.f32 %v1579, %v1940
      %v1942 = vpop.f32.mrb[0].mxu0
      %1943 = vmatprep.mubr.f32.mxu0 0.0
      %1944 = vmatmul.mubr.f32.gmra.mrb[0].mxu0 %v1646
      %v1945 = vpop.f32.mrb[0].mxu0
      %v1946 = vadd.f32 %v1579, %v1945
      %v1947 = vpop.f32.mrb[0].mxu0
      %1948 = vmatprep.mubr.f32.mxu0 0.0
      %1949 = vmatmul.mubr.f32.gmra.mrb[0].mxu0 %v1649
      %v1950 = vpop.f32.mrb[0].mxu0
      %v1951 = vadd.f32 %v1579, %v1950
      %v1952 = vpop.f32.mrb[0].mxu0
      %1953 = vmatprep.mubr.f32.mxu0 0.0
      %1954 = vmatmul.mubr.f32.gmra.mrb[0].mxu0 %v1652
      %v1955 = vpop.f32.mrb[0].mxu0
      %v1956 = vadd.f32 %v1579, %v1955
      %v1957 = vpop.f32.mrb[0].mxu0
      %1958 = vmatprep.mubr.f32.mxu0 0.0
      %1959 = vmatmul.mubr.f32.gmra.mrb[0].mxu0 %v1655
      %v1960 = vpop.f32.mrb[0].mxu0
      %v1961 = vadd.f32 %v1579, %v1960
      %v1962 = vpop.f32.mrb[0].mxu0
      %1963 = vmatprep.mubr.f32.mxu0 0.0
      %1964 = vmatmul.mubr.f32.gmra.mrb[0].mxu0 %v1658
      %v1965 = vpop.f32.mrb[0].mxu0
      %v1966 = vadd.f32 %v1579, %v1965
      %v1967 = vpop.f32.mrb[0].mxu0
      %1968 = vmatprep.mubr.f32.mxu0 0.0
      %1969 = vmatmul.mubr.f32.gmra.mrb[0].mxu0 %v1661
      %v1970 = vpop.f32.mrb[0].mxu0
      %v1971 = vadd.f32 %v1579, %v1970
      %v1972 = vpop.f32.mrb[0].mxu0
      %1973 = vmatprep.mubr.f32.mxu0 0.0
      %1974 = vmatmul.mubr.f32.gmra.mrb[0].mxu0 %v1664
      %v1975 = vpop.f32.mrb[0].mxu0
      %v1976 = vadd.f32 %v1579, %v1975
      %v1977 = vpop.f32.mrb[0].mxu0
      %1978 = vmatprep.mubr.f32.mxu0 0.0
      %1979 = vmatmul.mubr.f32.gmra.mrb[0].mxu0 %v1667
      %v1980 = vpop.f32.mrb[0].mxu0
      %v1981 = vadd.f32 %v1579, %v1980
      %v1982 = vpop.f32.mrb[0].mxu0
      %1983 = vmatprep.mubr.f32.mxu0 0.0
      %1984 = vmatmul.mubr.f32.gmra.mrb[0].mxu0 %v1670
      %v1985 = vpop.f32.mrb[0].mxu0
      %v1986 = vadd.f32 %v1579, %v1985
      %v1987 = vpop.f32.mrb[0].mxu0
      %1988 = vmatprep.mubr.f32.mxu0 0.0
      %1989 = vmatmul.mubr.f32.gmra.mrb[0].mxu0 %v1673
      %v1990 = vpop.f32.mrb[0].mxu0
      %v1991 = vadd.f32 %v1579, %v1990
      %v1992 = vpop.f32.mrb[0].mxu0
      %1993 = vmatprep.mubr.f32.mxu0 0.0
      %1994 = vmatmul.mubr.f32.gmra.mrb[0].mxu0 %v1676
      %v1995 = vpop.f32.mrb[0].mxu0
      %v1996 = vadd.f32 %v1579, %v1995
      %v1997 = vpop.f32.mrb[0].mxu0
      %1998 = vmatprep.mubr.f32.mxu0 0.0
      %1999 = vmatmul.mubr.f32.gmra.mrb[0].mxu0 %v1679
      %v2000 = vpop.f32.mrb[0].mxu0
      %v2001 = vadd.f32 %v1579, %v2000
      %v2002 = vpop.f32.mrb[0].mxu0
      %2003 = vmatprep.mubr.f32.mxu0 0.0
      %2004 = vmatmul.mubr.f32.gmra.mrb[0].mxu0 %v1682
      %v2005 = vpop.f32.mrb[0].mxu0
      %v2006 = vadd.f32 %v1579, %v2005
      %v2007 = vpop.f32.mrb[0].mxu0
      %2008 = vmatprep.mubr.f32.mxu0 0.0
      %2009 = vmatmul.mubr.f32.gmra.mrb[0].mxu0 %v1685
      %v2010 = vpop.f32.mrb[0].mxu0
      %v2011 = vadd.f32 %v1579, %v2010
      %v2012 = vpop.f32.mrb[0].mxu0
      %2013 = vmatprep.mubr.f32.mxu0 0.0
      %2014 = vmatmul.mubr.f32.gmra.mrb[0].mxu0 %v1688
      %v2015 = vpop.f32.mrb[0].mxu0
      %v2016 = vadd.f32 %v1579, %v2015
      %v2017 = vpop.f32.mrb[0].mxu0
      %2018 = vmatprep.mubr.f32.mxu0 0.0
      %2019 = vmatmul.mubr.f32.gmra.mrb[0].mxu0 %v1691
      %v2020 = vpop.f32.mrb[0].mxu0
      %v2021 = vadd.f32 %v1579, %v2020
      %v2022 = vpop.f32.mrb[0].mxu0
      %2023 = vmatprep.mubr.f32.mxu0 0.0
      %2024 = vmatmul.mubr.f32.gmra.mrb[0].mxu0 %v1694
      %v2025 = vpop.f32.mrb[0].mxu0
      %v2026 = vadd.f32 %v1579, %v2025
      %v2027 = vpop.f32.mrb[0].mxu0
      %2028 = vmatprep.mubr.f32.mxu0 0.0
      %2029 = vmatmul.mubr.f32.gmra.mrb[0].mxu0 %v1697
      %v2030 = vpop.f32.mrb[0].mxu0
      %v2031 = vadd.f32 %v1579, %v2030
      %v2032 = vpop.f32.mrb[0].mxu0
      %2033 = vmatprep.mubr.f32.mxu0 0.0
      %2034 = vmatmul.mubr.f32.gmra.mrb[0].mxu0 %v1700
      %v2035 = vpop.f32.mrb[0].mxu0
      %v2036 = vadd.f32 %v1579, %v2035
      %v2037 = vpop.f32.mrb[0].mxu0
      %2038 = vmatprep.mubr.f32.mxu0 0.0
      %2039 = vmatmul.mubr.f32.gmra.mrb[0].mxu0 %v1703
      %v2040 = vpop.f32.mrb[0].mxu0
      %v2041 = vadd.f32 %v1579, %v2040
      %v2042 = vpop.f32.mrb[0].mxu0
      %2043 = vmatprep.mubr.f32.mxu0 0.0
      %2044 = vmatmul.mubr.f32.gmra.mrb[0].mxu0 %v1706
      %v2045 = vpop.f32.mrb[0].mxu0
      %v2046 = vadd.f32 %v1579, %v2045
      %v2047 = vpop.f32.mrb[0].mxu0
      %2048 = vmatprep.mubr.f32.mxu0 0.0
      %2049 = vmatmul.mubr.f32.gmra.mrb[0].mxu0 %v1709
      %v2050 = vpop.f32.mrb[0].mxu0
      %v2051 = vadd.f32 %v1579, %v2050
      %v2052 = vpop.f32.mrb[0].mxu0
      %2053 = vmatprep.mubr.f32.mxu0 0.0
      %2054 = vmatmul.mubr.f32.gmra.mrb[0].mxu0 %v1712
      %v2055 = vpop.f32.mrb[0].mxu0
      %v2056 = vadd.f32 %v1579, %v2055
      %v2057 = vpop.f32.mrb[0].mxu0
      %2058 = vmatprep.mubr.f32.mxu0 0.0
      %2059 = vmatmul.mubr.f32.gmra.mrb[0].mxu0 %v1715
      %v2060 = vpop.f32.mrb[0].mxu0
      %v2061 = vadd.f32 %v1579, %v2060
      %v2062 = vpop.f32.mrb[0].mxu0
      %2063 = vmatprep.mubr.f32.mxu0 0.0
      %2064 = vmatmul.mubr.f32.gmra.mrb[0].mxu0 %v1718
      %v2065 = vpop.f32.mrb[0].mxu0
      %v2066 = vadd.f32 %v1579, %v2065
      %v2067 = vpop.f32.mrb[0].mxu0
      %2068 = vmatprep.mubr.f32.mxu0 0.0
      %2069 = vmatmul.mubr.f32.gmra.mrb[0].mxu0 %v1721
      %v2070 = vpop.f32.mrb[0].mxu0
      %v2071 = vadd.f32 %v1579, %v2070
      %v2072 = vpop.f32.mrb[0].mxu0
      %2073 = vmatprep.mubr.f32.mxu0 0.0
      %2074 = vmatmul.mubr.f32.gmra.mrb[0].mxu0 %v1724
      %v2075 = vpop.f32.mrb[0].mxu0
      %v2076 = vadd.f32 %v1579, %v2075
      %v2077 = vpop.f32.mrb[0].mxu0
      %2078 = vmatprep.mubr.f32.mxu0 0.0
      %2079 = vmatmul.mubr.f32.gmra.mrb[0].mxu0 %v1727
      %v2080 = vpop.f32.mrb[0].mxu0
      %v2081 = vadd.f32 %v1579, %v2080
      %v2082 = vpop.f32.mrb[0].mxu0
      %2083 = vmatprep.mubr.f32.mxu0 0.0
      %2084 = vmatmul.mubr.f32.gmra.mrb[0].mxu0 %v1730
      %v2085 = vpop.f32.mrb[0].mxu0
      %v2086 = vadd.f32 %v1579, %v2085
      %v2087 = vpop.f32.mrb[0].mxu0
      %2088 = vmatprep.mubr.f32.mxu0 0.0
      %2089 = vmatmul.mubr.f32.gmra.mrb[0].mxu0 %v1733
      %v2090 = vpop.f32.mrb[0].mxu0
      %v2091 = vadd.f32 %v1579, %v2090
      %v2092 = vpop.f32.mrb[0].mxu0
      %2093 = vmatprep.mubr.f32.mxu0 0.0
      %2094 = vmatmul.mubr.f32.gmra.mrb[0].mxu0 %v1736
      %v2095 = vpop.f32.mrb[0].mxu0
      %v2096 = vadd.f32 %v1579, %v2095
      %v2097 = vpop.f32.mrb[0].mxu0
      %2098 = vmatprep.mubr.f32.mxu0 0.0
      %2099 = vmatmul.mubr.f32.gmra.mrb[0].mxu0 %v1739
      %v2100 = vpop.f32.mrb[0].mxu0
      %v2101 = vadd.f32 %v1579, %v2100
      %v2102 = vpop.f32.mrb[0].mxu0
      %2103 = vmatprep.mubr.f32.mxu0 0.0
      %2104 = vmatmul.mubr.f32.gmra.mrb[0].mxu0 %v1742
      %v2105 = vpop.f32.mrb[0].mxu0
      %v2106 = vadd.f32 %v1579, %v2105
      %v2107 = vpop.f32.mrb[0].mxu0
      %2108 = vmatprep.mubr.f32.mxu0 0.0
      %2109 = vmatmul.mubr.f32.gmra.mrb[0].mxu0 %v1745
      %v2110 = vpop.f32.mrb[0].mxu0
      %v2111 = vadd.f32 %v1579, %v2110
      %v2112 = vpop.f32.mrb[0].mxu0
      %2113 = vmatprep.mubr.f32.mxu0 0.0
      %2114 = vmatmul.mubr.f32.gmra.mrb[0].mxu0 %v1748
      %v2115 = vpop.f32.mrb[0].mxu0
      %v2116 = vadd.f32 %v1579, %v2115
      %v2117 = vpop.f32.mrb[0].mxu0
      %2118 = vmatprep.mubr.f32.mxu0 0.0
      %2119 = vmatmul.mubr.f32.gmra.mrb[0].mxu0 %v1751
      %v2120 = vpop.f32.mrb[0].mxu0
      %v2121 = vadd.f32 %v1579, %v2120
      %v2122 = vpop.f32.mrb[0].mxu0
      %2123 = vmatprep.mubr.f32.mxu0 0.0
      %2124 = vmatmul.mubr.f32.gmra.mrb[0].mxu0 %v1754
      %v2125 = vpop.f32.mrb[0].mxu0
      %v2126 = vadd.f32 %v1579, %v2125
      %v2127 = vpop.f32.mrb[0].mxu0
      %2128 = vmatprep.mubr.f32.mxu0 0.0
      %2129 = vmatmul.mubr.f32.gmra.mrb[0].mxu0 %v1757
      %v2130 = vpop.f32.mrb[0].mxu0
      %v2131 = vadd.f32 %v1579, %v2130
      %v2132 = vpop.f32.mrb[0].mxu0
      %2133 = vmatprep.mubr.f32.mxu0 0.0
      %2134 = vmatmul.mubr.f32.gmra.mrb[0].mxu0 %v1760
      %v2135 = vpop.f32.mrb[0].mxu0
      %v2136 = vadd.f32 %v1579, %v2135
      %v2137 = vpop.f32.mrb[0].mxu0
      %2138 = vmatprep.mubr.f32.mxu0 0.0
      %2139 = vmatmul.mubr.f32.gmra.mrb[0].mxu0 %v1763
      %v2140 = vpop.f32.mrb[0].mxu0
      %v2141 = vadd.f32 %v1579, %v2140
      %v2142 = vpop.f32.mrb[0].mxu0
      %2143 = vmatprep.mubr.f32.mxu0 0.0
      %2144 = vmatmul.mubr.f32.gmra.mrb[0].mxu0 %v1766
      %v2145 = vpop.f32.mrb[0].mxu0
      %v2146 = vadd.f32 %v1579, %v2145
      %v2147 = vpop.f32.mrb[0].mxu0
      %2148 = vmatprep.mubr.f32.mxu0 0.0
      %2149 = vmatmul.mubr.f32.gmra.mrb[0].mxu0 %v1769
      %v2150 = vpop.f32.mrb[0].mxu0
      %v2151 = vadd.f32 %v1579, %v2150
      %v2152 = vpop.f32.mrb[0].mxu0
      %2153 = vmatprep.mubr.f32.mxu0 0.0
      %2154 = vmatmul.mubr.f32.gmra.mrb[0].mxu0 %v1772
      %v2155 = vpop.f32.mrb[0].mxu0
      %v2156 = vadd.f32 %v1579, %v2155
      %v2157 = vpop.f32.mrb[0].mxu0
      %2158 = vdwg.mxu0
      %v2159 = vmax.f32 %v1841, 0.0
      %v2160 = vmax.f32 %v1846, 0.0
      %v2161 = vmax.f32 %v1851, 0.0
      %v2162 = vmax.f32 %v1856, 0.0
      %v2163 = vmax.f32 %v1861, 0.0
      %v2164 = vmax.f32 %v1866, 0.0
      %v2165 = vmax.f32 %v1871, 0.0
      %v2166 = vmax.f32 %v1876, 0.0
      %v2167 = vmax.f32 %v1881, 0.0
      %v2168 = vmax.f32 %v1886, 0.0
      %v2169 = vmax.f32 %v1891, 0.0
      %v2170 = vmax.f32 %v1896, 0.0
      %v2171 = vmax.f32 %v1901, 0.0
      %v2172 = vmax.f32 %v1906, 0.0
      %v2173 = vmax.f32 %v1911, 0.0
      %v2174 = vmax.f32 %v1916, 0.0
      %v2175 = vmax.f32 %v1921, 0.0
      %v2176 = vmax.f32 %v1926, 0.0
      %v2177 = vmax.f32 %v1931, 0.0
      %v2178 = vmax.f32 %v1936, 0.0
      %v2179 = vmax.f32 %v1941, 0.0
      %v2180 = vmax.f32 %v1946, 0.0
      %v2181 = vmax.f32 %v1951, 0.0
      %v2182 = vmax.f32 %v1956, 0.0
      %v2183 = vmax.f32 %v1961, 0.0
      %v2184 = vmax.f32 %v1966, 0.0
      %v2185 = vmax.f32 %v1971, 0.0
      %v2186 = vmax.f32 %v1976, 0.0
      %v2187 = vmax.f32 %v1981, 0.0
      %v2188 = vmax.f32 %v1986, 0.0
      %v2189 = vmax.f32 %v1991, 0.0
      %v2190 = vmax.f32 %v1996, 0.0
      %v2191 = vmax.f32 %v2001, 0.0
      %v2192 = vmax.f32 %v2006, 0.0
      %v2193 = vmax.f32 %v2011, 0.0
      %v2194 = vmax.f32 %v2016, 0.0
      %v2195 = vmax.f32 %v2021, 0.0
      %v2196 = vmax.f32 %v2026, 0.0
      %v2197 = vmax.f32 %v2031, 0.0
      %v2198 = vmax.f32 %v2036, 0.0
      %v2199 = vmax.f32 %v2041, 0.0
      %v2200 = vmax.f32 %v2046, 0.0
      %v2201 = vmax.f32 %v2051, 0.0
      %v2202 = vmax.f32 %v2056, 0.0
      %v2203 = vmax.f32 %v2061, 0.0
      %v2204 = vmax.f32 %v2066, 0.0
      %v2205 = vmax.f32 %v2071, 0.0
      %v2206 = vmax.f32 %v2076, 0.0
      %v2207 = vmax.f32 %v2081, 0.0
      %v2208 = vmax.f32 %v2086, 0.0
      %v2209 = vmax.f32 %v2091, 0.0
      %v2210 = vmax.f32 %v2096, 0.0
      %v2211 = vmax.f32 %v2101, 0.0
      %v2212 = vmax.f32 %v2106, 0.0
      %v2213 = vmax.f32 %v2111, 0.0
      %v2214 = vmax.f32 %v2116, 0.0
      %v2215 = vmax.f32 %v2121, 0.0
      %v2216 = vmax.f32 %v2126, 0.0
      %v2217 = vmax.f32 %v2131, 0.0
      %v2218 = vmax.f32 %v2136, 0.0
      %v2219 = vmax.f32 %v2141, 0.0
      %v2220 = vmax.f32 %v2146, 0.0
      %v2221 = vmax.f32 %v2151, 0.0
      %v2222 = vmax.f32 %v2156, 0.0
      %v2223 = vld [vmem:[%s7] sm:$0xff]
      %v2224 = vld [vmem:[%s7 + $0x8] sm:$0xff]
      %v2225 = vld [vmem:[%s8] sm:$0x1]
      %v2227 = vlaneseq
      %v2228 = vshrl.u32 %v2227, 7
      %v2229 = vsub.s32 0, %v2228
      %v2230 = vrot.slane %v2225, %v2229
      %vm2232 = vcmask 130048
      %v2234 = vsel %vm2232, %v2159, 0
      %v2237 = vsel %vm2232, %v2160, 0
      %v2240 = vsel %vm2232, %v2161, 0
      %v2243 = vsel %vm2232, %v2162, 0
      %v2246 = vsel %vm2232, %v2163, 0
      %v2249 = vsel %vm2232, %v2164, 0
      %v2252 = vsel %vm2232, %v2165, 0
      %v2255 = vsel %vm2232, %v2166, 0
      %v2258 = vsel %vm2232, %v2167, 0
      %v2261 = vsel %vm2232, %v2168, 0
      %v2264 = vsel %vm2232, %v2169, 0
      %v2267 = vsel %vm2232, %v2170, 0
      %v2270 = vsel %vm2232, %v2171, 0
      %v2273 = vsel %vm2232, %v2172, 0
      %v2276 = vsel %vm2232, %v2173, 0
      %v2279 = vsel %vm2232, %v2174, 0
      %v2282 = vsel %vm2232, %v2175, 0
      %v2285 = vsel %vm2232, %v2176, 0
      %v2288 = vsel %vm2232, %v2177, 0
      %v2291 = vsel %vm2232, %v2178, 0
      %v2294 = vsel %vm2232, %v2179, 0
      %v2297 = vsel %vm2232, %v2180, 0
      %v2300 = vsel %vm2232, %v2181, 0
      %v2303 = vsel %vm2232, %v2182, 0
      %v2306 = vsel %vm2232, %v2183, 0
      %v2309 = vsel %vm2232, %v2184, 0
      %v2312 = vsel %vm2232, %v2185, 0
      %v2315 = vsel %vm2232, %v2186, 0
      %v2318 = vsel %vm2232, %v2187, 0
      %v2321 = vsel %vm2232, %v2188, 0
      %v2324 = vsel %vm2232, %v2189, 0
      %v2327 = vsel %vm2232, %v2190, 0
      %v2330 = vsel %vm2232, %v2191, 0
      %v2333 = vsel %vm2232, %v2192, 0
      %v2336 = vsel %vm2232, %v2193, 0
      %v2339 = vsel %vm2232, %v2194, 0
      %v2342 = vsel %vm2232, %v2195, 0
      %v2345 = vsel %vm2232, %v2196, 0
      %v2348 = vsel %vm2232, %v2197, 0
      %v2351 = vsel %vm2232, %v2198, 0
      %v2354 = vsel %vm2232, %v2199, 0
      %v2357 = vsel %vm2232, %v2200, 0
      %v2360 = vsel %vm2232, %v2201, 0
      %v2363 = vsel %vm2232, %v2202, 0
      %v2366 = vsel %vm2232, %v2203, 0
      %v2369 = vsel %vm2232, %v2204, 0
      %v2372 = vsel %vm2232, %v2205, 0
      %v2375 = vsel %vm2232, %v2206, 0
      %v2378 = vsel %vm2232, %v2207, 0
      %v2381 = vsel %vm2232, %v2208, 0
      %v2384 = vsel %vm2232, %v2209, 0
      %v2387 = vsel %vm2232, %v2210, 0
      %v2390 = vsel %vm2232, %v2211, 0
      %v2393 = vsel %vm2232, %v2212, 0
      %v2396 = vsel %vm2232, %v2213, 0
      %v2399 = vsel %vm2232, %v2214, 0
      %v2402 = vsel %vm2232, %v2215, 0
      %v2405 = vsel %vm2232, %v2216, 0
      %v2408 = vsel %vm2232, %v2217, 0
      %v2411 = vsel %vm2232, %v2218, 0
      %v2414 = vsel %vm2232, %v2219, 0
      %v2417 = vsel %vm2232, %v2220, 0
      %v2420 = vsel %vm2232, %v2221, 0
      %v2423 = vsel %vm2232, %v2222, 0
      %2425 = vmatprep.subr.mxu0 0.0
      %2426 = vmatpush1.msra.mxu0 %v2223
      %2427 = vmatprep.subr.mxu0 0.0
      %2428 = vmatpush1.msra.mxu0 %v2224
      %2429 = vmatprep.subr.mxu0 0.0
      %2430 = vmatpush1.msra.mxu0 0.0
      %2431 = vmatprep.subr.mxu0 0.0
      %2432 = vmatpush1.msra.mxu0 0.0
      %2433 = vmatprep.subr.mxu0 0.0
      %2434 = vmatpush1.msra.mxu0 0.0
      %2435 = vmatprep.subr.mxu0 0.0
      %2436 = vmatpush1.msra.mxu0 0.0
      %2437 = vmatprep.subr.mxu0 0.0
      %2438 = vmatpush1.msra.mxu0 0.0
      %2439 = vmatprep.subr.mxu0 0.0
      %2440 = vmatpush1.msra.mxu0 0.0
      %2441 = vmatprep.subr.mxu0 0.0
      %2442 = vmatpush1.msra.mxu0 0.0
      %2443 = vmatprep.subr.mxu0 0.0
      %2444 = vmatpush1.msra.mxu0 0.0
      %2445 = vmatprep.subr.mxu0 0.0
      %2446 = vmatpush1.msra.mxu0 0.0
      %2447 = vmatprep.subr.mxu0 0.0
      %2448 = vmatpush1.msra.mxu0 0.0
      %2449 = vmatprep.subr.mxu0 0.0
      %2450 = vmatpush1.msra.mxu0 0.0
      %2451 = vmatprep.subr.mxu0 0.0
      %2452 = vmatpush1.msra.mxu0 0.0
      %2453 = vmatprep.subr.mxu0 0.0
      %2454 = vmatpush1.msra.mxu0 0.0
      %2455 = vmatprep.subr.mxu0 0.0
      %2456 = vmatpush1.msra.mxu0 0.0
      %2457 = vmatprep.subr.mxu0 0.0
      %2458 = vmatpush1.msra.mxu0 0.0
      %2459 = vmatprep.subr.mxu0 0.0
      %2460 = vmatpush1.msra.mxu0 0.0
      %2461 = vmatprep.subr.mxu0 0.0
      %2462 = vmatpush1.msra.mxu0 0.0
      %2463 = vmatprep.subr.mxu0 0.0
      %2464 = vmatpush1.msra.mxu0 0.0
      %2465 = vmatprep.subr.mxu0 0.0
      %2466 = vmatpush1.msra.mxu0 0.0
      %2467 = vmatprep.subr.mxu0 0.0
      %2468 = vmatpush1.msra.mxu0 0.0
      %2469 = vmatprep.subr.mxu0 0.0
      %2470 = vmatpush1.msra.mxu0 0.0
      %2471 = vmatprep.subr.mxu0 0.0
      %2472 = vmatpush1.msra.mxu0 0.0
      %2473 = vmatprep.subr.mxu0 0.0
      %2474 = vmatpush1.msra.mxu0 0.0
      %2475 = vmatprep.subr.mxu0 0.0
      %2476 = vmatpush1.msra.mxu0 0.0
      %2477 = vmatprep.subr.mxu0 0.0
      %2478 = vmatpush1.msra.mxu0 0.0
      %2479 = vmatprep.subr.mxu0 0.0
      %2480 = vmatpush1.msra.mxu0 0.0
      %2481 = vmatprep.subr.mxu0 0.0
      %2482 = vmatpush1.msra.mxu0 0.0
      %2483 = vmatprep.subr.mxu0 0.0
      %2484 = vmatpush1.msra.mxu0 0.0
      %2485 = vmatprep.subr.mxu0 0.0
      %2486 = vmatpush1.msra.mxu0 0.0
      %2487 = vmatprep.subr.mxu0 0.0
      %2488 = vmatpush1.msra.mxu0 0.0
      %2489 = vmatprep.mubr.f32.mxu0 0.0
      %2490 = vmatmul.mubr.f32.gmra.mrb[0].mxu0 %v2234
      %v2491 = vpop.f32.mrb[0].mxu0
      %v2492 = vadd.f32 %v2230, %v2491
      %v2493 = vpop.f32.mrb[0].mxu0
      %2494 = vmatprep.mubr.f32.mxu0 0.0
      %2495 = vmatmul.mubr.f32.gmra.mrb[0].mxu0 %v2237
      %v2496 = vpop.f32.mrb[0].mxu0
      %v2497 = vadd.f32 %v2230, %v2496
      %v2498 = vpop.f32.mrb[0].mxu0
      %2499 = vmatprep.mubr.f32.mxu0 0.0
      %2500 = vmatmul.mubr.f32.gmra.mrb[0].mxu0 %v2240
      %v2501 = vpop.f32.mrb[0].mxu0
      %v2502 = vadd.f32 %v2230, %v2501
      %v2503 = vpop.f32.mrb[0].mxu0
      %2504 = vmatprep.mubr.f32.mxu0 0.0
      %2505 = vmatmul.mubr.f32.gmra.mrb[0].mxu0 %v2243
      %v2506 = vpop.f32.mrb[0].mxu0
      %v2507 = vadd.f32 %v2230, %v2506
      %v2508 = vpop.f32.mrb[0].mxu0
      %2509 = vmatprep.mubr.f32.mxu0 0.0
      %2510 = vmatmul.mubr.f32.gmra.mrb[0].mxu0 %v2246
      %v2511 = vpop.f32.mrb[0].mxu0
      %v2512 = vadd.f32 %v2230, %v2511
      %v2513 = vpop.f32.mrb[0].mxu0
      %2514 = vmatprep.mubr.f32.mxu0 0.0
      %2515 = vmatmul.mubr.f32.gmra.mrb[0].mxu0 %v2249
      %v2516 = vpop.f32.mrb[0].mxu0
      %v2517 = vadd.f32 %v2230, %v2516
      %v2518 = vpop.f32.mrb[0].mxu0
      %2519 = vmatprep.mubr.f32.mxu0 0.0
      %2520 = vmatmul.mubr.f32.gmra.mrb[0].mxu0 %v2252
      %v2521 = vpop.f32.mrb[0].mxu0
      %v2522 = vadd.f32 %v2230, %v2521
      %v2523 = vpop.f32.mrb[0].mxu0
      %2524 = vmatprep.mubr.f32.mxu0 0.0
      %2525 = vmatmul.mubr.f32.gmra.mrb[0].mxu0 %v2255
      %v2526 = vpop.f32.mrb[0].mxu0
      %v2527 = vadd.f32 %v2230, %v2526
      %v2528 = vpop.f32.mrb[0].mxu0
      %2529 = vmatprep.mubr.f32.mxu0 0.0
      %2530 = vmatmul.mubr.f32.gmra.mrb[0].mxu0 %v2258
      %v2531 = vpop.f32.mrb[0].mxu0
      %v2532 = vadd.f32 %v2230, %v2531
      %v2533 = vpop.f32.mrb[0].mxu0
      %2534 = vmatprep.mubr.f32.mxu0 0.0
      %2535 = vmatmul.mubr.f32.gmra.mrb[0].mxu0 %v2261
      %v2536 = vpop.f32.mrb[0].mxu0
      %v2537 = vadd.f32 %v2230, %v2536
      %v2538 = vpop.f32.mrb[0].mxu0
      %2539 = vmatprep.mubr.f32.mxu0 0.0
      %2540 = vmatmul.mubr.f32.gmra.mrb[0].mxu0 %v2264
      %v2541 = vpop.f32.mrb[0].mxu0
      %v2542 = vadd.f32 %v2230, %v2541
      %v2543 = vpop.f32.mrb[0].mxu0
      %2544 = vmatprep.mubr.f32.mxu0 0.0
      %2545 = vmatmul.mubr.f32.gmra.mrb[0].mxu0 %v2267
      %v2546 = vpop.f32.mrb[0].mxu0
      %v2547 = vadd.f32 %v2230, %v2546
      %v2548 = vpop.f32.mrb[0].mxu0
      %2549 = vmatprep.mubr.f32.mxu0 0.0
      %2550 = vmatmul.mubr.f32.gmra.mrb[0].mxu0 %v2270
      %v2551 = vpop.f32.mrb[0].mxu0
      %v2552 = vadd.f32 %v2230, %v2551
      %v2553 = vpop.f32.mrb[0].mxu0
      %2554 = vmatprep.mubr.f32.mxu0 0.0
      %2555 = vmatmul.mubr.f32.gmra.mrb[0].mxu0 %v2273
      %v2556 = vpop.f32.mrb[0].mxu0
      %v2557 = vadd.f32 %v2230, %v2556
      %v2558 = vpop.f32.mrb[0].mxu0
      %2559 = vmatprep.mubr.f32.mxu0 0.0
      %2560 = vmatmul.mubr.f32.gmra.mrb[0].mxu0 %v2276
      %v2561 = vpop.f32.mrb[0].mxu0
      %v2562 = vadd.f32 %v2230, %v2561
      %v2563 = vpop.f32.mrb[0].mxu0
      %2564 = vmatprep.mubr.f32.mxu0 0.0
      %2565 = vmatmul.mubr.f32.gmra.mrb[0].mxu0 %v2279
      %v2566 = vpop.f32.mrb[0].mxu0
      %v2567 = vadd.f32 %v2230, %v2566
      %v2568 = vpop.f32.mrb[0].mxu0
      %2569 = vmatprep.mubr.f32.mxu0 0.0
      %2570 = vmatmul.mubr.f32.gmra.mrb[0].mxu0 %v2282
      %v2571 = vpop.f32.mrb[0].mxu0
      %v2572 = vadd.f32 %v2230, %v2571
      %v2573 = vpop.f32.mrb[0].mxu0
      %2574 = vmatprep.mubr.f32.mxu0 0.0
      %2575 = vmatmul.mubr.f32.gmra.mrb[0].mxu0 %v2285
      %v2576 = vpop.f32.mrb[0].mxu0
      %v2577 = vadd.f32 %v2230, %v2576
      %v2578 = vpop.f32.mrb[0].mxu0
      %2579 = vmatprep.mubr.f32.mxu0 0.0
      %2580 = vmatmul.mubr.f32.gmra.mrb[0].mxu0 %v2288
      %v2581 = vpop.f32.mrb[0].mxu0
      %v2582 = vadd.f32 %v2230, %v2581
      %v2583 = vpop.f32.mrb[0].mxu0
      %2584 = vmatprep.mubr.f32.mxu0 0.0
      %2585 = vmatmul.mubr.f32.gmra.mrb[0].mxu0 %v2291
      %v2586 = vpop.f32.mrb[0].mxu0
      %v2587 = vadd.f32 %v2230, %v2586
      %v2588 = vpop.f32.mrb[0].mxu0
      %2589 = vmatprep.mubr.f32.mxu0 0.0
      %2590 = vmatmul.mubr.f32.gmra.mrb[0].mxu0 %v2294
      %v2591 = vpop.f32.mrb[0].mxu0
      %v2592 = vadd.f32 %v2230, %v2591
      %v2593 = vpop.f32.mrb[0].mxu0
      %2594 = vmatprep.mubr.f32.mxu0 0.0
      %2595 = vmatmul.mubr.f32.gmra.mrb[0].mxu0 %v2297
      %v2596 = vpop.f32.mrb[0].mxu0
      %v2597 = vadd.f32 %v2230, %v2596
      %v2598 = vpop.f32.mrb[0].mxu0
      %2599 = vmatprep.mubr.f32.mxu0 0.0
      %2600 = vmatmul.mubr.f32.gmra.mrb[0].mxu0 %v2300
      %v2601 = vpop.f32.mrb[0].mxu0
      %v2602 = vadd.f32 %v2230, %v2601
      %v2603 = vpop.f32.mrb[0].mxu0
      %2604 = vmatprep.mubr.f32.mxu0 0.0
      %2605 = vmatmul.mubr.f32.gmra.mrb[0].mxu0 %v2303
      %v2606 = vpop.f32.mrb[0].mxu0
      %v2607 = vadd.f32 %v2230, %v2606
      %v2608 = vpop.f32.mrb[0].mxu0
      %2609 = vmatprep.mubr.f32.mxu0 0.0
      %2610 = vmatmul.mubr.f32.gmra.mrb[0].mxu0 %v2306
      %v2611 = vpop.f32.mrb[0].mxu0
      %v2612 = vadd.f32 %v2230, %v2611
      %v2613 = vpop.f32.mrb[0].mxu0
      %2614 = vmatprep.mubr.f32.mxu0 0.0
      %2615 = vmatmul.mubr.f32.gmra.mrb[0].mxu0 %v2309
      %v2616 = vpop.f32.mrb[0].mxu0
      %v2617 = vadd.f32 %v2230, %v2616
      %v2618 = vpop.f32.mrb[0].mxu0
      %2619 = vmatprep.mubr.f32.mxu0 0.0
      %2620 = vmatmul.mubr.f32.gmra.mrb[0].mxu0 %v2312
      %v2621 = vpop.f32.mrb[0].mxu0
      %v2622 = vadd.f32 %v2230, %v2621
      %v2623 = vpop.f32.mrb[0].mxu0
      %2624 = vmatprep.mubr.f32.mxu0 0.0
      %2625 = vmatmul.mubr.f32.gmra.mrb[0].mxu0 %v2315
      %v2626 = vpop.f32.mrb[0].mxu0
      %v2627 = vadd.f32 %v2230, %v2626
      %v2628 = vpop.f32.mrb[0].mxu0
      %2629 = vmatprep.mubr.f32.mxu0 0.0
      %2630 = vmatmul.mubr.f32.gmra.mrb[0].mxu0 %v2318
      %v2631 = vpop.f32.mrb[0].mxu0
      %v2632 = vadd.f32 %v2230, %v2631
      %v2633 = vpop.f32.mrb[0].mxu0
      %2634 = vmatprep.mubr.f32.mxu0 0.0
      %2635 = vmatmul.mubr.f32.gmra.mrb[0].mxu0 %v2321
      %v2636 = vpop.f32.mrb[0].mxu0
      %v2637 = vadd.f32 %v2230, %v2636
      %v2638 = vpop.f32.mrb[0].mxu0
      %2639 = vmatprep.mubr.f32.mxu0 0.0
      %2640 = vmatmul.mubr.f32.gmra.mrb[0].mxu0 %v2324
      %v2641 = vpop.f32.mrb[0].mxu0
      %v2642 = vadd.f32 %v2230, %v2641
      %v2643 = vpop.f32.mrb[0].mxu0
      %2644 = vmatprep.mubr.f32.mxu0 0.0
      %2645 = vmatmul.mubr.f32.gmra.mrb[0].mxu0 %v2327
      %v2646 = vpop.f32.mrb[0].mxu0
      %v2647 = vadd.f32 %v2230, %v2646
      %v2648 = vpop.f32.mrb[0].mxu0
      %2649 = vmatprep.mubr.f32.mxu0 0.0
      %2650 = vmatmul.mubr.f32.gmra.mrb[0].mxu0 %v2330
      %v2651 = vpop.f32.mrb[0].mxu0
      %v2652 = vadd.f32 %v2230, %v2651
      %v2653 = vpop.f32.mrb[0].mxu0
      %2654 = vmatprep.mubr.f32.mxu0 0.0
      %2655 = vmatmul.mubr.f32.gmra.mrb[0].mxu0 %v2333
      %v2656 = vpop.f32.mrb[0].mxu0
      %v2657 = vadd.f32 %v2230, %v2656
      %v2658 = vpop.f32.mrb[0].mxu0
      %2659 = vmatprep.mubr.f32.mxu0 0.0
      %2660 = vmatmul.mubr.f32.gmra.mrb[0].mxu0 %v2336
      %v2661 = vpop.f32.mrb[0].mxu0
      %v2662 = vadd.f32 %v2230, %v2661
      %v2663 = vpop.f32.mrb[0].mxu0
      %2664 = vmatprep.mubr.f32.mxu0 0.0
      %2665 = vmatmul.mubr.f32.gmra.mrb[0].mxu0 %v2339
      %v2666 = vpop.f32.mrb[0].mxu0
      %v2667 = vadd.f32 %v2230, %v2666
      %v2668 = vpop.f32.mrb[0].mxu0
      %2669 = vmatprep.mubr.f32.mxu0 0.0
      %2670 = vmatmul.mubr.f32.gmra.mrb[0].mxu0 %v2342
      %v2671 = vpop.f32.mrb[0].mxu0
      %v2672 = vadd.f32 %v2230, %v2671
      %v2673 = vpop.f32.mrb[0].mxu0
      %2674 = vmatprep.mubr.f32.mxu0 0.0
      %2675 = vmatmul.mubr.f32.gmra.mrb[0].mxu0 %v2345
      %v2676 = vpop.f32.mrb[0].mxu0
      %v2677 = vadd.f32 %v2230, %v2676
      %v2678 = vpop.f32.mrb[0].mxu0
      %2679 = vmatprep.mubr.f32.mxu0 0.0
      %2680 = vmatmul.mubr.f32.gmra.mrb[0].mxu0 %v2348
      %v2681 = vpop.f32.mrb[0].mxu0
      %v2682 = vadd.f32 %v2230, %v2681
      %v2683 = vpop.f32.mrb[0].mxu0
      %2684 = vmatprep.mubr.f32.mxu0 0.0
      %2685 = vmatmul.mubr.f32.gmra.mrb[0].mxu0 %v2351
      %v2686 = vpop.f32.mrb[0].mxu0
      %v2687 = vadd.f32 %v2230, %v2686
      %v2688 = vpop.f32.mrb[0].mxu0
      %2689 = vmatprep.mubr.f32.mxu0 0.0
      %2690 = vmatmul.mubr.f32.gmra.mrb[0].mxu0 %v2354
      %v2691 = vpop.f32.mrb[0].mxu0
      %v2692 = vadd.f32 %v2230, %v2691
      %v2693 = vpop.f32.mrb[0].mxu0
      %2694 = vmatprep.mubr.f32.mxu0 0.0
      %2695 = vmatmul.mubr.f32.gmra.mrb[0].mxu0 %v2357
      %v2696 = vpop.f32.mrb[0].mxu0
      %v2697 = vadd.f32 %v2230, %v2696
      %v2698 = vpop.f32.mrb[0].mxu0
      %2699 = vmatprep.mubr.f32.mxu0 0.0
      %2700 = vmatmul.mubr.f32.gmra.mrb[0].mxu0 %v2360
      %v2701 = vpop.f32.mrb[0].mxu0
      %v2702 = vadd.f32 %v2230, %v2701
      %v2703 = vpop.f32.mrb[0].mxu0
      %2704 = vmatprep.mubr.f32.mxu0 0.0
      %2705 = vmatmul.mubr.f32.gmra.mrb[0].mxu0 %v2363
      %v2706 = vpop.f32.mrb[0].mxu0
      %v2707 = vadd.f32 %v2230, %v2706
      %v2708 = vpop.f32.mrb[0].mxu0
      %2709 = vmatprep.mubr.f32.mxu0 0.0
      %2710 = vmatmul.mubr.f32.gmra.mrb[0].mxu0 %v2366
      %v2711 = vpop.f32.mrb[0].mxu0
      %v2712 = vadd.f32 %v2230, %v2711
      %v2713 = vpop.f32.mrb[0].mxu0
      %2714 = vmatprep.mubr.f32.mxu0 0.0
      %2715 = vmatmul.mubr.f32.gmra.mrb[0].mxu0 %v2369
      %v2716 = vpop.f32.mrb[0].mxu0
      %v2717 = vadd.f32 %v2230, %v2716
      %v2718 = vpop.f32.mrb[0].mxu0
      %2719 = vmatprep.mubr.f32.mxu0 0.0
      %2720 = vmatmul.mubr.f32.gmra.mrb[0].mxu0 %v2372
      %v2721 = vpop.f32.mrb[0].mxu0
      %v2722 = vadd.f32 %v2230, %v2721
      %v2723 = vpop.f32.mrb[0].mxu0
      %2724 = vmatprep.mubr.f32.mxu0 0.0
      %2725 = vmatmul.mubr.f32.gmra.mrb[0].mxu0 %v2375
      %v2726 = vpop.f32.mrb[0].mxu0
      %v2727 = vadd.f32 %v2230, %v2726
      %v2728 = vpop.f32.mrb[0].mxu0
      %2729 = vmatprep.mubr.f32.mxu0 0.0
      %2730 = vmatmul.mubr.f32.gmra.mrb[0].mxu0 %v2378
      %v2731 = vpop.f32.mrb[0].mxu0
      %v2732 = vadd.f32 %v2230, %v2731
      %v2733 = vpop.f32.mrb[0].mxu0
      %2734 = vmatprep.mubr.f32.mxu0 0.0
      %2735 = vmatmul.mubr.f32.gmra.mrb[0].mxu0 %v2381
      %v2736 = vpop.f32.mrb[0].mxu0
      %v2737 = vadd.f32 %v2230, %v2736
      %v2738 = vpop.f32.mrb[0].mxu0
      %2739 = vmatprep.mubr.f32.mxu0 0.0
      %2740 = vmatmul.mubr.f32.gmra.mrb[0].mxu0 %v2384
      %v2741 = vpop.f32.mrb[0].mxu0
      %v2742 = vadd.f32 %v2230, %v2741
      %v2743 = vpop.f32.mrb[0].mxu0
      %2744 = vmatprep.mubr.f32.mxu0 0.0
      %2745 = vmatmul.mubr.f32.gmra.mrb[0].mxu0 %v2387
      %v2746 = vpop.f32.mrb[0].mxu0
      %v2747 = vadd.f32 %v2230, %v2746
      %v2748 = vpop.f32.mrb[0].mxu0
      %2749 = vmatprep.mubr.f32.mxu0 0.0
      %2750 = vmatmul.mubr.f32.gmra.mrb[0].mxu0 %v2390
      %v2751 = vpop.f32.mrb[0].mxu0
      %v2752 = vadd.f32 %v2230, %v2751
      %v2753 = vpop.f32.mrb[0].mxu0
      %2754 = vmatprep.mubr.f32.mxu0 0.0
      %2755 = vmatmul.mubr.f32.gmra.mrb[0].mxu0 %v2393
      %v2756 = vpop.f32.mrb[0].mxu0
      %v2757 = vadd.f32 %v2230, %v2756
      %v2758 = vpop.f32.mrb[0].mxu0
      %2759 = vmatprep.mubr.f32.mxu0 0.0
      %2760 = vmatmul.mubr.f32.gmra.mrb[0].mxu0 %v2396
      %v2761 = vpop.f32.mrb[0].mxu0
      %v2762 = vadd.f32 %v2230, %v2761
      %v2763 = vpop.f32.mrb[0].mxu0
      %2764 = vmatprep.mubr.f32.mxu0 0.0
      %2765 = vmatmul.mubr.f32.gmra.mrb[0].mxu0 %v2399
      %v2766 = vpop.f32.mrb[0].mxu0
      %v2767 = vadd.f32 %v2230, %v2766
      %v2768 = vpop.f32.mrb[0].mxu0
      %2769 = vmatprep.mubr.f32.mxu0 0.0
      %2770 = vmatmul.mubr.f32.gmra.mrb[0].mxu0 %v2402
      %v2771 = vpop.f32.mrb[0].mxu0
      %v2772 = vadd.f32 %v2230, %v2771
      %v2773 = vpop.f32.mrb[0].mxu0
      %2774 = vmatprep.mubr.f32.mxu0 0.0
      %2775 = vmatmul.mubr.f32.gmra.mrb[0].mxu0 %v2405
      %v2776 = vpop.f32.mrb[0].mxu0
      %v2777 = vadd.f32 %v2230, %v2776
      %v2778 = vpop.f32.mrb[0].mxu0
      %2779 = vmatprep.mubr.f32.mxu0 0.0
      %2780 = vmatmul.mubr.f32.gmra.mrb[0].mxu0 %v2408
      %v2781 = vpop.f32.mrb[0].mxu0
      %v2782 = vadd.f32 %v2230, %v2781
      %v2783 = vpop.f32.mrb[0].mxu0
      %2784 = vmatprep.mubr.f32.mxu0 0.0
      %2785 = vmatmul.mubr.f32.gmra.mrb[0].mxu0 %v2411
      %v2786 = vpop.f32.mrb[0].mxu0
      %v2787 = vadd.f32 %v2230, %v2786
      %v2788 = vpop.f32.mrb[0].mxu0
      %2789 = vmatprep.mubr.f32.mxu0 0.0
      %2790 = vmatmul.mubr.f32.gmra.mrb[0].mxu0 %v2414
      %v2791 = vpop.f32.mrb[0].mxu0
      %v2792 = vadd.f32 %v2230, %v2791
      %v2793 = vpop.f32.mrb[0].mxu0
      %2794 = vmatprep.mubr.f32.mxu0 0.0
      %2795 = vmatmul.mubr.f32.gmra.mrb[0].mxu0 %v2417
      %v2796 = vpop.f32.mrb[0].mxu0
      %v2797 = vadd.f32 %v2230, %v2796
      %v2798 = vpop.f32.mrb[0].mxu0
      %2799 = vmatprep.mubr.f32.mxu0 0.0
      %2800 = vmatmul.mubr.f32.gmra.mrb[0].mxu0 %v2420
      %v2801 = vpop.f32.mrb[0].mxu0
      %v2802 = vadd.f32 %v2230, %v2801
      %v2803 = vpop.f32.mrb[0].mxu0
      %2804 = vmatprep.mubr.f32.mxu0 0.0
      %2805 = vmatmul.mubr.f32.gmra.mrb[0].mxu0 %v2423
      %v2806 = vpop.f32.mrb[0].mxu0
      %v2807 = vadd.f32 %v2230, %v2806
      %v2808 = vpop.f32.mrb[0].mxu0
      %2809 = vdwg.mxu0
      %vm2810 = vcmask 15360
      %2811 = vst.msk [vmem:[%s369] sm:$0xff] %vm2810, %v2492
      %2812 = vst.msk [vmem:[%s369 + $0x8] sm:$0xff] %vm2810, %v2497
      %2813 = vst.msk [vmem:[%s369 + $0x10] sm:$0xff] %vm2810, %v2502
      %2814 = vst.msk [vmem:[%s369 + $0x18] sm:$0xff] %vm2810, %v2507
      %2815 = vst.msk [vmem:[%s369 + $0x20] sm:$0xff] %vm2810, %v2512
      %2816 = vst.msk [vmem:[%s369 + $0x28] sm:$0xff] %vm2810, %v2517
      %2817 = vst.msk [vmem:[%s369 + $0x30] sm:$0xff] %vm2810, %v2522
      %2818 = vst.msk [vmem:[%s369 + $0x38] sm:$0xff] %vm2810, %v2527
      %2819 = vst.msk [vmem:[%s369 + $0x40] sm:$0xff] %vm2810, %v2532
      %2820 = vst.msk [vmem:[%s369 + $0x48] sm:$0xff] %vm2810, %v2537
      %2821 = vst.msk [vmem:[%s369 + $0x50] sm:$0xff] %vm2810, %v2542
      %2822 = vst.msk [vmem:[%s369 + $0x58] sm:$0xff] %vm2810, %v2547
      %2823 = vst.msk [vmem:[%s369 + $0x60] sm:$0xff] %vm2810, %v2552
      %2824 = vst.msk [vmem:[%s369 + $0x68] sm:$0xff] %vm2810, %v2557
      %2825 = vst.msk [vmem:[%s369 + $0x70] sm:$0xff] %vm2810, %v2562
      %2826 = vst.msk [vmem:[%s369 + $0x78] sm:$0xff] %vm2810, %v2567
      %2827 = vst.msk [vmem:[%s369 + $0x80] sm:$0xff] %vm2810, %v2572
      %2828 = vst.msk [vmem:[%s369 + $0x88] sm:$0xff] %vm2810, %v2577
      %2829 = vst.msk [vmem:[%s369 + $0x90] sm:$0xff] %vm2810, %v2582
      %2830 = vst.msk [vmem:[%s369 + $0x98] sm:$0xff] %vm2810, %v2587
      %2831 = vst.msk [vmem:[%s369 + $0xa0] sm:$0xff] %vm2810, %v2592
      %2832 = vst.msk [vmem:[%s369 + $0xa8] sm:$0xff] %vm2810, %v2597
      %2833 = vst.msk [vmem:[%s369 + $0xb0] sm:$0xff] %vm2810, %v2602
      %2834 = vst.msk [vmem:[%s369 + $0xb8] sm:$0xff] %vm2810, %v2607
      %2835 = vst.msk [vmem:[%s369 + $0xc0] sm:$0xff] %vm2810, %v2612
      %2836 = vst.msk [vmem:[%s369 + $0xc8] sm:$0xff] %vm2810, %v2617
      %2837 = vst.msk [vmem:[%s369 + $0xd0] sm:$0xff] %vm2810, %v2622
      %2838 = vst.msk [vmem:[%s369 + $0xd8] sm:$0xff] %vm2810, %v2627
      %2839 = vst.msk [vmem:[%s369 + $0xe0] sm:$0xff] %vm2810, %v2632
      %2840 = vst.msk [vmem:[%s369 + $0xe8] sm:$0xff] %vm2810, %v2637
      %2841 = vst.msk [vmem:[%s369 + $0xf0] sm:$0xff] %vm2810, %v2642
      %2842 = vst.msk [vmem:[%s369 + $0xf8] sm:$0xff] %vm2810, %v2647
      %2843 = vst.msk [vmem:[%s369 + $0x100] sm:$0xff] %vm2810, %v2652
      %2844 = vst.msk [vmem:[%s369 + $0x108] sm:$0xff] %vm2810, %v2657
      %2845 = vst.msk [vmem:[%s369 + $0x110] sm:$0xff] %vm2810, %v2662
      %2846 = vst.msk [vmem:[%s369 + $0x118] sm:$0xff] %vm2810, %v2667
      %2847 = vst.msk [vmem:[%s369 + $0x120] sm:$0xff] %vm2810, %v2672
      %2848 = vst.msk [vmem:[%s369 + $0x128] sm:$0xff] %vm2810, %v2677
      %2849 = vst.msk [vmem:[%s369 + $0x130] sm:$0xff] %vm2810, %v2682
      %2850 = vst.msk [vmem:[%s369 + $0x138] sm:$0xff] %vm2810, %v2687
      %2851 = vst.msk [vmem:[%s369 + $0x140] sm:$0xff] %vm2810, %v2692
      %2852 = vst.msk [vmem:[%s369 + $0x148] sm:$0xff] %vm2810, %v2697
      %2853 = vst.msk [vmem:[%s369 + $0x150] sm:$0xff] %vm2810, %v2702
      %2854 = vst.msk [vmem:[%s369 + $0x158] sm:$0xff] %vm2810, %v2707
      %2855 = vst.msk [vmem:[%s369 + $0x160] sm:$0xff] %vm2810, %v2712
      %2856 = vst.msk [vmem:[%s369 + $0x168] sm:$0xff] %vm2810, %v2717
      %2857 = vst.msk [vmem:[%s369 + $0x170] sm:$0xff] %vm2810, %v2722
      %2858 = vst.msk [vmem:[%s369 + $0x178] sm:$0xff] %vm2810, %v2727
      %2859 = vst.msk [vmem:[%s369 + $0x180] sm:$0xff] %vm2810, %v2732
      %2860 = vst.msk [vmem:[%s369 + $0x188] sm:$0xff] %vm2810, %v2737
      %2861 = vst.msk [vmem:[%s369 + $0x190] sm:$0xff] %vm2810, %v2742
      %2862 = vst.msk [vmem:[%s369 + $0x198] sm:$0xff] %vm2810, %v2747
      %2863 = vst.msk [vmem:[%s369 + $0x1a0] sm:$0xff] %vm2810, %v2752
      %2864 = vst.msk [vmem:[%s369 + $0x1a8] sm:$0xff] %vm2810, %v2757
      %2865 = vst.msk [vmem:[%s369 + $0x1b0] sm:$0xff] %vm2810, %v2762
      %2866 = vst.msk [vmem:[%s369 + $0x1b8] sm:$0xff] %vm2810, %v2767
      %2867 = vst.msk [vmem:[%s369 + $0x1c0] sm:$0xff] %vm2810, %v2772
      %2868 = vst.msk [vmem:[%s369 + $0x1c8] sm:$0xff] %vm2810, %v2777
      %2869 = vst.msk [vmem:[%s369 + $0x1d0] sm:$0xff] %vm2810, %v2782
      %2870 = vst.msk [vmem:[%s369 + $0x1d8] sm:$0xff] %vm2810, %v2787
      %2871 = vst.msk [vmem:[%s369 + $0x1e0] sm:$0xff] %vm2810, %v2792
      %2872 = vst.msk [vmem:[%s369 + $0x1e8] sm:$0xff] %vm2810, %v2797
      %2873 = vst.msk [vmem:[%s369 + $0x1f0] sm:$0xff] %vm2810, %v2802
      %2874 = vst.msk [vmem:[%s369 + $0x1f8] sm:$0xff] %vm2810, %v2807
      %2939 = vrot.lane.b32.xlu0 %v2492, 1
      %v2940 = vpop.permute.xlu0 %2939
      %2941 = vrot.lane.b32.xlu0 %v2497, 1
      %v2942 = vpop.permute.xlu0 %2941
      %2943 = vrot.lane.b32.xlu0 %v2502, 1
      %v2944 = vpop.permute.xlu0 %2943
      %2945 = vrot.lane.b32.xlu0 %v2507, 1
      %v2946 = vpop.permute.xlu0 %2945
      %2947 = vrot.lane.b32.xlu0 %v2512, 1
      %v2948 = vpop.permute.xlu0 %2947
      %2949 = vrot.lane.b32.xlu0 %v2517, 1
      %v2950 = vpop.permute.xlu0 %2949
      %2951 = vrot.lane.b32.xlu0 %v2522, 1
      %v2952 = vpop.permute.xlu0 %2951
      %2953 = vrot.lane.b32.xlu0 %v2527, 1
      %v2954 = vpop.permute.xlu0 %2953
      %2955 = vrot.lane.b32.xlu0 %v2532, 1
      %v2956 = vpop.permute.xlu0 %2955
      %2957 = vrot.lane.b32.xlu0 %v2537, 1
      %v2958 = vpop.permute.xlu0 %2957
      %2959 = vrot.lane.b32.xlu0 %v2542, 1
      %v2960 = vpop.permute.xlu0 %2959
      %2961 = vrot.lane.b32.xlu0 %v2547, 1
      %v2962 = vpop.permute.xlu0 %2961
      %2963 = vrot.lane.b32.xlu0 %v2552, 1
      %v2964 = vpop.permute.xlu0 %2963
      %2965 = vrot.lane.b32.xlu0 %v2557, 1
      %v2966 = vpop.permute.xlu0 %2965
      %2967 = vrot.lane.b32.xlu0 %v2562, 1
      %v2968 = vpop.permute.xlu0 %2967
      %2969 = vrot.lane.b32.xlu0 %v2567, 1
      %v2970 = vpop.permute.xlu0 %2969
      %2971 = vrot.lane.b32.xlu0 %v2572, 1
      %v2972 = vpop.permute.xlu0 %2971
      %2973 = vrot.lane.b32.xlu0 %v2577, 1
      %v2974 = vpop.permute.xlu0 %2973
      %2975 = vrot.lane.b32.xlu0 %v2582, 1
      %v2976 = vpop.permute.xlu0 %2975
      %2977 = vrot.lane.b32.xlu0 %v2587, 1
      %v2978 = vpop.permute.xlu0 %2977
      %2979 = vrot.lane.b32.xlu0 %v2592, 1
      %v2980 = vpop.permute.xlu0 %2979
      %2981 = vrot.lane.b32.xlu0 %v2597, 1
      %v2982 = vpop.permute.xlu0 %2981
      %2983 = vrot.lane.b32.xlu0 %v2602, 1
      %v2984 = vpop.permute.xlu0 %2983
      %2985 = vrot.lane.b32.xlu0 %v2607, 1
      %v2986 = vpop.permute.xlu0 %2985
      %2987 = vrot.lane.b32.xlu0 %v2612, 1
      %v2988 = vpop.permute.xlu0 %2987
      %2989 = vrot.lane.b32.xlu0 %v2617, 1
      %v2990 = vpop.permute.xlu0 %2989
      %2991 = vrot.lane.b32.xlu0 %v2622, 1
      %v2992 = vpop.permute.xlu0 %2991
      %2993 = vrot.lane.b32.xlu0 %v2627, 1
      %v2994 = vpop.permute.xlu0 %2993
      %2995 = vrot.lane.b32.xlu0 %v2632, 1
      %v2996 = vpop.permute.xlu0 %2995
      %2997 = vrot.lane.b32.xlu0 %v2637, 1
      %v2998 = vpop.permute.xlu0 %2997
      %2999 = vrot.lane.b32.xlu0 %v2642, 1
      %v3000 = vpop.permute.xlu0 %2999
      %3001 = vrot.lane.b32.xlu0 %v2647, 1
      %v3002 = vpop.permute.xlu0 %3001
      %3003 = vrot.lane.b32.xlu0 %v2652, 1
      %v3004 = vpop.permute.xlu0 %3003
      %3005 = vrot.lane.b32.xlu0 %v2657, 1
      %v3006 = vpop.permute.xlu0 %3005
      %3007 = vrot.lane.b32.xlu0 %v2662, 1
      %v3008 = vpop.permute.xlu0 %3007
      %3009 = vrot.lane.b32.xlu0 %v2667, 1
      %v3010 = vpop.permute.xlu0 %3009
      %3011 = vrot.lane.b32.xlu0 %v2672, 1
      %v3012 = vpop.permute.xlu0 %3011
      %3013 = vrot.lane.b32.xlu0 %v2677, 1
      %v3014 = vpop.permute.xlu0 %3013
      %3015 = vrot.lane.b32.xlu0 %v2682, 1
      %v3016 = vpop.permute.xlu0 %3015
      %3017 = vrot.lane.b32.xlu0 %v2687, 1
      %v3018 = vpop.permute.xlu0 %3017
      %3019 = vrot.lane.b32.xlu0 %v2692, 1
      %v3020 = vpop.permute.xlu0 %3019
      %3021 = vrot.lane.b32.xlu0 %v2697, 1
      %v3022 = vpop.permute.xlu0 %3021
      %3023 = vrot.lane.b32.xlu0 %v2702, 1
      %v3024 = vpop.permute.xlu0 %3023
      %3025 = vrot.lane.b32.xlu0 %v2707, 1
      %v3026 = vpop.permute.xlu0 %3025
      %3027 = vrot.lane.b32.xlu0 %v2712, 1
      %v3028 = vpop.permute.xlu0 %3027
      %3029 = vrot.lane.b32.xlu0 %v2717, 1
      %v3030 = vpop.permute.xlu0 %3029
      %3031 = vrot.lane.b32.xlu0 %v2722, 1
      %v3032 = vpop.permute.xlu0 %3031
      %3033 = vrot.lane.b32.xlu0 %v2727, 1
      %v3034 = vpop.permute.xlu0 %3033
      %3035 = vrot.lane.b32.xlu0 %v2732, 1
      %v3036 = vpop.permute.xlu0 %3035
      %3037 = vrot.lane.b32.xlu0 %v2737, 1
      %v3038 = vpop.permute.xlu0 %3037
      %3039 = vrot.lane.b32.xlu0 %v2742, 1
      %v3040 = vpop.permute.xlu0 %3039
      %3041 = vrot.lane.b32.xlu0 %v2747, 1
      %v3042 = vpop.permute.xlu0 %3041
      %3043 = vrot.lane.b32.xlu0 %v2752, 1
      %v3044 = vpop.permute.xlu0 %3043
      %3045 = vrot.lane.b32.xlu0 %v2757, 1
      %v3046 = vpop.permute.xlu0 %3045
      %3047 = vrot.lane.b32.xlu0 %v2762, 1
      %v3048 = vpop.permute.xlu0 %3047
      %3049 = vrot.lane.b32.xlu0 %v2767, 1
      %v3050 = vpop.permute.xlu0 %3049
      %3051 = vrot.lane.b32.xlu0 %v2772, 1
      %v3052 = vpop.permute.xlu0 %3051
      %3053 = vrot.lane.b32.xlu0 %v2777, 1
      %v3054 = vpop.permute.xlu0 %3053
      %3055 = vrot.lane.b32.xlu0 %v2782, 1
      %v3056 = vpop.permute.xlu0 %3055
      %3057 = vrot.lane.b32.xlu0 %v2787, 1
      %v3058 = vpop.permute.xlu0 %3057
      %3059 = vrot.lane.b32.xlu0 %v2792, 1
      %v3060 = vpop.permute.xlu0 %3059
      %3061 = vrot.lane.b32.xlu0 %v2797, 1
      %v3062 = vpop.permute.xlu0 %3061
      %3063 = vrot.lane.b32.xlu0 %v2802, 1
      %v3064 = vpop.permute.xlu0 %3063
      %3065 = vrot.lane.b32.xlu0 %v2807, 1
      %v3066 = vpop.permute.xlu0 %3065
      %vm3131 = vcmp.gt.f32.partialorder %v2492, %v2940
      %vm3132 = vcmp.gt.f32.partialorder %v2497, %v2942
      %vm3133 = vcmp.gt.f32.partialorder %v2502, %v2944
      %vm3134 = vcmp.gt.f32.partialorder %v2507, %v2946
      %vm3135 = vcmp.gt.f32.partialorder %v2512, %v2948
      %vm3136 = vcmp.gt.f32.partialorder %v2517, %v2950
      %vm3137 = vcmp.gt.f32.partialorder %v2522, %v2952
      %vm3138 = vcmp.gt.f32.partialorder %v2527, %v2954
      %vm3139 = vcmp.gt.f32.partialorder %v2532, %v2956
      %vm3140 = vcmp.gt.f32.partialorder %v2537, %v2958
      %vm3141 = vcmp.gt.f32.partialorder %v2542, %v2960
      %vm3142 = vcmp.gt.f32.partialorder %v2547, %v2962
      %vm3143 = vcmp.gt.f32.partialorder %v2552, %v2964
      %vm3144 = vcmp.gt.f32.partialorder %v2557, %v2966
      %vm3145 = vcmp.gt.f32.partialorder %v2562, %v2968
      %vm3146 = vcmp.gt.f32.partialorder %v2567, %v2970
      %vm3147 = vcmp.gt.f32.partialorder %v2572, %v2972
      %vm3148 = vcmp.gt.f32.partialorder %v2577, %v2974
      %vm3149 = vcmp.gt.f32.partialorder %v2582, %v2976
      %vm3150 = vcmp.gt.f32.partialorder %v2587, %v2978
      %vm3151 = vcmp.gt.f32.partialorder %v2592, %v2980
      %vm3152 = vcmp.gt.f32.partialorder %v2597, %v2982
      %vm3153 = vcmp.gt.f32.partialorder %v2602, %v2984
      %vm3154 = vcmp.gt.f32.partialorder %v2607, %v2986
      %vm3155 = vcmp.gt.f32.partialorder %v2612, %v2988
      %vm3156 = vcmp.gt.f32.partialorder %v2617, %v2990
      %vm3157 = vcmp.gt.f32.partialorder %v2622, %v2992
      %vm3158 = vcmp.gt.f32.partialorder %v2627, %v2994
      %vm3159 = vcmp.gt.f32.partialorder %v2632, %v2996
      %vm3160 = vcmp.gt.f32.partialorder %v2637, %v2998
      %vm3161 = vcmp.gt.f32.partialorder %v2642, %v3000
      %vm3162 = vcmp.gt.f32.partialorder %v2647, %v3002
      %vm3163 = vcmp.gt.f32.partialorder %v2652, %v3004
      %vm3164 = vcmp.gt.f32.partialorder %v2657, %v3006
      %vm3165 = vcmp.gt.f32.partialorder %v2662, %v3008
      %vm3166 = vcmp.gt.f32.partialorder %v2667, %v3010
      %vm3167 = vcmp.gt.f32.partialorder %v2672, %v3012
      %vm3168 = vcmp.gt.f32.partialorder %v2677, %v3014
      %vm3169 = vcmp.gt.f32.partialorder %v2682, %v3016
      %vm3170 = vcmp.gt.f32.partialorder %v2687, %v3018
      %vm3171 = vcmp.gt.f32.partialorder %v2692, %v3020
      %vm3172 = vcmp.gt.f32.partialorder %v2697, %v3022
      %vm3173 = vcmp.gt.f32.partialorder %v2702, %v3024
      %vm3174 = vcmp.gt.f32.partialorder %v2707, %v3026
      %vm3175 = vcmp.gt.f32.partialorder %v2712, %v3028
      %vm3176 = vcmp.gt.f32.partialorder %v2717, %v3030
      %vm3177 = vcmp.gt.f32.partialorder %v2722, %v3032
      %vm3178 = vcmp.gt.f32.partialorder %v2727, %v3034
      %vm3179 = vcmp.gt.f32.partialorder %v2732, %v3036
      %vm3180 = vcmp.gt.f32.partialorder %v2737, %v3038
      %vm3181 = vcmp.gt.f32.partialorder %v2742, %v3040
      %vm3182 = vcmp.gt.f32.partialorder %v2747, %v3042
      %vm3183 = vcmp.gt.f32.partialorder %v2752, %v3044
      %vm3184 = vcmp.gt.f32.partialorder %v2757, %v3046
      %vm3185 = vcmp.gt.f32.partialorder %v2762, %v3048
      %vm3186 = vcmp.gt.f32.partialorder %v2767, %v3050
      %vm3187 = vcmp.gt.f32.partialorder %v2772, %v3052
      %vm3188 = vcmp.gt.f32.partialorder %v2777, %v3054
      %vm3189 = vcmp.gt.f32.partialorder %v2782, %v3056
      %vm3190 = vcmp.gt.f32.partialorder %v2787, %v3058
      %vm3191 = vcmp.gt.f32.partialorder %v2792, %v3060
      %vm3192 = vcmp.gt.f32.partialorder %v2797, %v3062
      %vm3193 = vcmp.gt.f32.partialorder %v2802, %v3064
      %vm3194 = vcmp.gt.f32.partialorder %v2807, %v3066
      %v3195 = vsel %vm3131, 1, 0
      %v3196 = vsel %vm3132, 1, 0
      %v3197 = vsel %vm3133, 1, 0
      %v3198 = vsel %vm3134, 1, 0
      %v3199 = vsel %vm3135, 1, 0
      %v3200 = vsel %vm3136, 1, 0
      %v3201 = vsel %vm3137, 1, 0
      %v3202 = vsel %vm3138, 1, 0
      %v3203 = vsel %vm3139, 1, 0
      %v3204 = vsel %vm3140, 1, 0
      %v3205 = vsel %vm3141, 1, 0
      %v3206 = vsel %vm3142, 1, 0
      %v3207 = vsel %vm3143, 1, 0
      %v3208 = vsel %vm3144, 1, 0
      %v3209 = vsel %vm3145, 1, 0
      %v3210 = vsel %vm3146, 1, 0
      %v3211 = vsel %vm3147, 1, 0
      %v3212 = vsel %vm3148, 1, 0
      %v3213 = vsel %vm3149, 1, 0
      %v3214 = vsel %vm3150, 1, 0
      %v3215 = vsel %vm3151, 1, 0
      %v3216 = vsel %vm3152, 1, 0
      %v3217 = vsel %vm3153, 1, 0
      %v3218 = vsel %vm3154, 1, 0
      %v3219 = vsel %vm3155, 1, 0
      %v3220 = vsel %vm3156, 1, 0
      %v3221 = vsel %vm3157, 1, 0
      %v3222 = vsel %vm3158, 1, 0
      %v3223 = vsel %vm3159, 1, 0
      %v3224 = vsel %vm3160, 1, 0
      %v3225 = vsel %vm3161, 1, 0
      %v3226 = vsel %vm3162, 1, 0
      %v3227 = vsel %vm3163, 1, 0
      %v3228 = vsel %vm3164, 1, 0
      %v3229 = vsel %vm3165, 1, 0
      %v3230 = vsel %vm3166, 1, 0
      %v3231 = vsel %vm3167, 1, 0
      %v3232 = vsel %vm3168, 1, 0
      %v3233 = vsel %vm3169, 1, 0
      %v3234 = vsel %vm3170, 1, 0
      %v3235 = vsel %vm3171, 1, 0
      %v3236 = vsel %vm3172, 1, 0
      %v3237 = vsel %vm3173, 1, 0
      %v3238 = vsel %vm3174, 1, 0
      %v3239 = vsel %vm3175, 1, 0
      %v3240 = vsel %vm3176, 1, 0
      %v3241 = vsel %vm3177, 1, 0
      %v3242 = vsel %vm3178, 1, 0
      %v3243 = vsel %vm3179, 1, 0
      %v3244 = vsel %vm3180, 1, 0
      %v3245 = vsel %vm3181, 1, 0
      %v3246 = vsel %vm3182, 1, 0
      %v3247 = vsel %vm3183, 1, 0
      %v3248 = vsel %vm3184, 1, 0
      %v3249 = vsel %vm3185, 1, 0
      %v3250 = vsel %vm3186, 1, 0
      %v3251 = vsel %vm3187, 1, 0
      %v3252 = vsel %vm3188, 1, 0
      %v3253 = vsel %vm3189, 1, 0
      %v3254 = vsel %vm3190, 1, 0
      %v3255 = vsel %vm3191, 1, 0
      %v3256 = vsel %vm3192, 1, 0
      %v3257 = vsel %vm3193, 1, 0
      %v3258 = vsel %vm3194, 1, 0
      %3259 = vrot.lane.b32.xlu0 %v3195, 127
      %v3260 = vpop.permute.xlu0 %3259
      %3261 = vrot.lane.b32.xlu0 %v3196, 127
      %v3262 = vpop.permute.xlu0 %3261
      %3263 = vrot.lane.b32.xlu0 %v3197, 127
      %v3264 = vpop.permute.xlu0 %3263
      %3265 = vrot.lane.b32.xlu0 %v3198, 127
      %v3266 = vpop.permute.xlu0 %3265
      %3267 = vrot.lane.b32.xlu0 %v3199, 127
      %v3268 = vpop.permute.xlu0 %3267
      %3269 = vrot.lane.b32.xlu0 %v3200, 127
      %v3270 = vpop.permute.xlu0 %3269
      %3271 = vrot.lane.b32.xlu0 %v3201, 127
      %v3272 = vpop.permute.xlu0 %3271
      %3273 = vrot.lane.b32.xlu0 %v3202, 127
      %v3274 = vpop.permute.xlu0 %3273
      %3275 = vrot.lane.b32.xlu0 %v3203, 127
      %v3276 = vpop.permute.xlu0 %3275
      %3277 = vrot.lane.b32.xlu0 %v3204, 127
      %v3278 = vpop.permute.xlu0 %3277
      %3279 = vrot.lane.b32.xlu0 %v3205, 127
      %v3280 = vpop.permute.xlu0 %3279
      %3281 = vrot.lane.b32.xlu0 %v3206, 127
      %v3282 = vpop.permute.xlu0 %3281
      %3283 = vrot.lane.b32.xlu0 %v3207, 127
      %v3284 = vpop.permute.xlu0 %3283
      %3285 = vrot.lane.b32.xlu0 %v3208, 127
      %v3286 = vpop.permute.xlu0 %3285
      %3287 = vrot.lane.b32.xlu0 %v3209, 127
      %v3288 = vpop.permute.xlu0 %3287
      %3289 = vrot.lane.b32.xlu0 %v3210, 127
      %v3290 = vpop.permute.xlu0 %3289
      %3291 = vrot.lane.b32.xlu0 %v3211, 127
      %v3292 = vpop.permute.xlu0 %3291
      %3293 = vrot.lane.b32.xlu0 %v3212, 127
      %v3294 = vpop.permute.xlu0 %3293
      %3295 = vrot.lane.b32.xlu0 %v3213, 127
      %v3296 = vpop.permute.xlu0 %3295
      %3297 = vrot.lane.b32.xlu0 %v3214, 127
      %v3298 = vpop.permute.xlu0 %3297
      %3299 = vrot.lane.b32.xlu0 %v3215, 127
      %v3300 = vpop.permute.xlu0 %3299
      %3301 = vrot.lane.b32.xlu0 %v3216, 127
      %v3302 = vpop.permute.xlu0 %3301
      %3303 = vrot.lane.b32.xlu0 %v3217, 127
      %v3304 = vpop.permute.xlu0 %3303
      %3305 = vrot.lane.b32.xlu0 %v3218, 127
      %v3306 = vpop.permute.xlu0 %3305
      %3307 = vrot.lane.b32.xlu0 %v3219, 127
      %v3308 = vpop.permute.xlu0 %3307
      %3309 = vrot.lane.b32.xlu0 %v3220, 127
      %v3310 = vpop.permute.xlu0 %3309
      %3311 = vrot.lane.b32.xlu0 %v3221, 127
      %v3312 = vpop.permute.xlu0 %3311
      %3313 = vrot.lane.b32.xlu0 %v3222, 127
      %v3314 = vpop.permute.xlu0 %3313
      %3315 = vrot.lane.b32.xlu0 %v3223, 127
      %v3316 = vpop.permute.xlu0 %3315
      %3317 = vrot.lane.b32.xlu0 %v3224, 127
      %v3318 = vpop.permute.xlu0 %3317
      %3319 = vrot.lane.b32.xlu0 %v3225, 127
      %v3320 = vpop.permute.xlu0 %3319
      %3321 = vrot.lane.b32.xlu0 %v3226, 127
      %v3322 = vpop.permute.xlu0 %3321
      %3323 = vrot.lane.b32.xlu0 %v3227, 127
      %v3324 = vpop.permute.xlu0 %3323
      %3325 = vrot.lane.b32.xlu0 %v3228, 127
      %v3326 = vpop.permute.xlu0 %3325
      %3327 = vrot.lane.b32.xlu0 %v3229, 127
      %v3328 = vpop.permute.xlu0 %3327
      %3329 = vrot.lane.b32.xlu0 %v3230, 127
      %v3330 = vpop.permute.xlu0 %3329
      %3331 = vrot.lane.b32.xlu0 %v3231, 127
      %v3332 = vpop.permute.xlu0 %3331
      %3333 = vrot.lane.b32.xlu0 %v3232, 127
      %v3334 = vpop.permute.xlu0 %3333
      %3335 = vrot.lane.b32.xlu0 %v3233, 127
      %v3336 = vpop.permute.xlu0 %3335
      %3337 = vrot.lane.b32.xlu0 %v3234, 127
      %v3338 = vpop.permute.xlu0 %3337
      %3339 = vrot.lane.b32.xlu0 %v3235, 127
      %v3340 = vpop.permute.xlu0 %3339
      %3341 = vrot.lane.b32.xlu0 %v3236, 127
      %v3342 = vpop.permute.xlu0 %3341
      %3343 = vrot.lane.b32.xlu0 %v3237, 127
      %v3344 = vpop.permute.xlu0 %3343
      %3345 = vrot.lane.b32.xlu0 %v3238, 127
      %v3346 = vpop.permute.xlu0 %3345
      %3347 = vrot.lane.b32.xlu0 %v3239, 127
      %v3348 = vpop.permute.xlu0 %3347
      %3349 = vrot.lane.b32.xlu0 %v3240, 127
      %v3350 = vpop.permute.xlu0 %3349
      %3351 = vrot.lane.b32.xlu0 %v3241, 127
      %v3352 = vpop.permute.xlu0 %3351
      %3353 = vrot.lane.b32.xlu0 %v3242, 127
      %v3354 = vpop.permute.xlu0 %3353
      %3355 = vrot.lane.b32.xlu0 %v3243, 127
      %v3356 = vpop.permute.xlu0 %3355
      %3357 = vrot.lane.b32.xlu0 %v3244, 127
      %v3358 = vpop.permute.xlu0 %3357
      %3359 = vrot.lane.b32.xlu0 %v3245, 127
      %v3360 = vpop.permute.xlu0 %3359
      %3361 = vrot.lane.b32.xlu0 %v3246, 127
      %v3362 = vpop.permute.xlu0 %3361
      %3363 = vrot.lane.b32.xlu0 %v3247, 127
      %v3364 = vpop.permute.xlu0 %3363
      %3365 = vrot.lane.b32.xlu0 %v3248, 127
      %v3366 = vpop.permute.xlu0 %3365
      %3367 = vrot.lane.b32.xlu0 %v3249, 127
      %v3368 = vpop.permute.xlu0 %3367
      %3369 = vrot.lane.b32.xlu0 %v3250, 127
      %v3370 = vpop.permute.xlu0 %3369
      %3371 = vrot.lane.b32.xlu0 %v3251, 127
      %v3372 = vpop.permute.xlu0 %3371
      %3373 = vrot.lane.b32.xlu0 %v3252, 127
      %v3374 = vpop.permute.xlu0 %3373
      %3375 = vrot.lane.b32.xlu0 %v3253, 127
      %v3376 = vpop.permute.xlu0 %3375
      %3377 = vrot.lane.b32.xlu0 %v3254, 127
      %v3378 = vpop.permute.xlu0 %3377
      %3379 = vrot.lane.b32.xlu0 %v3255, 127
      %v3380 = vpop.permute.xlu0 %3379
      %3381 = vrot.lane.b32.xlu0 %v3256, 127
      %v3382 = vpop.permute.xlu0 %3381
      %3383 = vrot.lane.b32.xlu0 %v3257, 127
      %v3384 = vpop.permute.xlu0 %3383
      %3385 = vrot.lane.b32.xlu0 %v3258, 127
      %v3386 = vpop.permute.xlu0 %3385
      %vm3387 = vcmask 7168
      %3388 = vst.msk [vmem:[%s375] sm:$0xff] %vm3387, %v3260
      %3389 = vst.msk [vmem:[%s375 + $0x8] sm:$0xff] %vm3387, %v3262
      %3390 = vst.msk [vmem:[%s375 + $0x10] sm:$0xff] %vm3387, %v3264
      %3391 = vst.msk [vmem:[%s375 + $0x18] sm:$0xff] %vm3387, %v3266
      %3392 = vst.msk [vmem:[%s375 + $0x20] sm:$0xff] %vm3387, %v3268
      %3393 = vst.msk [vmem:[%s375 + $0x28] sm:$0xff] %vm3387, %v3270
      %3394 = vst.msk [vmem:[%s375 + $0x30] sm:$0xff] %vm3387, %v3272
      %3395 = vst.msk [vmem:[%s375 + $0x38] sm:$0xff] %vm3387, %v3274
      %3396 = vst.msk [vmem:[%s375 + $0x40] sm:$0xff] %vm3387, %v3276
      %3397 = vst.msk [vmem:[%s375 + $0x48] sm:$0xff] %vm3387, %v3278
      %3398 = vst.msk [vmem:[%s375 + $0x50] sm:$0xff] %vm3387, %v3280
      %3399 = vst.msk [vmem:[%s375 + $0x58] sm:$0xff] %vm3387, %v3282
      %3400 = vst.msk [vmem:[%s375 + $0x60] sm:$0xff] %vm3387, %v3284
      %3401 = vst.msk [vmem:[%s375 + $0x68] sm:$0xff] %vm3387, %v3286
      %3402 = vst.msk [vmem:[%s375 + $0x70] sm:$0xff] %vm3387, %v3288
      %3403 = vst.msk [vmem:[%s375 + $0x78] sm:$0xff] %vm3387, %v3290
      %3404 = vst.msk [vmem:[%s375 + $0x80] sm:$0xff] %vm3387, %v3292
      %3405 = vst.msk [vmem:[%s375 + $0x88] sm:$0xff] %vm3387, %v3294
      %3406 = vst.msk [vmem:[%s375 + $0x90] sm:$0xff] %vm3387, %v3296
      %3407 = vst.msk [vmem:[%s375 + $0x98] sm:$0xff] %vm3387, %v3298
      %3408 = vst.msk [vmem:[%s375 + $0xa0] sm:$0xff] %vm3387, %v3300
      %3409 = vst.msk [vmem:[%s375 + $0xa8] sm:$0xff] %vm3387, %v3302
      %3410 = vst.msk [vmem:[%s375 + $0xb0] sm:$0xff] %vm3387, %v3304
      %3411 = vst.msk [vmem:[%s375 + $0xb8] sm:$0xff] %vm3387, %v3306
      %3412 = vst.msk [vmem:[%s375 + $0xc0] sm:$0xff] %vm3387, %v3308
      %3413 = vst.msk [vmem:[%s375 + $0xc8] sm:$0xff] %vm3387, %v3310
      %3414 = vst.msk [vmem:[%s375 + $0xd0] sm:$0xff] %vm3387, %v3312
      %3415 = vst.msk [vmem:[%s375 + $0xd8] sm:$0xff] %vm3387, %v3314
      %3416 = vst.msk [vmem:[%s375 + $0xe0] sm:$0xff] %vm3387, %v3316
      %3417 = vst.msk [vmem:[%s375 + $0xe8] sm:$0xff] %vm3387, %v3318
      %3418 = vst.msk [vmem:[%s375 + $0xf0] sm:$0xff] %vm3387, %v3320
      %3419 = vst.msk [vmem:[%s375 + $0xf8] sm:$0xff] %vm3387, %v3322
      %3420 = vst.msk [vmem:[%s375 + $0x100] sm:$0xff] %vm3387, %v3324
      %3421 = vst.msk [vmem:[%s375 + $0x108] sm:$0xff] %vm3387, %v3326
      %3422 = vst.msk [vmem:[%s375 + $0x110] sm:$0xff] %vm3387, %v3328
      %3423 = vst.msk [vmem:[%s375 + $0x118] sm:$0xff] %vm3387, %v3330
      %3424 = vst.msk [vmem:[%s375 + $0x120] sm:$0xff] %vm3387, %v3332
      %3425 = vst.msk [vmem:[%s375 + $0x128] sm:$0xff] %vm3387, %v3334
      %3426 = vst.msk [vmem:[%s375 + $0x130] sm:$0xff] %vm3387, %v3336
      %3427 = vst.msk [vmem:[%s375 + $0x138] sm:$0xff] %vm3387, %v3338
      %3428 = vst.msk [vmem:[%s375 + $0x140] sm:$0xff] %vm3387, %v3340
      %3429 = vst.msk [vmem:[%s375 + $0x148] sm:$0xff] %vm3387, %v3342
      %3430 = vst.msk [vmem:[%s375 + $0x150] sm:$0xff] %vm3387, %v3344
      %3431 = vst.msk [vmem:[%s375 + $0x158] sm:$0xff] %vm3387, %v3346
      %3432 = vst.msk [vmem:[%s375 + $0x160] sm:$0xff] %vm3387, %v3348
      %3433 = vst.msk [vmem:[%s375 + $0x168] sm:$0xff] %vm3387, %v3350
      %3434 = vst.msk [vmem:[%s375 + $0x170] sm:$0xff] %vm3387, %v3352
      %3435 = vst.msk [vmem:[%s375 + $0x178] sm:$0xff] %vm3387, %v3354
      %3436 = vst.msk [vmem:[%s375 + $0x180] sm:$0xff] %vm3387, %v3356
      %3437 = vst.msk [vmem:[%s375 + $0x188] sm:$0xff] %vm3387, %v3358
      %3438 = vst.msk [vmem:[%s375 + $0x190] sm:$0xff] %vm3387, %v3360
      %3439 = vst.msk [vmem:[%s375 + $0x198] sm:$0xff] %vm3387, %v3362
      %3440 = vst.msk [vmem:[%s375 + $0x1a0] sm:$0xff] %vm3387, %v3364
      %3441 = vst.msk [vmem:[%s375 + $0x1a8] sm:$0xff] %vm3387, %v3366
      %3442 = vst.msk [vmem:[%s375 + $0x1b0] sm:$0xff] %vm3387, %v3368
      %3443 = vst.msk [vmem:[%s375 + $0x1b8] sm:$0xff] %vm3387, %v3370
      %3444 = vst.msk [vmem:[%s375 + $0x1c0] sm:$0xff] %vm3387, %v3372
      %3445 = vst.msk [vmem:[%s375 + $0x1c8] sm:$0xff] %vm3387, %v3374
      %3446 = vst.msk [vmem:[%s375 + $0x1d0] sm:$0xff] %vm3387, %v3376
      %3447 = vst.msk [vmem:[%s375 + $0x1d8] sm:$0xff] %vm3387, %v3378
      %3448 = vst.msk [vmem:[%s375 + $0x1e0] sm:$0xff] %vm3387, %v3380
      %3449 = vst.msk [vmem:[%s375 + $0x1e8] sm:$0xff] %vm3387, %v3382
      %3450 = vst.msk [vmem:[%s375 + $0x1f0] sm:$0xff] %vm3387, %v3384
      %3451 = vst.msk [vmem:[%s375 + $0x1f8] sm:$0xff] %vm3387, %v3386
      %s3452 = smul.u32 64, %s22
      %p3453 = scmp.lt.s32.totalorder %s3452, 127
      %s3454 = scalar_select %p3453, %s3452, 127
      %s3455 = smul.addr %s3454, 8
      %s3456 = scalar_lea.vmem %s9, %s3455
      %s3457 = smul.u32 64, %s22
      %p3458 = scmp.lt.s32.totalorder %s3457, 127
      %s3459 = scalar_select %p3458, %s3457, 127
      %s3460 = smul.addr %s3459, 8
      %s3461 = scalar_lea.vmem %s10, %s3460
      // Predicated region
      $region57: #{ops_scores.1} parent=55 // pred_check
        %p3462 = pneg %p234
      $region58: #{ops_scores.1} parent=55 // pred_check_branch
        %3464 = sbr.rel (%p3462) target = $region60
      $region59: #{ops_scores.1} parent=55 // pred_region
        %s3465 = smul.u32 64, %s22
      $region60: #{ops_scores.1} parent=55 // pred_fallthru
        _
      // Predicated region
      $region61: #{ops_scores.1} parent=55 // pred_check
        %p3466 = pneg %p260
      $region62: #{ops_scores.1} parent=55 // pred_check_branch
        %3468 = sbr.rel (%p3466) target = $region64
      $region63: #{ops_scores.1} parent=55 // pred_region
        %s3469 = smul.u32 64, %s22
      $region64: #{ops_scores.1} parent=55 // pred_fallthru
        _
    $region56: #{ops_scores.1} parent=5 // pred_fallthru
      _
    %p3470 = scmp.le.s32.totalorder 2, %s17
    // Predicated region
    $region65: #{ops_scores.1} parent=5 // pred_check
      %p3471 = pneg %p3470
    $region66: #{ops_scores.1} parent=5 // pred_check_branch
      %3473 = sbr.rel (%p3471) target = $region68
    $region67: #{ops_scores.1} parent=5 // pred_region
      %s3474 = ssub.s32 %s17, 2
      // Predicated region
      $region69: #{ops_scores.1} parent=67 // pred_check
        %p3475 = pneg %p240
      $region70: #{ops_scores.1} parent=67 // pred_check_branch
        %3477 = sbr.rel (%p3475) target = $region72
      $region71: #{ops_scores.1} parent=67 // pred_region
        %s3478 = smul.u32 64, %s23
        %p3479 = scmp.lt.s32.totalorder %s3478, 127
        %s3480 = scalar_select %p3479, %s3478, 127
        %s3481 = smul.addr %s3480, 8
        %s3482 = scalar_lea.vmem %s9, %s3481
      $region72: #{ops_scores.1} parent=67 // pred_fallthru
        _
      // Predicated region
      $region73: #{ops_scores.1} parent=67 // pred_check
        %p3483 = pneg %p266
      $region74: #{ops_scores.1} parent=67 // pred_check_branch
        %3485 = sbr.rel (%p3483) target = $region76
      $region75: #{ops_scores.1} parent=67 // pred_region
        %s3486 = smul.u32 64, %s23
        %p3487 = scmp.lt.s32.totalorder %s3486, 127
        %s3488 = scalar_select %p3487, %s3486, 127
        %s3489 = smul.addr %s3488, 8
        %s3490 = scalar_lea.vmem %s10, %s3489
      $region76: #{ops_scores.1} parent=67 // pred_fallthru
        _
    $region68: #{ops_scores.1} parent=5 // pred_fallthru
      _
  $region6: #{ops_scores.1} parent=0 // loop_footer
    %s21 = sadd.s32 1, %s17
  $region7: #{ops_scores.1} parent=0 // loop_footer_branch
    %16 = sbr.rel target = $region3
  $region8: #{ops_scores.1} parent=0 // loop_exit
    _

</llo_original>
